<compile_context>
chip_gen: v5e
topology: v5e:2x2
jax: 0.10.0
libtpu: 0.0.40
codegen_flags: <defaults>
</compile_context>

<pallas_src>
import functools
import math

import jax
import jax.numpy as jnp
from jax.experimental import pallas as pl
from jax.experimental.pallas import tpu as pltpu


# ----------------------------- configuration -------------------------------
CFG = dict(
    image_size=20,      # SimpleViT(image_size=(20, 20), ...)
    patch_size=4,       # args.vit_patch_size
    channels=3,         # args.vit_channels
    dim=32,             # args.vit_dim
    depth=2,            # args.vit_depth
    heads=2,            # args.vit_heads
    dim_head=64,        # SimpleViT default (not exposed by PolicyModel)
    mlp_dim=64,         # args.vit_mlp_dim
    num_classes=1000,   # PolicyModel default
    num_classes_pad=1024,  # lane-dense padding of the embedding
    n_object=16,        # len(vocab.OBJECT_TO_IDX)  (object & furniture heads)
    n_room=8,           # len(vocab.ROOM_TO_IDX)
    n_action=8,         # len(vocab.ACTION_TO_IDX)
)
HEAD_PAD = 128          # decoder logits padded to one full lane group


# ----------------------------- small helpers -------------------------------
def _erf(x):
    # Abramowitz & Stegun 7.1.26 polynomial erf (max abs err ~1.5e-7) so exact GELU
    # matches torch.nn.GELU() using only ops that lower cleanly on Mosaic.
    a1, a2, a3, a4, a5 = 0.254829592, -0.284496736, 1.421413741, -1.453152027, 1.061405429
    p = 0.3275911
    sgn = jnp.where(x >= 0.0, 1.0, -1.0)
    ax = jnp.abs(x)
    t = 1.0 / (1.0 + p * ax)
    poly = ((((a5 * t + a4) * t + a3) * t + a2) * t + a1) * t
    return sgn * (1.0 - poly * jnp.exp(-ax * ax))


def _gelu(x):
    return 0.5 * x * (1.0 + _erf(x * 0.7071067811865476))


def _layernorm(x, g, b, eps=1e-5):
    mu = jnp.mean(x, axis=-1, keepdims=True)
    c = x - mu
    var = jnp.mean(c * c, axis=-1, keepdims=True)
    return c * jax.lax.rsqrt(var + eps) * g + b


# ----------------------------- fused encoder kernel ------------------------
def _encoder_kernel(patch_ref, pos_ref,
                    pl1g_ref, pl1b_ref, pw_ref, pb_ref, pl2g_ref, pl2b_ref,
                    alng_ref, alnb_ref, wqkv_ref, wout_ref,
                    flng_ref, flnb_ref, ffw1_ref, ffb1_ref, ffw2_ref, ffb2_ref,
                    fing_ref, finb_ref, hw_ref, hb_ref,
                    emb_ref,
                    *, depth, heads, dh, scale):
    inner = heads * dh

    # ---- patch embedding: LN -> Linear -> LN, + sincos pos-emb ----
    x = patch_ref[0]                                                   # (n, patch_dim)
    x = _layernorm(x, pl1g_ref[...], pl1b_ref[...])
    x = jnp.dot(x, pw_ref[...], preferred_element_type=jnp.float32) + pb_ref[...]
    x = _layernorm(x, pl2g_ref[...], pl2b_ref[...])
    x = x + pos_ref[...]                                               # (n, dim)

    # ---- transformer layers (unrolled, depth is static) ----
    for l in range(depth):
        # attention block (pre-LN, residual)
        h = _layernorm(x, alng_ref[l], alnb_ref[l])
        qkv = jnp.dot(h, wqkv_ref[l], preferred_element_type=jnp.float32)  # (n, 3*inner)
        head_outs = []
        for hd in range(heads):
            q = qkv[:, hd * dh:(hd + 1) * dh]
            k = qkv[:, inner + hd * dh:inner + (hd + 1) * dh]
            v = qkv[:, 2 * inner + hd * dh:2 * inner + (hd + 1) * dh]
            s = jnp.dot(q, k.T, preferred_element_type=jnp.float32) * scale
            s = s - jnp.max(s, axis=-1, keepdims=True)
            p = jnp.exp(s)
            attn = p / jnp.sum(p, axis=-1, keepdims=True)
            head_outs.append(jnp.dot(attn, v, preferred_element_type=jnp.float32))
        o = jnp.concatenate(head_outs, axis=-1)                        # (n, inner)
        x = x + jnp.dot(o, wout_ref[l], preferred_element_type=jnp.float32)

        # feed-forward block (pre-LN, residual)
        h = _layernorm(x, flng_ref[l], flnb_ref[l])
        h = jnp.dot(h, ffw1_ref[l], preferred_element_type=jnp.float32) + ffb1_ref[l]
        h = _gelu(h)
        x = x + (jnp.dot(h, ffw2_ref[l], preferred_element_type=jnp.float32) + ffb2_ref[l])

    # ---- final LN, mean-pool over patches, classification head ----
    x = _layernorm(x, fing_ref[...], finb_ref[...])
    pooled = jnp.mean(x, axis=0, keepdims=True)                        # (1, dim)
    emb = jnp.dot(pooled, hw_ref[...], preferred_element_type=jnp.float32) + hb_ref[...]
    emb_ref[0] = emb                                                   # (1, ncp) lane-dense


def vit_encoder(packed, patches, pos, cfg):
    B, n, patch_dim = patches.shape
    dim = cfg["dim"]
    depth = cfg["depth"]
    heads, dh = cfg["heads"], cfg["dim_head"]
    mlp = cfg["mlp_dim"]
    ncp = cfg["num_classes_pad"]

    def full(shape):
        return pl.BlockSpec(shape, lambda b, _s=shape: (0,) * len(_s))

    kernel = functools.partial(_encoder_kernel, depth=depth, heads=heads, dh=dh,
                               scale=dh ** -0.5)
    out = pl.pallas_call(
        kernel,
        out_shape=jax.ShapeDtypeStruct((B, 1, ncp), jnp.float32),
        grid=(B,),
        in_specs=[
            pl.BlockSpec((1, n, patch_dim), lambda b: (b, 0, 0)),      # patches
            full((n, dim)),                                            # pos emb
            full((1, patch_dim)), full((1, patch_dim)),                # patch LN1
            full((patch_dim, dim)), full((1, dim)),                    # patch Linear
            full((1, dim)), full((1, dim)),                            # patch LN2
            full((depth, 1, dim)), full((depth, 1, dim)),              # attn LN
            full((depth, dim, 3 * heads * dh)),                        # w_qkv
            full((depth, heads * dh, dim)),                            # w_out
            full((depth, 1, dim)), full((depth, 1, dim)),              # ff LN
            full((depth, dim, mlp)), full((depth, 1, mlp)),            # ff w1/b1
            full((depth, mlp, dim)), full((depth, 1, dim)),            # ff w2/b2
            full((1, dim)), full((1, dim)),                            # final LN
            full((dim, ncp)), full((1, ncp)),                          # head
        ],
        out_specs=pl.BlockSpec((1, 1, ncp), lambda b: (b, 0, 0)),
        compiler_params=pltpu.CompilerParams(dimension_semantics=("parallel",)),
    )(patches, pos,
      packed["pl1g"], packed["pl1b"], packed["pw"], packed["pb"],
      packed["pl2g"], packed["pl2b"],
      packed["alng"], packed["alnb"], packed["wqkv"], packed["wout"],
      packed["flng"], packed["flnb"], packed["ffw1"], packed["ffb1"],
      packed["ffw2"], packed["ffb2"],
      packed["fing"], packed["finb"], packed["head_w"], packed["head_b"])
    return out.reshape(B, ncp)


# ----------------------------- fused decoder kernel ------------------------
def _decoder_kernel(emb_ref, w1_ref, b1_ref, w2_ref, b2_ref, out_ref, acc_ref):
    k = pl.program_id(1)

    @pl.when(k == 0)
    def _():
        acc_ref[...] = jnp.zeros_like(acc_ref)

    w1 = w1_ref[0]                                                     # (tk, 512) bf16
    x = emb_ref[...].astype(w1.dtype)                                  # (B, tk) -> bf16
    acc_ref[...] += jnp.dot(x, w1, preferred_element_type=jnp.float32)

    @pl.when(k == pl.num_programs(1) - 1)
    def _():
        h = jnp.maximum(acc_ref[...] + b1_ref[0], 0.0)                 # (B, 512)
        out_ref[0] = (jnp.dot(h, w2_ref[0], preferred_element_type=jnp.float32)
                      + b2_ref[0])                                     # (B, 128)


def fused_decoders(emb, packed, *, tk=256):
    B, ncp = emb.shape
    nd, _, hid = packed["w1"].shape          # (4, 1024, 512)
    op = packed["w2"].shape[2]               # 128
    kt = ncp // tk
    return pl.pallas_call(
        _decoder_kernel,
        out_shape=jax.ShapeDtypeStruct((nd, B, op), jnp.float32),
        grid=(nd, kt),
        in_specs=[
            pl.BlockSpec((B, tk), lambda d, k: (0, k)),                # embedding slice
            pl.BlockSpec((1, tk, hid), lambda d, k: (d, k, 0)),        # w1 stream (bf16)
            pl.BlockSpec((1, 1, hid), lambda d, k: (d, 0, 0)),         # b1
            pl.BlockSpec((1, hid, op), lambda d, k: (d, 0, 0)),        # w2 (padded to 128)
            pl.BlockSpec((1, 1, op), lambda d, k: (d, 0, 0)),          # b2
        ],
        out_specs=pl.BlockSpec((1, B, op), lambda d, k: (d, 0, 0)),
        scratch_shapes=[pltpu.VMEM((B, hid), jnp.float32)],
        compiler_params=pltpu.CompilerParams(
            dimension_semantics=("parallel", "arbitrary")),
    )(emb, packed["w1"], packed["b1"], packed["w2"], packed["b2"])


# ----------------------------- model (glue + kernels) ----------------------
def posemb_sincos_2d(h, w, dim, temperature=10000.0):
    # matches vit_pytorch.simple_vit.posemb_sincos_2d
    y, x = jnp.meshgrid(jnp.arange(h), jnp.arange(w), indexing="ij")
    omega = jnp.arange(dim // 4, dtype=jnp.float32) / (dim // 4 - 1)
    omega = 1.0 / (temperature ** omega)
    y = y.reshape(-1)[:, None] * omega[None, :]
    x = x.reshape(-1)[:, None] * omega[None, :]
    return jnp.concatenate([jnp.sin(x), jnp.cos(x), jnp.sin(y), jnp.cos(y)],
                           axis=1).astype(jnp.float32)


def policy_forward(packed, state, cfg):
    B, C, H, W = state.shape
    p = cfg["patch_size"]
    gh, gw = H // p, W // p
    n = gh * gw

    # Rearrange 'b c (h p1) (w p2) -> b (h w) (p1 p2 c)'
    x = state.reshape(B, C, gh, p, gw, p)
    x = jnp.transpose(x, (0, 2, 4, 3, 5, 1))
    patches = x.reshape(B, n, C * p * p)

    pos = posemb_sincos_2d(gh, gw, cfg["dim"])

    emb = vit_encoder(packed, patches, pos, cfg)      # (B, 1024)  (cols >= 1000 are 0)
    dec = fused_decoders(emb, packed)                 # (4, B, 128)

    obj = dec[0, :, :cfg["n_object"]]
    fur = dec[1, :, :cfg["n_object"]]
    room = dec[2, :, :cfg["n_room"]]
    action = dec[3, :, :cfg["n_action"]]
    return obj, fur, room, action


# ----------------------------- deterministic params ------------------------
def init_params(key, cfg):
    p, c, dim = cfg["patch_size"], cfg["channels"], cfg["dim"]
    patch_dim = c * p * p
    inner = cfg["heads"] * cfg["dim_head"]
    keys = iter(jax.random.split(key, 64))

    def dense(fan_in, fan_out, bias=True):
        kw, kb = jax.random.split(next(keys))
        bound = 1.0 / math.sqrt(fan_in)
        w = jax.random.uniform(kw, (fan_in, fan_out), jnp.float32, -bound, bound)
        b = jax.random.uniform(kb, (fan_out,), jnp.float32, -bound, bound) if bias else None
        return w, b

    params = {
        "patch_ln1_g": jnp.ones((patch_dim,), jnp.float32),
        "patch_ln1_b": jnp.zeros((patch_dim,), jnp.float32),
        "patch_ln2_g": jnp.ones((dim,), jnp.float32),
        "patch_ln2_b": jnp.zeros((dim,), jnp.float32),
        "final_ln_g": jnp.ones((dim,), jnp.float32),
        "final_ln_b": jnp.zeros((dim,), jnp.float32),
    }
    params["patch_w"], params["patch_b"] = dense(patch_dim, dim)

    layers = []
    for _ in range(cfg["depth"]):
        layer = {
            "attn_ln_g": jnp.ones((dim,), jnp.float32),
            "attn_ln_b": jnp.zeros((dim,), jnp.float32),
            "ff_ln_g": jnp.ones((dim,), jnp.float32),
            "ff_ln_b": jnp.zeros((dim,), jnp.float32),
        }
        layer["w_qkv"], _ = dense(dim, 3 * inner, bias=False)
        layer["w_out"], _ = dense(inner, dim, bias=False)
        layer["ff_w1"], layer["ff_b1"] = dense(dim, cfg["mlp_dim"])
        layer["ff_w2"], layer["ff_b2"] = dense(cfg["mlp_dim"], dim)
        layers.append(layer)
    params["layers"] = layers

    params["head_w"], params["head_b"] = dense(dim, cfg["num_classes"])

    def decoder(out_dim):
        w1, b1 = dense(cfg["num_classes"], 512)
        w2, b2 = dense(512, out_dim)
        return {"w1": w1, "b1": b1, "w2": w2, "b2": b2}

    params["object_decoder"] = decoder(cfg["n_object"])
    params["furniture_decoder"] = decoder(cfg["n_object"])
    params["room_decoder"] = decoder(cfg["n_room"])
    params["action_decoder"] = decoder(cfg["n_action"])
    return params


def pack_params(params, cfg):
    """Stack / pad params into kernel-ready slabs (done once, outside jit)."""
    nc, ncp = cfg["num_classes"], cfg["num_classes_pad"]

    def row(v):
        return v.reshape(1, -1)

    layers = params["layers"]
    packed = {
        "pl1g": row(params["patch_ln1_g"]), "pl1b": row(params["patch_ln1_b"]),
        "pw": params["patch_w"], "pb": row(params["patch_b"]),
        "pl2g": row(params["patch_ln2_g"]), "pl2b": row(params["patch_ln2_b"]),
        "fing": row(params["final_ln_g"]), "finb": row(params["final_ln_b"]),
        "alng": jnp.stack([row(l["attn_ln_g"]) for l in layers]),
        "alnb": jnp.stack([row(l["attn_ln_b"]) for l in layers]),
        "wqkv": jnp.stack([l["w_qkv"] for l in layers]),
        "wout": jnp.stack([l["w_out"] for l in layers]),
        "flng": jnp.stack([row(l["ff_ln_g"]) for l in layers]),
        "flnb": jnp.stack([row(l["ff_ln_b"]) for l in layers]),
        "ffw1": jnp.stack([l["ff_w1"] for l in layers]),
        "ffb1": jnp.stack([row(l["ff_b1"]) for l in layers]),
        "ffw2": jnp.stack([l["ff_w2"] for l in layers]),
        "ffb2": jnp.stack([row(l["ff_b2"]) for l in layers]),
        # classification head: pad num_classes 1000 -> 1024 with zeros (exact)
        "head_w": jnp.pad(params["head_w"], ((0, 0), (0, ncp - nc))),
        "head_b": jnp.pad(row(params["head_b"]), ((0, 0), (0, ncp - nc))),
    }

    # decoders: stack, zero-pad K 1000->1024 and outputs ->128 lanes, bf16 the big w1
    names = ["object_decoder", "furniture_decoder", "room_decoder", "action_decoder"]
    w1s, b1s, w2s, b2s = [], [], [], []
    for nm in names:
        d = params[nm]
        od = d["w2"].shape[1]
        w1s.append(jnp.pad(d["w1"], ((0, ncp - nc), (0, 0))))
        b1s.append(row(d["b1"]))
        w2s.append(jnp.pad(d["w2"], ((0, 0), (0, HEAD_PAD - od))))
        b2s.append(jnp.pad(row(d["b2"]), ((0, 0), (0, HEAD_PAD - od))))
    packed["w1"] = jnp.stack(w1s).astype(jnp.bfloat16)   # (4, 1024, 512) bf16 weight stream
    packed["b1"] = jnp.stack(b1s)                        # (4, 1, 512) f32
    packed["w2"] = jnp.stack(w2s)                        # (4, 512, 128) f32
    packed["b2"] = jnp.stack(b2s)                        # (4, 1, 128) f32
    return packed


# ----------------------------- main -----------------------------------------
if __name__ == "__main__":
    key = jax.random.PRNGKey(0)
    pkey, xkey = jax.random.split(key)
    params = init_params(pkey, CFG)
    packed = pack_params(params, CFG)

    B = 2
    state = jax.random.normal(
        xkey, (B, CFG["channels"], CFG["image_size"], CFG["image_size"]), jnp.float32)

    fwd = jax.jit(lambda prm, st: policy_forward(prm, st, CFG))
    obj, fur, room, action = jax.block_until_ready(fwd(packed, state))

    assert obj.shape == (B, CFG["n_object"])
    assert fur.shape == (B, CFG["n_object"])
    assert room.shape == (B, CFG["n_room"])
    assert action.shape == (B, CFG["n_action"])
    print("KERNEL_OK")
</pallas_src>

<mosaic_0001>
module attributes {stable_mosaic.version = 11 : i64} {
  func.func @_encoder_kernel(%arg0: i32, %arg1: memref<1x25x48xf32, #tpu.memory_space<vmem>>, %arg2: memref<25x32xf32, #tpu.memory_space<vmem>>, %arg3: memref<1x48xf32, #tpu.memory_space<vmem>>, %arg4: memref<1x48xf32, #tpu.memory_space<vmem>>, %arg5: memref<48x32xf32, #tpu.memory_space<vmem>>, %arg6: memref<1x32xf32, #tpu.memory_space<vmem>>, %arg7: memref<1x32xf32, #tpu.memory_space<vmem>>, %arg8: memref<1x32xf32, #tpu.memory_space<vmem>>, %arg9: memref<2x1x32xf32, #tpu.memory_space<vmem>>, %arg10: memref<2x1x32xf32, #tpu.memory_space<vmem>>, %arg11: memref<2x32x384xf32, #tpu.memory_space<vmem>>, %arg12: memref<2x128x32xf32, #tpu.memory_space<vmem>>, %arg13: memref<2x1x32xf32, #tpu.memory_space<vmem>>, %arg14: memref<2x1x32xf32, #tpu.memory_space<vmem>>, %arg15: memref<2x32x64xf32, #tpu.memory_space<vmem>>, %arg16: memref<2x1x64xf32, #tpu.memory_space<vmem>>, %arg17: memref<2x64x32xf32, #tpu.memory_space<vmem>>, %arg18: memref<2x1x32xf32, #tpu.memory_space<vmem>>, %arg19: memref<1x32xf32, #tpu.memory_space<vmem>>, %arg20: memref<1x32xf32, #tpu.memory_space<vmem>>, %arg21: memref<32x1024xf32, #tpu.memory_space<vmem>>, %arg22: memref<1x1024xf32, #tpu.memory_space<vmem>>, %arg23: memref<1x1x1024xf32, #tpu.memory_space<vmem>>) attributes {dimension_semantics = [#tpu.dimension_semantics<parallel>], iteration_bounds = array<i64: 2>, scalar_prefetch = 0 : i64, scratch_operands = 0 : i64, tpu.core_type = #tpu.core_type<tc>, window_params = [{transform_indices = @transform_0, window_bounds = array<i64: 1, 25, 48>}, {pipeline_mode = #tpu.pipeline_mode<synchronous>, transform_indices = @transform_1, window_bounds = array<i64: 25, 32>}, {pipeline_mode = #tpu.pipeline_mode<synchronous>, transform_indices = @transform_2, window_bounds = array<i64: 1, 48>}, {pipeline_mode = #tpu.pipeline_mode<synchronous>, transform_indices = @transform_3, window_bounds = array<i64: 1, 48>}, {pipeline_mode = #tpu.pipeline_mode<synchronous>, transform_indices = @transform_4, window_bounds = array<i64: 48, 32>}, {pipeline_mode = #tpu.pipeline_mode<synchronous>, transform_indices = @transform_5, window_bounds = array<i64: 1, 32>}, {pipeline_mode = #tpu.pipeline_mode<synchronous>, transform_indices = @transform_6, window_bounds = array<i64: 1, 32>}, {pipeline_mode = #tpu.pipeline_mode<synchronous>, transform_indices = @transform_7, window_bounds = array<i64: 1, 32>}, {pipeline_mode = #tpu.pipeline_mode<synchronous>, transform_indices = @transform_8, window_bounds = array<i64: 2, 1, 32>}, {pipeline_mode = #tpu.pipeline_mode<synchronous>, transform_indices = @transform_9, window_bounds = array<i64: 2, 1, 32>}, {pipeline_mode = #tpu.pipeline_mode<synchronous>, transform_indices = @transform_10, window_bounds = array<i64: 2, 32, 384>}, {pipeline_mode = #tpu.pipeline_mode<synchronous>, transform_indices = @transform_11, window_bounds = array<i64: 2, 128, 32>}, {pipeline_mode = #tpu.pipeline_mode<synchronous>, transform_indices = @transform_12, window_bounds = array<i64: 2, 1, 32>}, {pipeline_mode = #tpu.pipeline_mode<synchronous>, transform_indices = @transform_13, window_bounds = array<i64: 2, 1, 32>}, {pipeline_mode = #tpu.pipeline_mode<synchronous>, transform_indices = @transform_14, window_bounds = array<i64: 2, 32, 64>}, {pipeline_mode = #tpu.pipeline_mode<synchronous>, transform_indices = @transform_15, window_bounds = array<i64: 2, 1, 64>}, {pipeline_mode = #tpu.pipeline_mode<synchronous>, transform_indices = @transform_16, window_bounds = array<i64: 2, 64, 32>}, {pipeline_mode = #tpu.pipeline_mode<synchronous>, transform_indices = @transform_17, window_bounds = array<i64: 2, 1, 32>}, {pipeline_mode = #tpu.pipeline_mode<synchronous>, transform_indices = @transform_18, window_bounds = array<i64: 1, 32>}, {pipeline_mode = #tpu.pipeline_mode<synchronous>, transform_indices = @transform_19, window_bounds = array<i64: 1, 32>}, {pipeline_mode = #tpu.pipeline_mode<synchronous>, transform_indices = @transform_20, window_bounds = array<i64: 32, 1024>}, {pipeline_mode = #tpu.pipeline_mode<synchronous>, transform_indices = @transform_21, window_bounds = array<i64: 1, 1024>}, {transform_indices = @transform_22, window_bounds = array<i64: 1, 1, 1024>}]} {
    %c0 = arith.constant 0 : index
    %c0_0 = arith.constant 0 : index
    %c0_1 = arith.constant 0 : index
    %0 = vector.load %arg1[%c0, %c0_0, %c0_1] : memref<1x25x48xf32, #tpu.memory_space<vmem>>, vector<1x25x48xf32>
    %1 = vector.shape_cast %0 : vector<1x25x48xf32> to vector<25x48xf32>
    %c0_2 = arith.constant 0 : index
    %c0_3 = arith.constant 0 : index
    %2 = vector.load %arg3[%c0_2, %c0_3] : memref<1x48xf32, #tpu.memory_space<vmem>>, vector<1x48xf32>
    %c0_4 = arith.constant 0 : index
    %c0_5 = arith.constant 0 : index
    %3 = vector.load %arg4[%c0_4, %c0_5] : memref<1x48xf32, #tpu.memory_space<vmem>>, vector<1x48xf32>
    %cst = arith.constant dense<0.000000e+00> : vector<25xf32>
    %4 = vector.multi_reduction <add>, %1, %cst [1] : vector<25x48xf32> to vector<25xf32>
    %5 = vector.shape_cast %4 : vector<25xf32> to vector<25x1xf32>
    %cst_6 = arith.constant 4.800000e+01 : f32
    %6 = vector.broadcast %cst_6 : f32 to vector<25x1xf32>
    %7 = arith.divf %5, %6 : vector<25x1xf32>
    %8 = vector.broadcast %7 : vector<25x1xf32> to vector<25x48xf32>
    %9 = arith.subf %1, %8 : vector<25x48xf32>
    %10 = arith.mulf %9, %9 : vector<25x48xf32>
    %cst_7 = arith.constant dense<0.000000e+00> : vector<25xf32>
    %11 = vector.multi_reduction <add>, %10, %cst_7 [1] : vector<25x48xf32> to vector<25xf32>
    %12 = vector.shape_cast %11 : vector<25xf32> to vector<25x1xf32>
    %cst_8 = arith.constant 4.800000e+01 : f32
    %13 = vector.broadcast %cst_8 : f32 to vector<25x1xf32>
    %14 = arith.divf %12, %13 : vector<25x1xf32>
    %cst_9 = arith.constant 9.99999974E-6 : f32
    %15 = vector.broadcast %cst_9 : f32 to vector<25x1xf32>
    %16 = arith.addf %14, %15 : vector<25x1xf32>
    %17 = math.rsqrt %16 : vector<25x1xf32>
    %18 = vector.broadcast %17 : vector<25x1xf32> to vector<25x48xf32>
    %19 = arith.mulf %9, %18 : vector<25x48xf32>
    %20 = vector.broadcast %2 : vector<1x48xf32> to vector<25x48xf32>
    %21 = arith.mulf %19, %20 : vector<25x48xf32>
    %22 = vector.broadcast %3 : vector<1x48xf32> to vector<25x48xf32>
    %23 = arith.addf %21, %22 : vector<25x48xf32>
    %c0_10 = arith.constant 0 : index
    %c0_11 = arith.constant 0 : index
    %24 = vector.load %arg5[%c0_10, %c0_11] : memref<48x32xf32, #tpu.memory_space<vmem>>, vector<48x32xf32>
    %cst_12 = arith.constant dense<0.000000e+00> : vector<25x32xf32>
    %25 = tpu.matmul %23, %24, %cst_12 {dimension_numbers = #tpu.dot_dimension_numbers<[1], [0], [0], [1], [0, 0, 1, 1], [], []>} : vector<25x48xf32>, vector<48x32xf32>, vector<25x32xf32> -> vector<25x32xf32>
    %c0_13 = arith.constant 0 : index
    %c0_14 = arith.constant 0 : index
    %26 = vector.load %arg6[%c0_13, %c0_14] : memref<1x32xf32, #tpu.memory_space<vmem>>, vector<1x32xf32>
    %27 = vector.broadcast %26 : vector<1x32xf32> to vector<25x32xf32>
    %28 = arith.addf %25, %27 : vector<25x32xf32>
    %c0_15 = arith.constant 0 : index
    %c0_16 = arith.constant 0 : index
    %29 = vector.load %arg7[%c0_15, %c0_16] : memref<1x32xf32, #tpu.memory_space<vmem>>, vector<1x32xf32>
    %c0_17 = arith.constant 0 : index
    %c0_18 = arith.constant 0 : index
    %30 = vector.load %arg8[%c0_17, %c0_18] : memref<1x32xf32, #tpu.memory_space<vmem>>, vector<1x32xf32>
    %cst_19 = arith.constant dense<0.000000e+00> : vector<25xf32>
    %31 = vector.multi_reduction <add>, %28, %cst_19 [1] : vector<25x32xf32> to vector<25xf32>
    %32 = vector.shape_cast %31 : vector<25xf32> to vector<25x1xf32>
    %cst_20 = arith.constant 3.200000e+01 : f32
    %33 = vector.broadcast %cst_20 : f32 to vector<25x1xf32>
    %34 = arith.divf %32, %33 : vector<25x1xf32>
    %35 = vector.broadcast %34 : vector<25x1xf32> to vector<25x32xf32>
    %36 = arith.subf %28, %35 : vector<25x32xf32>
    %37 = arith.mulf %36, %36 : vector<25x32xf32>
    %cst_21 = arith.constant dense<0.000000e+00> : vector<25xf32>
    %38 = vector.multi_reduction <add>, %37, %cst_21 [1] : vector<25x32xf32> to vector<25xf32>
    %39 = vector.shape_cast %38 : vector<25xf32> to vector<25x1xf32>
    %cst_22 = arith.constant 3.200000e+01 : f32
    %40 = vector.broadcast %cst_22 : f32 to vector<25x1xf32>
    %41 = arith.divf %39, %40 : vector<25x1xf32>
    %cst_23 = arith.constant 9.99999974E-6 : f32
    %42 = vector.broadcast %cst_23 : f32 to vector<25x1xf32>
    %43 = arith.addf %41, %42 : vector<25x1xf32>
    %44 = math.rsqrt %43 : vector<25x1xf32>
    %45 = vector.broadcast %44 : vector<25x1xf32> to vector<25x32xf32>
    %46 = arith.mulf %36, %45 : vector<25x32xf32>
    %47 = vector.broadcast %29 : vector<1x32xf32> to vector<25x32xf32>
    %48 = arith.mulf %46, %47 : vector<25x32xf32>
    %49 = vector.broadcast %30 : vector<1x32xf32> to vector<25x32xf32>
    %50 = arith.addf %48, %49 : vector<25x32xf32>
    %c0_24 = arith.constant 0 : index
    %c0_25 = arith.constant 0 : index
    %51 = vector.load %arg2[%c0_24, %c0_25] : memref<25x32xf32, #tpu.memory_space<vmem>>, vector<25x32xf32>
    %52 = arith.addf %50, %51 : vector<25x32xf32>
    %c0_26 = arith.constant 0 : index
    %c0_27 = arith.constant 0 : index
    %c0_28 = arith.constant 0 : index
    %53 = vector.load %arg9[%c0_26, %c0_27, %c0_28] : memref<2x1x32xf32, #tpu.memory_space<vmem>>, vector<1x1x32xf32>
    %54 = vector.shape_cast %53 : vector<1x1x32xf32> to vector<1x32xf32>
    %c0_29 = arith.constant 0 : index
    %c0_30 = arith.constant 0 : index
    %c0_31 = arith.constant 0 : index
    %55 = vector.load %arg10[%c0_29, %c0_30, %c0_31] : memref<2x1x32xf32, #tpu.memory_space<vmem>>, vector<1x1x32xf32>
    %56 = vector.shape_cast %55 : vector<1x1x32xf32> to vector<1x32xf32>
    %cst_32 = arith.constant dense<0.000000e+00> : vector<25xf32>
    %57 = vector.multi_reduction <add>, %52, %cst_32 [1] : vector<25x32xf32> to vector<25xf32>
    %58 = vector.shape_cast %57 : vector<25xf32> to vector<25x1xf32>
    %cst_33 = arith.constant 3.200000e+01 : f32
    %59 = vector.broadcast %cst_33 : f32 to vector<25x1xf32>
    %60 = arith.divf %58, %59 : vector<25x1xf32>
    %61 = vector.broadcast %60 : vector<25x1xf32> to vector<25x32xf32>
    %62 = arith.subf %52, %61 : vector<25x32xf32>
    %63 = arith.mulf %62, %62 : vector<25x32xf32>
    %cst_34 = arith.constant dense<0.000000e+00> : vector<25xf32>
    %64 = vector.multi_reduction <add>, %63, %cst_34 [1] : vector<25x32xf32> to vector<25xf32>
    %65 = vector.shape_cast %64 : vector<25xf32> to vector<25x1xf32>
    %cst_35 = arith.constant 3.200000e+01 : f32
    %66 = vector.broadcast %cst_35 : f32 to vector<25x1xf32>
    %67 = arith.divf %65, %66 : vector<25x1xf32>
    %cst_36 = arith.constant 9.99999974E-6 : f32
    %68 = vector.broadcast %cst_36 : f32 to vector<25x1xf32>
    %69 = arith.addf %67, %68 : vector<25x1xf32>
    %70 = math.rsqrt %69 : vector<25x1xf32>
    %71 = vector.broadcast %70 : vector<25x1xf32> to vector<25x32xf32>
    %72 = arith.mulf %62, %71 : vector<25x32xf32>
    %73 = vector.broadcast %54 : vector<1x32xf32> to vector<25x32xf32>
    %74 = arith.mulf %72, %73 : vector<25x32xf32>
    %75 = vector.broadcast %56 : vector<1x32xf32> to vector<25x32xf32>
    %76 = arith.addf %74, %75 : vector<25x32xf32>
    %c0_37 = arith.constant 0 : index
    %c0_38 = arith.constant 0 : index
    %c0_39 = arith.constant 0 : index
    %77 = vector.load %arg11[%c0_37, %c0_38, %c0_39] : memref<2x32x384xf32, #tpu.memory_space<vmem>>, vector<1x32x384xf32>
    %78 = vector.shape_cast %77 : vector<1x32x384xf32> to vector<32x384xf32>
    %cst_40 = arith.constant dense<0.000000e+00> : vector<25x384xf32>
    %79 = tpu.matmul %76, %78, %cst_40 {dimension_numbers = #tpu.dot_dimension_numbers<[1], [0], [0], [1], [0, 0, 1, 1], [], []>} : vector<25x32xf32>, vector<32x384xf32>, vector<25x384xf32> -> vector<25x384xf32>
    %80 = vector.extract_strided_slice %79 {offsets = [0, 0], sizes = [25, 64], strides = [1, 1]} : vector<25x384xf32> to vector<25x64xf32>
    %81 = vector.extract_strided_slice %79 {offsets = [0, 128], sizes = [25, 64], strides = [1, 1]} : vector<25x384xf32> to vector<25x64xf32>
    %82 = vector.extract_strided_slice %79 {offsets = [0, 256], sizes = [25, 64], strides = [1, 1]} : vector<25x384xf32> to vector<25x64xf32>
    %83 = tpu.transpose %81, [1, 0] : vector<25x64xf32> -> vector<64x25xf32>
    %cst_41 = arith.constant dense<0.000000e+00> : vector<25x25xf32>
    %84 = tpu.matmul %80, %83, %cst_41 {dimension_numbers = #tpu.dot_dimension_numbers<[1], [0], [0], [1], [0, 0, 1, 1], [], []>} : vector<25x64xf32>, vector<64x25xf32>, vector<25x25xf32> -> vector<25x25xf32>
    %cst_42 = arith.constant 1.250000e-01 : f32
    %85 = vector.broadcast %cst_42 : f32 to vector<25x25xf32>
    %86 = arith.mulf %84, %85 : vector<25x25xf32>
    %cst_43 = arith.constant dense<0xFF800000> : vector<25xf32>
    %87 = vector.multi_reduction <maximumf>, %86, %cst_43 [1] : vector<25x25xf32> to vector<25xf32>
    %88 = vector.shape_cast %87 : vector<25xf32> to vector<25x1xf32>
    %89 = vector.broadcast %88 : vector<25x1xf32> to vector<25x25xf32>
    %90 = arith.subf %86, %89 : vector<25x25xf32>
    %91 = math.exp %90 : vector<25x25xf32>
    %cst_44 = arith.constant dense<0.000000e+00> : vector<25xf32>
    %92 = vector.multi_reduction <add>, %91, %cst_44 [1] : vector<25x25xf32> to vector<25xf32>
    %93 = vector.shape_cast %92 : vector<25xf32> to vector<25x1xf32>
    %94 = vector.broadcast %93 : vector<25x1xf32> to vector<25x25xf32>
    %95 = arith.divf %91, %94 : vector<25x25xf32>
    %cst_45 = arith.constant dense<0.000000e+00> : vector<25x64xf32>
    %96 = tpu.matmul %95, %82, %cst_45 {dimension_numbers = #tpu.dot_dimension_numbers<[1], [0], [0], [1], [0, 0, 1, 1], [], []>} : vector<25x25xf32>, vector<25x64xf32>, vector<25x64xf32> -> vector<25x64xf32>
    %97 = vector.extract_strided_slice %79 {offsets = [0, 64], sizes = [25, 64], strides = [1, 1]} : vector<25x384xf32> to vector<25x64xf32>
    %98 = vector.extract_strided_slice %79 {offsets = [0, 192], sizes = [25, 64], strides = [1, 1]} : vector<25x384xf32> to vector<25x64xf32>
    %99 = vector.extract_strided_slice %79 {offsets = [0, 320], sizes = [25, 64], strides = [1, 1]} : vector<25x384xf32> to vector<25x64xf32>
    %100 = tpu.transpose %98, [1, 0] : vector<25x64xf32> -> vector<64x25xf32>
    %cst_46 = arith.constant dense<0.000000e+00> : vector<25x25xf32>
    %101 = tpu.matmul %97, %100, %cst_46 {dimension_numbers = #tpu.dot_dimension_numbers<[1], [0], [0], [1], [0, 0, 1, 1], [], []>} : vector<25x64xf32>, vector<64x25xf32>, vector<25x25xf32> -> vector<25x25xf32>
    %cst_47 = arith.constant 1.250000e-01 : f32
    %102 = vector.broadcast %cst_47 : f32 to vector<25x25xf32>
    %103 = arith.mulf %101, %102 : vector<25x25xf32>
    %cst_48 = arith.constant dense<0xFF800000> : vector<25xf32>
    %104 = vector.multi_reduction <maximumf>, %103, %cst_48 [1] : vector<25x25xf32> to vector<25xf32>
    %105 = vector.shape_cast %104 : vector<25xf32> to vector<25x1xf32>
    %106 = vector.broadcast %105 : vector<25x1xf32> to vector<25x25xf32>
    %107 = arith.subf %103, %106 : vector<25x25xf32>
    %108 = math.exp %107 : vector<25x25xf32>
    %cst_49 = arith.constant dense<0.000000e+00> : vector<25xf32>
    %109 = vector.multi_reduction <add>, %108, %cst_49 [1] : vector<25x25xf32> to vector<25xf32>
    %110 = vector.shape_cast %109 : vector<25xf32> to vector<25x1xf32>
    %111 = vector.broadcast %110 : vector<25x1xf32> to vector<25x25xf32>
    %112 = arith.divf %108, %111 : vector<25x25xf32>
    %cst_50 = arith.constant dense<0.000000e+00> : vector<25x64xf32>
    %113 = tpu.matmul %112, %99, %cst_50 {dimension_numbers = #tpu.dot_dimension_numbers<[1], [0], [0], [1], [0, 0, 1, 1], [], []>} : vector<25x25xf32>, vector<25x64xf32>, vector<25x64xf32> -> vector<25x64xf32>
    %114 = tpu.concatenate %96, %113 in 1 : vector<25x64xf32>, vector<25x64xf32> -> vector<25x128xf32>
    %c0_51 = arith.constant 0 : index
    %c0_52 = arith.constant 0 : index
    %c0_53 = arith.constant 0 : index
    %115 = vector.load %arg12[%c0_51, %c0_52, %c0_53] : memref<2x128x32xf32, #tpu.memory_space<vmem>>, vector<1x128x32xf32>
    %116 = vector.shape_cast %115 : vector<1x128x32xf32> to vector<128x32xf32>
    %cst_54 = arith.constant dense<0.000000e+00> : vector<25x32xf32>
    %117 = tpu.matmul %114, %116, %cst_54 {dimension_numbers = #tpu.dot_dimension_numbers<[1], [0], [0], [1], [0, 0, 1, 1], [], []>} : vector<25x128xf32>, vector<128x32xf32>, vector<25x32xf32> -> vector<25x32xf32>
    %118 = arith.addf %52, %117 : vector<25x32xf32>
    %c0_55 = arith.constant 0 : index
    %c0_56 = arith.constant 0 : index
    %c0_57 = arith.constant 0 : index
    %119 = vector.load %arg13[%c0_55, %c0_56, %c0_57] : memref<2x1x32xf32, #tpu.memory_space<vmem>>, vector<1x1x32xf32>
    %120 = vector.shape_cast %119 : vector<1x1x32xf32> to vector<1x32xf32>
    %c0_58 = arith.constant 0 : index
    %c0_59 = arith.constant 0 : index
    %c0_60 = arith.constant 0 : index
    %121 = vector.load %arg14[%c0_58, %c0_59, %c0_60] : memref<2x1x32xf32, #tpu.memory_space<vmem>>, vector<1x1x32xf32>
    %122 = vector.shape_cast %121 : vector<1x1x32xf32> to vector<1x32xf32>
    %cst_61 = arith.constant dense<0.000000e+00> : vector<25xf32>
    %123 = vector.multi_reduction <add>, %118, %cst_61 [1] : vector<25x32xf32> to vector<25xf32>
    %124 = vector.shape_cast %123 : vector<25xf32> to vector<25x1xf32>
    %cst_62 = arith.constant 3.200000e+01 : f32
    %125 = vector.broadcast %cst_62 : f32 to vector<25x1xf32>
    %126 = arith.divf %124, %125 : vector<25x1xf32>
    %127 = vector.broadcast %126 : vector<25x1xf32> to vector<25x32xf32>
    %128 = arith.subf %118, %127 : vector<25x32xf32>
    %129 = arith.mulf %128, %128 : vector<25x32xf32>
    %cst_63 = arith.constant dense<0.000000e+00> : vector<25xf32>
    %130 = vector.multi_reduction <add>, %129, %cst_63 [1] : vector<25x32xf32> to vector<25xf32>
    %131 = vector.shape_cast %130 : vector<25xf32> to vector<25x1xf32>
    %cst_64 = arith.constant 3.200000e+01 : f32
    %132 = vector.broadcast %cst_64 : f32 to vector<25x1xf32>
    %133 = arith.divf %131, %132 : vector<25x1xf32>
    %cst_65 = arith.constant 9.99999974E-6 : f32
    %134 = vector.broadcast %cst_65 : f32 to vector<25x1xf32>
    %135 = arith.addf %133, %134 : vector<25x1xf32>
    %136 = math.rsqrt %135 : vector<25x1xf32>
    %137 = vector.broadcast %136 : vector<25x1xf32> to vector<25x32xf32>
    %138 = arith.mulf %128, %137 : vector<25x32xf32>
    %139 = vector.broadcast %120 : vector<1x32xf32> to vector<25x32xf32>
    %140 = arith.mulf %138, %139 : vector<25x32xf32>
    %141 = vector.broadcast %122 : vector<1x32xf32> to vector<25x32xf32>
    %142 = arith.addf %140, %141 : vector<25x32xf32>
    %c0_66 = arith.constant 0 : index
    %c0_67 = arith.constant 0 : index
    %c0_68 = arith.constant 0 : index
    %143 = vector.load %arg15[%c0_66, %c0_67, %c0_68] : memref<2x32x64xf32, #tpu.memory_space<vmem>>, vector<1x32x64xf32>
    %144 = vector.shape_cast %143 : vector<1x32x64xf32> to vector<32x64xf32>
    %cst_69 = arith.constant dense<0.000000e+00> : vector<25x64xf32>
    %145 = tpu.matmul %142, %144, %cst_69 {dimension_numbers = #tpu.dot_dimension_numbers<[1], [0], [0], [1], [0, 0, 1, 1], [], []>} : vector<25x32xf32>, vector<32x64xf32>, vector<25x64xf32> -> vector<25x64xf32>
    %c0_70 = arith.constant 0 : index
    %c0_71 = arith.constant 0 : index
    %c0_72 = arith.constant 0 : index
    %146 = vector.load %arg16[%c0_70, %c0_71, %c0_72] : memref<2x1x64xf32, #tpu.memory_space<vmem>>, vector<1x1x64xf32>
    %147 = vector.shape_cast %146 : vector<1x1x64xf32> to vector<1x64xf32>
    %148 = vector.broadcast %147 : vector<1x64xf32> to vector<25x64xf32>
    %149 = arith.addf %145, %148 : vector<25x64xf32>
    %cst_73 = arith.constant 5.000000e-01 : f32
    %150 = vector.broadcast %cst_73 : f32 to vector<25x64xf32>
    %151 = arith.mulf %150, %149 : vector<25x64xf32>
    %cst_74 = arith.constant 0.707106769 : f32
    %152 = vector.broadcast %cst_74 : f32 to vector<25x64xf32>
    %153 = arith.mulf %149, %152 : vector<25x64xf32>
    %cst_75 = arith.constant 0.000000e+00 : f32
    %154 = vector.broadcast %cst_75 : f32 to vector<25x64xf32>
    %155 = arith.cmpf oge, %153, %154 : vector<25x64xf32>
    %cst_76 = arith.constant 1.000000e+00 : f32
    %cst_77 = arith.constant -1.000000e+00 : f32
    %156 = vector.broadcast %cst_76 : f32 to vector<25x64xf32>
    %157 = vector.broadcast %cst_77 : f32 to vector<25x64xf32>
    %158 = arith.select %155, %156, %157 : vector<25x64xi1>, vector<25x64xf32>
    %159 = math.absf %153 : vector<25x64xf32>
    %cst_78 = arith.constant 0.327591091 : f32
    %160 = vector.broadcast %cst_78 : f32 to vector<25x64xf32>
    %161 = arith.mulf %160, %159 : vector<25x64xf32>
    %cst_79 = arith.constant 1.000000e+00 : f32
    %162 = vector.broadcast %cst_79 : f32 to vector<25x64xf32>
    %163 = arith.addf %162, %161 : vector<25x64xf32>
    %cst_80 = arith.constant 1.000000e+00 : f32
    %164 = vector.broadcast %cst_80 : f32 to vector<25x64xf32>
    %165 = arith.divf %164, %163 : vector<25x64xf32>
    %cst_81 = arith.constant 1.06140542 : f32
    %166 = vector.broadcast %cst_81 : f32 to vector<25x64xf32>
    %167 = arith.mulf %166, %165 : vector<25x64xf32>
    %cst_82 = arith.constant -1.45315206 : f32
    %168 = vector.broadcast %cst_82 : f32 to vector<25x64xf32>
    %169 = arith.addf %167, %168 : vector<25x64xf32>
    %170 = arith.mulf %169, %165 : vector<25x64xf32>
    %cst_83 = arith.constant 1.42141378 : f32
    %171 = vector.broadcast %cst_83 : f32 to vector<25x64xf32>
    %172 = arith.addf %170, %171 : vector<25x64xf32>
    %173 = arith.mulf %172, %165 : vector<25x64xf32>
    %cst_84 = arith.constant -0.284496725 : f32
    %174 = vector.broadcast %cst_84 : f32 to vector<25x64xf32>
    %175 = arith.addf %173, %174 : vector<25x64xf32>
    %176 = arith.mulf %175, %165 : vector<25x64xf32>
    %cst_85 = arith.constant 0.254829586 : f32
    %177 = vector.broadcast %cst_85 : f32 to vector<25x64xf32>
    %178 = arith.addf %176, %177 : vector<25x64xf32>
    %179 = arith.mulf %178, %165 : vector<25x64xf32>
    %cst_86 = arith.constant 0.000000e+00 : f32
    %180 = vector.broadcast %cst_86 : f32 to vector<25x64xf32>
    %181 = arith.subf %180, %159 : vector<25x64xf32>
    %182 = arith.mulf %181, %159 : vector<25x64xf32>
    %183 = math.exp %182 : vector<25x64xf32>
    %184 = arith.mulf %179, %183 : vector<25x64xf32>
    %cst_87 = arith.constant 1.000000e+00 : f32
    %185 = vector.broadcast %cst_87 : f32 to vector<25x64xf32>
    %186 = arith.subf %185, %184 : vector<25x64xf32>
    %187 = arith.mulf %158, %186 : vector<25x64xf32>
    %cst_88 = arith.constant 1.000000e+00 : f32
    %188 = vector.broadcast %cst_88 : f32 to vector<25x64xf32>
    %189 = arith.addf %188, %187 : vector<25x64xf32>
    %190 = arith.mulf %151, %189 : vector<25x64xf32>
    %c0_89 = arith.constant 0 : index
    %c0_90 = arith.constant 0 : index
    %c0_91 = arith.constant 0 : index
    %191 = vector.load %arg17[%c0_89, %c0_90, %c0_91] : memref<2x64x32xf32, #tpu.memory_space<vmem>>, vector<1x64x32xf32>
    %192 = vector.shape_cast %191 : vector<1x64x32xf32> to vector<64x32xf32>
    %cst_92 = arith.constant dense<0.000000e+00> : vector<25x32xf32>
    %193 = tpu.matmul %190, %192, %cst_92 {dimension_numbers = #tpu.dot_dimension_numbers<[1], [0], [0], [1], [0, 0, 1, 1], [], []>} : vector<25x64xf32>, vector<64x32xf32>, vector<25x32xf32> -> vector<25x32xf32>
    %c0_93 = arith.constant 0 : index
    %c0_94 = arith.constant 0 : index
    %c0_95 = arith.constant 0 : index
    %194 = vector.load %arg18[%c0_93, %c0_94, %c0_95] : memref<2x1x32xf32, #tpu.memory_space<vmem>>, vector<1x1x32xf32>
    %195 = vector.shape_cast %194 : vector<1x1x32xf32> to vector<1x32xf32>
    %196 = vector.broadcast %195 : vector<1x32xf32> to vector<25x32xf32>
    %197 = arith.addf %193, %196 : vector<25x32xf32>
    %198 = arith.addf %118, %197 : vector<25x32xf32>
    %c1 = arith.constant 1 : index
    %c0_96 = arith.constant 0 : index
    %c0_97 = arith.constant 0 : index
    %199 = vector.load %arg9[%c1, %c0_96, %c0_97] : memref<2x1x32xf32, #tpu.memory_space<vmem>>, vector<1x1x32xf32>
    %200 = vector.shape_cast %199 : vector<1x1x32xf32> to vector<1x32xf32>
    %c1_98 = arith.constant 1 : index
    %c0_99 = arith.constant 0 : index
    %c0_100 = arith.constant 0 : index
    %201 = vector.load %arg10[%c1_98, %c0_99, %c0_100] : memref<2x1x32xf32, #tpu.memory_space<vmem>>, vector<1x1x32xf32>
    %202 = vector.shape_cast %201 : vector<1x1x32xf32> to vector<1x32xf32>
    %cst_101 = arith.constant dense<0.000000e+00> : vector<25xf32>
    %203 = vector.multi_reduction <add>, %198, %cst_101 [1] : vector<25x32xf32> to vector<25xf32>
    %204 = vector.shape_cast %203 : vector<25xf32> to vector<25x1xf32>
    %cst_102 = arith.constant 3.200000e+01 : f32
    %205 = vector.broadcast %cst_102 : f32 to vector<25x1xf32>
    %206 = arith.divf %204, %205 : vector<25x1xf32>
    %207 = vector.broadcast %206 : vector<25x1xf32> to vector<25x32xf32>
    %208 = arith.subf %198, %207 : vector<25x32xf32>
    %209 = arith.mulf %208, %208 : vector<25x32xf32>
    %cst_103 = arith.constant dense<0.000000e+00> : vector<25xf32>
    %210 = vector.multi_reduction <add>, %209, %cst_103 [1] : vector<25x32xf32> to vector<25xf32>
    %211 = vector.shape_cast %210 : vector<25xf32> to vector<25x1xf32>
    %cst_104 = arith.constant 3.200000e+01 : f32
    %212 = vector.broadcast %cst_104 : f32 to vector<25x1xf32>
    %213 = arith.divf %211, %212 : vector<25x1xf32>
    %cst_105 = arith.constant 9.99999974E-6 : f32
    %214 = vector.broadcast %cst_105 : f32 to vector<25x1xf32>
    %215 = arith.addf %213, %214 : vector<25x1xf32>
    %216 = math.rsqrt %215 : vector<25x1xf32>
    %217 = vector.broadcast %216 : vector<25x1xf32> to vector<25x32xf32>
    %218 = arith.mulf %208, %217 : vector<25x32xf32>
    %219 = vector.broadcast %200 : vector<1x32xf32> to vector<25x32xf32>
    %220 = arith.mulf %218, %219 : vector<25x32xf32>
    %221 = vector.broadcast %202 : vector<1x32xf32> to vector<25x32xf32>
    %222 = arith.addf %220, %221 : vector<25x32xf32>
    %c1_106 = arith.constant 1 : index
    %c0_107 = arith.constant 0 : index
    %c0_108 = arith.constant 0 : index
    %223 = vector.load %arg11[%c1_106, %c0_107, %c0_108] : memref<2x32x384xf32, #tpu.memory_space<vmem>>, vector<1x32x384xf32>
    %224 = vector.shape_cast %223 : vector<1x32x384xf32> to vector<32x384xf32>
    %cst_109 = arith.constant dense<0.000000e+00> : vector<25x384xf32>
    %225 = tpu.matmul %222, %224, %cst_109 {dimension_numbers = #tpu.dot_dimension_numbers<[1], [0], [0], [1], [0, 0, 1, 1], [], []>} : vector<25x32xf32>, vector<32x384xf32>, vector<25x384xf32> -> vector<25x384xf32>
    %226 = vector.extract_strided_slice %225 {offsets = [0, 0], sizes = [25, 64], strides = [1, 1]} : vector<25x384xf32> to vector<25x64xf32>
    %227 = vector.extract_strided_slice %225 {offsets = [0, 128], sizes = [25, 64], strides = [1, 1]} : vector<25x384xf32> to vector<25x64xf32>
    %228 = vector.extract_strided_slice %225 {offsets = [0, 256], sizes = [25, 64], strides = [1, 1]} : vector<25x384xf32> to vector<25x64xf32>
    %229 = tpu.transpose %227, [1, 0] : vector<25x64xf32> -> vector<64x25xf32>
    %cst_110 = arith.constant dense<0.000000e+00> : vector<25x25xf32>
    %230 = tpu.matmul %226, %229, %cst_110 {dimension_numbers = #tpu.dot_dimension_numbers<[1], [0], [0], [1], [0, 0, 1, 1], [], []>} : vector<25x64xf32>, vector<64x25xf32>, vector<25x25xf32> -> vector<25x25xf32>
    %cst_111 = arith.constant 1.250000e-01 : f32
    %231 = vector.broadcast %cst_111 : f32 to vector<25x25xf32>
    %232 = arith.mulf %230, %231 : vector<25x25xf32>
    %cst_112 = arith.constant dense<0xFF800000> : vector<25xf32>
    %233 = vector.multi_reduction <maximumf>, %232, %cst_112 [1] : vector<25x25xf32> to vector<25xf32>
    %234 = vector.shape_cast %233 : vector<25xf32> to vector<25x1xf32>
    %235 = vector.broadcast %234 : vector<25x1xf32> to vector<25x25xf32>
    %236 = arith.subf %232, %235 : vector<25x25xf32>
    %237 = math.exp %236 : vector<25x25xf32>
    %cst_113 = arith.constant dense<0.000000e+00> : vector<25xf32>
    %238 = vector.multi_reduction <add>, %237, %cst_113 [1] : vector<25x25xf32> to vector<25xf32>
    %239 = vector.shape_cast %238 : vector<25xf32> to vector<25x1xf32>
    %240 = vector.broadcast %239 : vector<25x1xf32> to vector<25x25xf32>
    %241 = arith.divf %237, %240 : vector<25x25xf32>
    %cst_114 = arith.constant dense<0.000000e+00> : vector<25x64xf32>
    %242 = tpu.matmul %241, %228, %cst_114 {dimension_numbers = #tpu.dot_dimension_numbers<[1], [0], [0], [1], [0, 0, 1, 1], [], []>} : vector<25x25xf32>, vector<25x64xf32>, vector<25x64xf32> -> vector<25x64xf32>
    %243 = vector.extract_strided_slice %225 {offsets = [0, 64], sizes = [25, 64], strides = [1, 1]} : vector<25x384xf32> to vector<25x64xf32>
    %244 = vector.extract_strided_slice %225 {offsets = [0, 192], sizes = [25, 64], strides = [1, 1]} : vector<25x384xf32> to vector<25x64xf32>
    %245 = vector.extract_strided_slice %225 {offsets = [0, 320], sizes = [25, 64], strides = [1, 1]} : vector<25x384xf32> to vector<25x64xf32>
    %246 = tpu.transpose %244, [1, 0] : vector<25x64xf32> -> vector<64x25xf32>
    %cst_115 = arith.constant dense<0.000000e+00> : vector<25x25xf32>
    %247 = tpu.matmul %243, %246, %cst_115 {dimension_numbers = #tpu.dot_dimension_numbers<[1], [0], [0], [1], [0, 0, 1, 1], [], []>} : vector<25x64xf32>, vector<64x25xf32>, vector<25x25xf32> -> vector<25x25xf32>
    %cst_116 = arith.constant 1.250000e-01 : f32
    %248 = vector.broadcast %cst_116 : f32 to vector<25x25xf32>
    %249 = arith.mulf %247, %248 : vector<25x25xf32>
    %cst_117 = arith.constant dense<0xFF800000> : vector<25xf32>
    %250 = vector.multi_reduction <maximumf>, %249, %cst_117 [1] : vector<25x25xf32> to vector<25xf32>
    %251 = vector.shape_cast %250 : vector<25xf32> to vector<25x1xf32>
    %252 = vector.broadcast %251 : vector<25x1xf32> to vector<25x25xf32>
    %253 = arith.subf %249, %252 : vector<25x25xf32>
    %254 = math.exp %253 : vector<25x25xf32>
    %cst_118 = arith.constant dense<0.000000e+00> : vector<25xf32>
    %255 = vector.multi_reduction <add>, %254, %cst_118 [1] : vector<25x25xf32> to vector<25xf32>
    %256 = vector.shape_cast %255 : vector<25xf32> to vector<25x1xf32>
    %257 = vector.broadcast %256 : vector<25x1xf32> to vector<25x25xf32>
    %258 = arith.divf %254, %257 : vector<25x25xf32>
    %cst_119 = arith.constant dense<0.000000e+00> : vector<25x64xf32>
    %259 = tpu.matmul %258, %245, %cst_119 {dimension_numbers = #tpu.dot_dimension_numbers<[1], [0], [0], [1], [0, 0, 1, 1], [], []>} : vector<25x25xf32>, vector<25x64xf32>, vector<25x64xf32> -> vector<25x64xf32>
    %260 = tpu.concatenate %242, %259 in 1 : vector<25x64xf32>, vector<25x64xf32> -> vector<25x128xf32>
    %c1_120 = arith.constant 1 : index
    %c0_121 = arith.constant 0 : index
    %c0_122 = arith.constant 0 : index
    %261 = vector.load %arg12[%c1_120, %c0_121, %c0_122] : memref<2x128x32xf32, #tpu.memory_space<vmem>>, vector<1x128x32xf32>
    %262 = vector.shape_cast %261 : vector<1x128x32xf32> to vector<128x32xf32>
    %cst_123 = arith.constant dense<0.000000e+00> : vector<25x32xf32>
    %263 = tpu.matmul %260, %262, %cst_123 {dimension_numbers = #tpu.dot_dimension_numbers<[1], [0], [0], [1], [0, 0, 1, 1], [], []>} : vector<25x128xf32>, vector<128x32xf32>, vector<25x32xf32> -> vector<25x32xf32>
    %264 = arith.addf %198, %263 : vector<25x32xf32>
    %c1_124 = arith.constant 1 : index
    %c0_125 = arith.constant 0 : index
    %c0_126 = arith.constant 0 : index
    %265 = vector.load %arg13[%c1_124, %c0_125, %c0_126] : memref<2x1x32xf32, #tpu.memory_space<vmem>>, vector<1x1x32xf32>
    %266 = vector.shape_cast %265 : vector<1x1x32xf32> to vector<1x32xf32>
    %c1_127 = arith.constant 1 : index
    %c0_128 = arith.constant 0 : index
    %c0_129 = arith.constant 0 : index
    %267 = vector.load %arg14[%c1_127, %c0_128, %c0_129] : memref<2x1x32xf32, #tpu.memory_space<vmem>>, vector<1x1x32xf32>
    %268 = vector.shape_cast %267 : vector<1x1x32xf32> to vector<1x32xf32>
    %cst_130 = arith.constant dense<0.000000e+00> : vector<25xf32>
    %269 = vector.multi_reduction <add>, %264, %cst_130 [1] : vector<25x32xf32> to vector<25xf32>
    %270 = vector.shape_cast %269 : vector<25xf32> to vector<25x1xf32>
    %cst_131 = arith.constant 3.200000e+01 : f32
    %271 = vector.broadcast %cst_131 : f32 to vector<25x1xf32>
    %272 = arith.divf %270, %271 : vector<25x1xf32>
    %273 = vector.broadcast %272 : vector<25x1xf32> to vector<25x32xf32>
    %274 = arith.subf %264, %273 : vector<25x32xf32>
    %275 = arith.mulf %274, %274 : vector<25x32xf32>
    %cst_132 = arith.constant dense<0.000000e+00> : vector<25xf32>
    %276 = vector.multi_reduction <add>, %275, %cst_132 [1] : vector<25x32xf32> to vector<25xf32>
    %277 = vector.shape_cast %276 : vector<25xf32> to vector<25x1xf32>
    %cst_133 = arith.constant 3.200000e+01 : f32
    %278 = vector.broadcast %cst_133 : f32 to vector<25x1xf32>
    %279 = arith.divf %277, %278 : vector<25x1xf32>
    %cst_134 = arith.constant 9.99999974E-6 : f32
    %280 = vector.broadcast %cst_134 : f32 to vector<25x1xf32>
    %281 = arith.addf %279, %280 : vector<25x1xf32>
    %282 = math.rsqrt %281 : vector<25x1xf32>
    %283 = vector.broadcast %282 : vector<25x1xf32> to vector<25x32xf32>
    %284 = arith.mulf %274, %283 : vector<25x32xf32>
    %285 = vector.broadcast %266 : vector<1x32xf32> to vector<25x32xf32>
    %286 = arith.mulf %284, %285 : vector<25x32xf32>
    %287 = vector.broadcast %268 : vector<1x32xf32> to vector<25x32xf32>
    %288 = arith.addf %286, %287 : vector<25x32xf32>
    %c1_135 = arith.constant 1 : index
    %c0_136 = arith.constant 0 : index
    %c0_137 = arith.constant 0 : index
    %289 = vector.load %arg15[%c1_135, %c0_136, %c0_137] : memref<2x32x64xf32, #tpu.memory_space<vmem>>, vector<1x32x64xf32>
    %290 = vector.shape_cast %289 : vector<1x32x64xf32> to vector<32x64xf32>
    %cst_138 = arith.constant dense<0.000000e+00> : vector<25x64xf32>
    %291 = tpu.matmul %288, %290, %cst_138 {dimension_numbers = #tpu.dot_dimension_numbers<[1], [0], [0], [1], [0, 0, 1, 1], [], []>} : vector<25x32xf32>, vector<32x64xf32>, vector<25x64xf32> -> vector<25x64xf32>
    %c1_139 = arith.constant 1 : index
    %c0_140 = arith.constant 0 : index
    %c0_141 = arith.constant 0 : index
    %292 = vector.load %arg16[%c1_139, %c0_140, %c0_141] : memref<2x1x64xf32, #tpu.memory_space<vmem>>, vector<1x1x64xf32>
    %293 = vector.shape_cast %292 : vector<1x1x64xf32> to vector<1x64xf32>
    %294 = vector.broadcast %293 : vector<1x64xf32> to vector<25x64xf32>
    %295 = arith.addf %291, %294 : vector<25x64xf32>
    %cst_142 = arith.constant 5.000000e-01 : f32
    %296 = vector.broadcast %cst_142 : f32 to vector<25x64xf32>
    %297 = arith.mulf %296, %295 : vector<25x64xf32>
    %cst_143 = arith.constant 0.707106769 : f32
    %298 = vector.broadcast %cst_143 : f32 to vector<25x64xf32>
    %299 = arith.mulf %295, %298 : vector<25x64xf32>
    %cst_144 = arith.constant 0.000000e+00 : f32
    %300 = vector.broadcast %cst_144 : f32 to vector<25x64xf32>
    %301 = arith.cmpf oge, %299, %300 : vector<25x64xf32>
    %cst_145 = arith.constant 1.000000e+00 : f32
    %cst_146 = arith.constant -1.000000e+00 : f32
    %302 = vector.broadcast %cst_145 : f32 to vector<25x64xf32>
    %303 = vector.broadcast %cst_146 : f32 to vector<25x64xf32>
    %304 = arith.select %301, %302, %303 : vector<25x64xi1>, vector<25x64xf32>
    %305 = math.absf %299 : vector<25x64xf32>
    %cst_147 = arith.constant 0.327591091 : f32
    %306 = vector.broadcast %cst_147 : f32 to vector<25x64xf32>
    %307 = arith.mulf %306, %305 : vector<25x64xf32>
    %cst_148 = arith.constant 1.000000e+00 : f32
    %308 = vector.broadcast %cst_148 : f32 to vector<25x64xf32>
    %309 = arith.addf %308, %307 : vector<25x64xf32>
    %cst_149 = arith.constant 1.000000e+00 : f32
    %310 = vector.broadcast %cst_149 : f32 to vector<25x64xf32>
    %311 = arith.divf %310, %309 : vector<25x64xf32>
    %cst_150 = arith.constant 1.06140542 : f32
    %312 = vector.broadcast %cst_150 : f32 to vector<25x64xf32>
    %313 = arith.mulf %312, %311 : vector<25x64xf32>
    %cst_151 = arith.constant -1.45315206 : f32
    %314 = vector.broadcast %cst_151 : f32 to vector<25x64xf32>
    %315 = arith.addf %313, %314 : vector<25x64xf32>
    %316 = arith.mulf %315, %311 : vector<25x64xf32>
    %cst_152 = arith.constant 1.42141378 : f32
    %317 = vector.broadcast %cst_152 : f32 to vector<25x64xf32>
    %318 = arith.addf %316, %317 : vector<25x64xf32>
    %319 = arith.mulf %318, %311 : vector<25x64xf32>
    %cst_153 = arith.constant -0.284496725 : f32
    %320 = vector.broadcast %cst_153 : f32 to vector<25x64xf32>
    %321 = arith.addf %319, %320 : vector<25x64xf32>
    %322 = arith.mulf %321, %311 : vector<25x64xf32>
    %cst_154 = arith.constant 0.254829586 : f32
    %323 = vector.broadcast %cst_154 : f32 to vector<25x64xf32>
    %324 = arith.addf %322, %323 : vector<25x64xf32>
    %325 = arith.mulf %324, %311 : vector<25x64xf32>
    %cst_155 = arith.constant 0.000000e+00 : f32
    %326 = vector.broadcast %cst_155 : f32 to vector<25x64xf32>
    %327 = arith.subf %326, %305 : vector<25x64xf32>
    %328 = arith.mulf %327, %305 : vector<25x64xf32>
    %329 = math.exp %328 : vector<25x64xf32>
    %330 = arith.mulf %325, %329 : vector<25x64xf32>
    %cst_156 = arith.constant 1.000000e+00 : f32
    %331 = vector.broadcast %cst_156 : f32 to vector<25x64xf32>
    %332 = arith.subf %331, %330 : vector<25x64xf32>
    %333 = arith.mulf %304, %332 : vector<25x64xf32>
    %cst_157 = arith.constant 1.000000e+00 : f32
    %334 = vector.broadcast %cst_157 : f32 to vector<25x64xf32>
    %335 = arith.addf %334, %333 : vector<25x64xf32>
    %336 = arith.mulf %297, %335 : vector<25x64xf32>
    %c1_158 = arith.constant 1 : index
    %c0_159 = arith.constant 0 : index
    %c0_160 = arith.constant 0 : index
    %337 = vector.load %arg17[%c1_158, %c0_159, %c0_160] : memref<2x64x32xf32, #tpu.memory_space<vmem>>, vector<1x64x32xf32>
    %338 = vector.shape_cast %337 : vector<1x64x32xf32> to vector<64x32xf32>
    %cst_161 = arith.constant dense<0.000000e+00> : vector<25x32xf32>
    %339 = tpu.matmul %336, %338, %cst_161 {dimension_numbers = #tpu.dot_dimension_numbers<[1], [0], [0], [1], [0, 0, 1, 1], [], []>} : vector<25x64xf32>, vector<64x32xf32>, vector<25x32xf32> -> vector<25x32xf32>
    %c1_162 = arith.constant 1 : index
    %c0_163 = arith.constant 0 : index
    %c0_164 = arith.constant 0 : index
    %340 = vector.load %arg18[%c1_162, %c0_163, %c0_164] : memref<2x1x32xf32, #tpu.memory_space<vmem>>, vector<1x1x32xf32>
    %341 = vector.shape_cast %340 : vector<1x1x32xf32> to vector<1x32xf32>
    %342 = vector.broadcast %341 : vector<1x32xf32> to vector<25x32xf32>
    %343 = arith.addf %339, %342 : vector<25x32xf32>
    %344 = arith.addf %264, %343 : vector<25x32xf32>
    %c0_165 = arith.constant 0 : index
    %c0_166 = arith.constant 0 : index
    %345 = vector.load %arg19[%c0_165, %c0_166] : memref<1x32xf32, #tpu.memory_space<vmem>>, vector<1x32xf32>
    %c0_167 = arith.constant 0 : index
    %c0_168 = arith.constant 0 : index
    %346 = vector.load %arg20[%c0_167, %c0_168] : memref<1x32xf32, #tpu.memory_space<vmem>>, vector<1x32xf32>
    %cst_169 = arith.constant dense<0.000000e+00> : vector<25xf32>
    %347 = vector.multi_reduction <add>, %344, %cst_169 [1] : vector<25x32xf32> to vector<25xf32>
    %348 = vector.shape_cast %347 : vector<25xf32> to vector<25x1xf32>
    %cst_170 = arith.constant 3.200000e+01 : f32
    %349 = vector.broadcast %cst_170 : f32 to vector<25x1xf32>
    %350 = arith.divf %348, %349 : vector<25x1xf32>
    %351 = vector.broadcast %350 : vector<25x1xf32> to vector<25x32xf32>
    %352 = arith.subf %344, %351 : vector<25x32xf32>
    %353 = arith.mulf %352, %352 : vector<25x32xf32>
    %cst_171 = arith.constant dense<0.000000e+00> : vector<25xf32>
    %354 = vector.multi_reduction <add>, %353, %cst_171 [1] : vector<25x32xf32> to vector<25xf32>
    %355 = vector.shape_cast %354 : vector<25xf32> to vector<25x1xf32>
    %cst_172 = arith.constant 3.200000e+01 : f32
    %356 = vector.broadcast %cst_172 : f32 to vector<25x1xf32>
    %357 = arith.divf %355, %356 : vector<25x1xf32>
    %cst_173 = arith.constant 9.99999974E-6 : f32
    %358 = vector.broadcast %cst_173 : f32 to vector<25x1xf32>
    %359 = arith.addf %357, %358 : vector<25x1xf32>
    %360 = math.rsqrt %359 : vector<25x1xf32>
    %361 = vector.broadcast %360 : vector<25x1xf32> to vector<25x32xf32>
    %362 = arith.mulf %352, %361 : vector<25x32xf32>
    %363 = vector.broadcast %345 : vector<1x32xf32> to vector<25x32xf32>
    %364 = arith.mulf %362, %363 : vector<25x32xf32>
    %365 = vector.broadcast %346 : vector<1x32xf32> to vector<25x32xf32>
    %366 = arith.addf %364, %365 : vector<25x32xf32>
    %cst_174 = arith.constant dense<0.000000e+00> : vector<32xf32>
    %367 = vector.multi_reduction <add>, %366, %cst_174 [0] : vector<25x32xf32> to vector<32xf32>
    %368 = vector.shape_cast %367 : vector<32xf32> to vector<1x32xf32>
    %cst_175 = arith.constant 2.500000e+01 : f32
    %369 = vector.broadcast %cst_175 : f32 to vector<1x32xf32>
    %370 = arith.divf %368, %369 : vector<1x32xf32>
    %c0_176 = arith.constant 0 : index
    %c0_177 = arith.constant 0 : index
    %371 = vector.load %arg21[%c0_176, %c0_177] : memref<32x1024xf32, #tpu.memory_space<vmem>>, vector<32x1024xf32>
    %cst_178 = arith.constant dense<0.000000e+00> : vector<1x1024xf32>
    %372 = tpu.matmul %370, %371, %cst_178 {dimension_numbers = #tpu.dot_dimension_numbers<[1], [0], [0], [1], [0, 0, 1, 1], [], []>} : vector<1x32xf32>, vector<32x1024xf32>, vector<1x1024xf32> -> vector<1x1024xf32>
    %c0_179 = arith.constant 0 : index
    %c0_180 = arith.constant 0 : index
    %373 = vector.load %arg22[%c0_179, %c0_180] : memref<1x1024xf32, #tpu.memory_space<vmem>>, vector<1x1024xf32>
    %374 = arith.addf %372, %373 : vector<1x1024xf32>
    %c0_181 = arith.constant 0 : index
    %c0_182 = arith.constant 0 : index
    %c0_183 = arith.constant 0 : index
    %375 = vector.load %arg23[%c0_181, %c0_182, %c0_183] : memref<1x1x1024xf32, #tpu.memory_space<vmem>>, vector<1x1x1024xf32>
    %376 = vector.shape_cast %375 : vector<1x1x1024xf32> to vector<1x1024xf32>
    %377 = vector.shape_cast %374 : vector<1x1024xf32> to vector<1x1x1024xf32>
    tpu.vector_store %arg23[%c0_181, %c0_182, %c0_183], %377 {strides = array<i32>} : memref<1x1x1024xf32, #tpu.memory_space<vmem>>, vector<1x1x1024xf32>,
    return
  }
  func.func @transform_0(%arg0: i32) -> (i32, i32, i32) {
    %c0_i32 = arith.constant 0 : i32
    %c0_i32_0 = arith.constant 0 : i32
    %c0_i32_1 = arith.constant 0 : i32
    return %arg0, %c0_i32, %c0_i32_0 : i32, i32, i32
  }
  func.func @transform_1(%arg0: i32) -> (i32, i32) {
    %c0_i32 = arith.constant 0 : i32
    %c0_i32_0 = arith.constant 0 : i32
    %c0_i32_1 = arith.constant 0 : i32
    return %c0_i32, %c0_i32_0 : i32, i32
  }
  func.func @transform_2(%arg0: i32) -> (i32, i32) {
    %c0_i32 = arith.constant 0 : i32
    %c0_i32_0 = arith.constant 0 : i32
    %c0_i32_1 = arith.constant 0 : i32
    return %c0_i32, %c0_i32_0 : i32, i32
  }
  func.func @transform_3(%arg0: i32) -> (i32, i32) {
    %c0_i32 = arith.constant 0 : i32
    %c0_i32_0 = arith.constant 0 : i32
    %c0_i32_1 = arith.constant 0 : i32
    return %c0_i32, %c0_i32_0 : i32, i32
  }
  func.func @transform_4(%arg0: i32) -> (i32, i32) {
    %c0_i32 = arith.constant 0 : i32
    %c0_i32_0 = arith.constant 0 : i32
    %c0_i32_1 = arith.constant 0 : i32
    return %c0_i32, %c0_i32_0 : i32, i32
  }
  func.func @transform_5(%arg0: i32) -> (i32, i32) {
    %c0_i32 = arith.constant 0 : i32
    %c0_i32_0 = arith.constant 0 : i32
    %c0_i32_1 = arith.constant 0 : i32
    return %c0_i32, %c0_i32_0 : i32, i32
  }
  func.func @transform_6(%arg0: i32) -> (i32, i32) {
    %c0_i32 = arith.constant 0 : i32
    %c0_i32_0 = arith.constant 0 : i32
    %c0_i32_1 = arith.constant 0 : i32
    return %c0_i32, %c0_i32_0 : i32, i32
  }
  func.func @transform_7(%arg0: i32) -> (i32, i32) {
    %c0_i32 = arith.constant 0 : i32
    %c0_i32_0 = arith.constant 0 : i32
    %c0_i32_1 = arith.constant 0 : i32
    return %c0_i32, %c0_i32_0 : i32, i32
  }
  func.func @transform_8(%arg0: i32) -> (i32, i32, i32) {
    %c0_i32 = arith.constant 0 : i32
    %c0_i32_0 = arith.constant 0 : i32
    %c0_i32_1 = arith.constant 0 : i32
    %c0_i32_2 = arith.constant 0 : i32
    return %c0_i32, %c0_i32_0, %c0_i32_1 : i32, i32, i32
  }
  func.func @transform_9(%arg0: i32) -> (i32, i32, i32) {
    %c0_i32 = arith.constant 0 : i32
    %c0_i32_0 = arith.constant 0 : i32
    %c0_i32_1 = arith.constant 0 : i32
    %c0_i32_2 = arith.constant 0 : i32
    return %c0_i32, %c0_i32_0, %c0_i32_1 : i32, i32, i32
  }
  func.func @transform_10(%arg0: i32) -> (i32, i32, i32) {
    %c0_i32 = arith.constant 0 : i32
    %c0_i32_0 = arith.constant 0 : i32
    %c0_i32_1 = arith.constant 0 : i32
    %c0_i32_2 = arith.constant 0 : i32
    return %c0_i32, %c0_i32_0, %c0_i32_1 : i32, i32, i32
  }
  func.func @transform_11(%arg0: i32) -> (i32, i32, i32) {
    %c0_i32 = arith.constant 0 : i32
    %c0_i32_0 = arith.constant 0 : i32
    %c0_i32_1 = arith.constant 0 : i32
    %c0_i32_2 = arith.constant 0 : i32
    return %c0_i32, %c0_i32_0, %c0_i32_1 : i32, i32, i32
  }
  func.func @transform_12(%arg0: i32) -> (i32, i32, i32) {
    %c0_i32 = arith.constant 0 : i32
    %c0_i32_0 = arith.constant 0 : i32
    %c0_i32_1 = arith.constant 0 : i32
    %c0_i32_2 = arith.constant 0 : i32
    return %c0_i32, %c0_i32_0, %c0_i32_1 : i32, i32, i32
  }
  func.func @transform_13(%arg0: i32) -> (i32, i32, i32) {
    %c0_i32 = arith.constant 0 : i32
    %c0_i32_0 = arith.constant 0 : i32
    %c0_i32_1 = arith.constant 0 : i32
    %c0_i32_2 = arith.constant 0 : i32
    return %c0_i32, %c0_i32_0, %c0_i32_1 : i32, i32, i32
  }
  func.func @transform_14(%arg0: i32) -> (i32, i32, i32) {
    %c0_i32 = arith.constant 0 : i32
    %c0_i32_0 = arith.constant 0 : i32
    %c0_i32_1 = arith.constant 0 : i32
    %c0_i32_2 = arith.constant 0 : i32
    return %c0_i32, %c0_i32_0, %c0_i32_1 : i32, i32, i32
  }
  func.func @transform_15(%arg0: i32) -> (i32, i32, i32) {
    %c0_i32 = arith.constant 0 : i32
    %c0_i32_0 = arith.constant 0 : i32
    %c0_i32_1 = arith.constant 0 : i32
    %c0_i32_2 = arith.constant 0 : i32
    return %c0_i32, %c0_i32_0, %c0_i32_1 : i32, i32, i32
  }
  func.func @transform_16(%arg0: i32) -> (i32, i32, i32) {
    %c0_i32 = arith.constant 0 : i32
    %c0_i32_0 = arith.constant 0 : i32
    %c0_i32_1 = arith.constant 0 : i32
    %c0_i32_2 = arith.constant 0 : i32
    return %c0_i32, %c0_i32_0, %c0_i32_1 : i32, i32, i32
  }
  func.func @transform_17(%arg0: i32) -> (i32, i32, i32) {
    %c0_i32 = arith.constant 0 : i32
    %c0_i32_0 = arith.constant 0 : i32
    %c0_i32_1 = arith.constant 0 : i32
    %c0_i32_2 = arith.constant 0 : i32
    return %c0_i32, %c0_i32_0, %c0_i32_1 : i32, i32, i32
  }
  func.func @transform_18(%arg0: i32) -> (i32, i32) {
    %c0_i32 = arith.constant 0 : i32
    %c0_i32_0 = arith.constant 0 : i32
    %c0_i32_1 = arith.constant 0 : i32
    return %c0_i32, %c0_i32_0 : i32, i32
  }
  func.func @transform_19(%arg0: i32) -> (i32, i32) {
    %c0_i32 = arith.constant 0 : i32
    %c0_i32_0 = arith.constant 0 : i32
    %c0_i32_1 = arith.constant 0 : i32
    return %c0_i32, %c0_i32_0 : i32, i32
  }
  func.func @transform_20(%arg0: i32) -> (i32, i32) {
    %c0_i32 = arith.constant 0 : i32
    %c0_i32_0 = arith.constant 0 : i32
    %c0_i32_1 = arith.constant 0 : i32
    return %c0_i32, %c0_i32_0 : i32, i32
  }
  func.func @transform_21(%arg0: i32) -> (i32, i32) {
    %c0_i32 = arith.constant 0 : i32
    %c0_i32_0 = arith.constant 0 : i32
    %c0_i32_1 = arith.constant 0 : i32
    return %c0_i32, %c0_i32_0 : i32, i32
  }
  func.func @transform_22(%arg0: i32) -> (i32, i32, i32) {
    %c0_i32 = arith.constant 0 : i32
    %c0_i32_0 = arith.constant 0 : i32
    %c0_i32_1 = arith.constant 0 : i32
    return %arg0, %c0_i32, %c0_i32_0 : i32, i32, i32
  }
}

module attributes {stable_mosaic.version = 11 : i64} {
  func.func @_decoder_kernel(%arg0: i32, %arg1: i32, %arg2: memref<2x256xf32, #tpu.memory_space<vmem>>, %arg3: memref<1x256x512xbf16, #tpu.memory_space<vmem>>, %arg4: memref<1x1x512xf32, #tpu.memory_space<vmem>>, %arg5: memref<1x512x128xf32, #tpu.memory_space<vmem>>, %arg6: memref<1x1x128xf32, #tpu.memory_space<vmem>>, %arg7: memref<1x2x128xf32, #tpu.memory_space<vmem>>, %arg8: memref<2x512xf32, #tpu.memory_space<vmem>>) attributes {dimension_semantics = [#tpu.dimension_semantics<parallel>, #tpu.dimension_semantics<arbitrary>], iteration_bounds = array<i64: 4, 4>, scalar_prefetch = 0 : i64, scratch_operands = 1 : i64, tpu.core_type = #tpu.core_type<tc>, window_params = [{transform_indices = @transform_0, window_bounds = array<i64: 2, 256>}, {transform_indices = @transform_1, window_bounds = array<i64: 1, 256, 512>}, {transform_indices = @transform_2, window_bounds = array<i64: 1, 1, 512>}, {transform_indices = @transform_3, window_bounds = array<i64: 1, 512, 128>}, {transform_indices = @transform_4, window_bounds = array<i64: 1, 1, 128>}, {transform_indices = @transform_5, window_bounds = array<i64: 1, 2, 128>}]} {
    %c0_i32 = arith.constant 0 : i32
    %0 = arith.cmpi eq, %arg1, %c0_i32 : i32
    %1 = arith.extui %0 : i1 to i32
    %c0_i32_0 = arith.constant 0 : i32
    %2 = arith.cmpi ne, %1, %c0_i32_0 : i32
    scf.if %2 {
      %cst_10 = arith.constant 0.000000e+00 : f32
      %14 = vector.broadcast %cst_10 : f32 to vector<2x512xf32>
      %c0_11 = arith.constant 0 : index
      %c0_12 = arith.constant 0 : index
      %15 = vector.load %arg8[%c0_11, %c0_12] : memref<2x512xf32, #tpu.memory_space<vmem>>, vector<2x512xf32>
      tpu.vector_store %arg8[%c0_11, %c0_12], %14 {strides = array<i32>} : memref<2x512xf32, #tpu.memory_space<vmem>>, vector<2x512xf32>,
    } else {
    }
    %c0 = arith.constant 0 : index
    %c0_1 = arith.constant 0 : index
    %c0_2 = arith.constant 0 : index
    %3 = vector.load %arg3[%c0, %c0_1, %c0_2] : memref<1x256x512xbf16, #tpu.memory_space<vmem>>, vector<1x256x512xbf16>
    %4 = vector.shape_cast %3 : vector<1x256x512xbf16> to vector<256x512xbf16>
    %c0_3 = arith.constant 0 : index
    %c0_4 = arith.constant 0 : index
    %5 = vector.load %arg2[%c0_3, %c0_4] : memref<2x256xf32, #tpu.memory_space<vmem>>, vector<2x256xf32>
    %6 = arith.truncf %5 : vector<2x256xf32> to vector<2x256xbf16>
    %c0_5 = arith.constant 0 : index
    %c0_6 = arith.constant 0 : index
    %7 = vector.load %arg8[%c0_5, %c0_6] : memref<2x512xf32, #tpu.memory_space<vmem>>, vector<2x512xf32>
    %cst = arith.constant dense<0.000000e+00> : vector<2x512xf32>
    %8 = tpu.matmul %6, %4, %cst {dimension_numbers = #tpu.dot_dimension_numbers<[1], [0], [0], [1], [0, 0, 1, 1], [], []>} : vector<2x256xbf16>, vector<256x512xbf16>, vector<2x512xf32> -> vector<2x512xf32>
    %9 = arith.addf %7, %8 : vector<2x512xf32>
    %c0_7 = arith.constant 0 : index
    %c0_8 = arith.constant 0 : index
    %10 = vector.load %arg8[%c0_7, %c0_8] : memref<2x512xf32, #tpu.memory_space<vmem>>, vector<2x512xf32>
    tpu.vector_store %arg8[%c0_7, %c0_8], %9 {strides = array<i32>} : memref<2x512xf32, #tpu.memory_space<vmem>>, vector<2x512xf32>,
    %c3_i32 = arith.constant 3 : i32
    %11 = arith.cmpi eq, %arg1, %c3_i32 : i32
    %12 = arith.extui %11 : i1 to i32
    %c0_i32_9 = arith.constant 0 : i32
    %13 = arith.cmpi ne, %12, %c0_i32_9 : i32
    scf.if %13 {
      %c0_10 = arith.constant 0 : index
      %c0_11 = arith.constant 0 : index
      %14 = vector.load %arg8[%c0_10, %c0_11] : memref<2x512xf32, #tpu.memory_space<vmem>>, vector<2x512xf32>
      %c0_12 = arith.constant 0 : index
      %c0_13 = arith.constant 0 : index
      %c0_14 = arith.constant 0 : index
      %15 = vector.load %arg4[%c0_12, %c0_13, %c0_14] : memref<1x1x512xf32, #tpu.memory_space<vmem>>, vector<1x1x512xf32>
      %16 = vector.shape_cast %15 : vector<1x1x512xf32> to vector<1x512xf32>
      %17 = vector.broadcast %16 : vector<1x512xf32> to vector<2x512xf32>
      %18 = arith.addf %14, %17 : vector<2x512xf32>
      %cst_15 = arith.constant 0.000000e+00 : f32
      %19 = vector.broadcast %cst_15 : f32 to vector<2x512xf32>
      %20 = arith.maximumf %18, %19 : vector<2x512xf32>
      %c0_16 = arith.constant 0 : index
      %c0_17 = arith.constant 0 : index
      %c0_18 = arith.constant 0 : index
      %21 = vector.load %arg5[%c0_16, %c0_17, %c0_18] : memref<1x512x128xf32, #tpu.memory_space<vmem>>, vector<1x512x128xf32>
      %22 = vector.shape_cast %21 : vector<1x512x128xf32> to vector<512x128xf32>
      %cst_19 = arith.constant dense<0.000000e+00> : vector<2x128xf32>
      %23 = tpu.matmul %20, %22, %cst_19 {dimension_numbers = #tpu.dot_dimension_numbers<[1], [0], [0], [1], [0, 0, 1, 1], [], []>} : vector<2x512xf32>, vector<512x128xf32>, vector<2x128xf32> -> vector<2x128xf32>
      %c0_20 = arith.constant 0 : index
      %c0_21 = arith.constant 0 : index
      %c0_22 = arith.constant 0 : index
      %24 = vector.load %arg6[%c0_20, %c0_21, %c0_22] : memref<1x1x128xf32, #tpu.memory_space<vmem>>, vector<1x1x128xf32>
      %25 = vector.shape_cast %24 : vector<1x1x128xf32> to vector<1x128xf32>
      %26 = vector.broadcast %25 : vector<1x128xf32> to vector<2x128xf32>
      %27 = arith.addf %23, %26 : vector<2x128xf32>
      %c0_23 = arith.constant 0 : index
      %c0_24 = arith.constant 0 : index
      %c0_25 = arith.constant 0 : index
      %28 = vector.load %arg7[%c0_23, %c0_24, %c0_25] : memref<1x2x128xf32, #tpu.memory_space<vmem>>, vector<1x2x128xf32>
      %29 = vector.shape_cast %28 : vector<1x2x128xf32> to vector<2x128xf32>
      %30 = vector.shape_cast %27 : vector<2x128xf32> to vector<1x2x128xf32>
      tpu.vector_store %arg7[%c0_23, %c0_24, %c0_25], %30 {strides = array<i32>} : memref<1x2x128xf32, #tpu.memory_space<vmem>>, vector<1x2x128xf32>,
    } else {
    }
    return
  }
  func.func @transform_0(%arg0: i32, %arg1: i32) -> (i32, i32) {
    %c0_i32 = arith.constant 0 : i32
    %c0_i32_0 = arith.constant 0 : i32
    return %c0_i32, %arg1 : i32, i32
  }
  func.func @transform_1(%arg0: i32, %arg1: i32) -> (i32, i32, i32) {
    %c0_i32 = arith.constant 0 : i32
    %c0_i32_0 = arith.constant 0 : i32
    return %arg0, %arg1, %c0_i32 : i32, i32, i32
  }
  func.func @transform_2(%arg0: i32, %arg1: i32) -> (i32, i32, i32) {
    %c0_i32 = arith.constant 0 : i32
    %c0_i32_0 = arith.constant 0 : i32
    %c0_i32_1 = arith.constant 0 : i32
    return %arg0, %c0_i32, %c0_i32_0 : i32, i32, i32
  }
  func.func @transform_3(%arg0: i32, %arg1: i32) -> (i32, i32, i32) {
    %c0_i32 = arith.constant 0 : i32
    %c0_i32_0 = arith.constant 0 : i32
    %c0_i32_1 = arith.constant 0 : i32
    return %arg0, %c0_i32, %c0_i32_0 : i32, i32, i32
  }
  func.func @transform_4(%arg0: i32, %arg1: i32) -> (i32, i32, i32) {
    %c0_i32 = arith.constant 0 : i32
    %c0_i32_0 = arith.constant 0 : i32
    %c0_i32_1 = arith.constant 0 : i32
    return %arg0, %c0_i32, %c0_i32_0 : i32, i32, i32
  }
  func.func @transform_5(%arg0: i32, %arg1: i32) -> (i32, i32, i32) {
    %c0_i32 = arith.constant 0 : i32
    %c0_i32_0 = arith.constant 0 : i32
    %c0_i32_1 = arith.constant 0 : i32
    return %arg0, %c0_i32, %c0_i32_0 : i32, i32, i32
  }
}

</mosaic_0001>

<llo_original>
// kernel: _lambda_.3
$region0: #{_lambda_.3}
  #allocation0 [shape = 'u32[]', space=smem, size = 0x4, offset = 0x4, fixed_abs, tag = 'smem constant byte address 0x4 - core index']
  #allocation1 [shape = 'u32[72,128]{1,0:T(1,128)}', space=vmem, size = 0x9000, scoped, tag = 'internal scratch']
  #allocation2 [shape = 'f32[2,512]{1,0:T(2,128)}', space=vmem, size = 0x1000, scoped, tag = 'scratch operand']
  %s0 = inlined_call_operand.vmem [shape: f32[2,1024], index: 0, kind: input, shape index: {}]
  %s1 = inlined_call_operand.hbm [shape: bf16[4,1024,512], index: 1, kind: input, shape index: {}]
  %s2 = inlined_call_operand.hbm [shape: f32[4,1,512], index: 2, kind: input, shape index: {}]
  %s3 = inlined_call_operand.hbm [shape: f32[4,512,128], index: 3, kind: input, shape index: {}]
  %s4 = inlined_call_operand.hbm [shape: f32[4,1,128], index: 4, kind: input, shape index: {}]
  %s5 = inlined_call_operand.vmem [shape: f32[4,2,128], index: 5, kind: output, shape index: {}]
  %s6 = sld [smem:[#allocation0]]
  $region77: #{_lambda_.3} parent=0
    _
  %s8 = ssub.s32 1, %s6
  %s9 = scalar_select 0, %s8, %s6
  $region1: #{_lambda_.3} parent=0
    #allocation3 [shape = 'u8[524288]{0}', space=vmem, size = 0x80000, scoped, tag = 'input window, operand 1']
    #allocation4 [shape = 's32[2]{0}', space=sflag, size = 0x8, scoped, tag = 'scoped memory for _lambda_.3']
    #allocation5 [shape = 'u8[4096]{0}', space=vmem, size = 0x1000, scoped, tag = 'input window, operand 2']
    #allocation6 [shape = 's32[2]{0}', space=sflag, size = 0x8, scoped, tag = 'scoped memory for _lambda_.3']
    #allocation7 [shape = 'u8[524288]{0}', space=vmem, size = 0x80000, scoped, tag = 'input window, operand 3']
    #allocation8 [shape = 'u8[1024]{0}', space=vmem, size = 0x400, scoped, tag = 'input window, operand 4']
    #allocation9 [shape = 's32[2]{0}', space=sflag, size = 0x8, scoped, tag = 'scoped memory for _lambda_.3']
    %10 = vsyncpa [#allocation4], 0
    %s11 = scalar_lea.sflag [#allocation4], 1
    %12 = vsyncpa %s11, 0
    %13 = vsyncpa [#allocation6], 0
    %s14 = scalar_lea.sflag [#allocation6], 1
    %15 = vsyncpa %s14, 0
    %16 = vsyncpa [#allocation9], 0
    %s17 = scalar_lea.sflag [#allocation9], 1
    %18 = vsyncpa %s17, 0
    loop: start=0, step=1, limit=18
    $region2: #{_lambda_.3} parent=1 // loop_pre_header
      _
    $region3: #{_lambda_.3} parent=1 // loop_header
      %s20 = sphi 0, %s24
      %p21 = scmp.ge.s32.totalorder %s20, 18
      %s27 = sphi 0, %s39
      %s28 = sphi 0, %s35
      %s29 = sphi 0, %s27
      %s30 = sphi 0, %s28
      %s31 = sphi 0, %s29
      %s32 = sphi 0, %s30
      %s42 = sphi 0, %s44
      %s45 = sphi 0, %s42
      %s46 = sphi 0, %s45
      %s62 = sphi 0, %s46
      %s70 = sphi 0, %s72
      %s73 = sphi 0, %s70
      %s74 = sphi 0, %s73
      %s90 = sphi 0, %s74
      %s96 = sphi 0, %s98
      %s99 = sphi 0, %s96
      %s100 = sphi 0, %s99
      %s116 = sphi 0, %s100
      %s122 = sphi 0, %s124
      %s125 = sphi 0, %s122
      %s126 = sphi 0, %s125
      %s142 = sphi 0, %s126
      %s148 = sphi 0, %s150
      %s151 = sphi 0, %s148
      %s152 = sphi 0, %s151
      %s168 = sphi 0, %s152
      %s174 = sphi 0, %s176
      %s177 = sphi 0, %s174
      %s178 = sphi 0, %s177
      %s194 = sphi 0, %s178
    $region4: #{_lambda_.3} parent=1 // loop_header_branch
      %23 = sbr.rel (%p21) target = $region8
    $region5: #{_lambda_.3} parent=1 // loop_body
      %s25 = ssub.s32 %s20, 1
      %s26 = ssub.s32 %s20, 2
      %s33 = sadd.s32 1, %s28
      %p34 = scmp.ge.s32.totalorder %s33, 4
      %s35 = scalar_select %p34, 0, %s33
      %s36 = sadd.s32 1, %s27
      %s37 = scalar_select %p34, %s36, %s27
      %p38 = scmp.ge.s32.totalorder %s37, 4
      %s39 = scalar_select %p38, 0, %s37
      %s40 = ssub.s32 %s28, %s35
      %p41 = scmp.eq.s32.totalorder %s40, 0
      %s43 = sadd.s32 %s42, 1
      %s44 = scalar_select %p41, %s42, %s43
      %p47 = pneg %p41
      %p48 = scmp.eq.s32.totalorder %s20, 15
      %p49 = por %p47, %p48
      %p50 = scmp.ne.s32.totalorder %s42, %s45
      %p51 = scmp.eq.s32.totalorder %s20, 0
      %p52 = por %p50, %p51
      %p53 = scmp.ne.s32.totalorder %s42, %s45
      %p54 = scmp.eq.s32.totalorder %s25, 15
      %p55 = por %p53, %p54
      %p56 = scmp.ne.s32.totalorder %s45, %s46
      %p57 = scmp.eq.s32.totalorder %s25, 0
      %p58 = por %p56, %p57
      %p59 = scmp.ne.s32.totalorder %s45, %s46
      %p60 = scmp.eq.s32.totalorder %s26, 15
      %p61 = por %p59, %p60
      %p63 = scmp.ne.s32.totalorder %s46, %s62
      %p64 = scmp.eq.s32.totalorder %s26, 0
      %p65 = por %p63, %p64
      %s66 = ssub.s32 %s27, %s39
      %s67 = ssub.s32 %s28, %s35
      %s68 = sor.u32 %s66, %s67
      %p69 = scmp.eq.s32.totalorder %s68, 0
      %s71 = sadd.s32 %s70, 1
      %s72 = scalar_select %p69, %s70, %s71
      %p75 = pneg %p69
      %p76 = scmp.eq.s32.totalorder %s20, 15
      %p77 = por %p75, %p76
      %p78 = scmp.ne.s32.totalorder %s70, %s73
      %p79 = scmp.eq.s32.totalorder %s20, 0
      %p80 = por %p78, %p79
      %p81 = scmp.ne.s32.totalorder %s70, %s73
      %p82 = scmp.eq.s32.totalorder %s25, 15
      %p83 = por %p81, %p82
      %p84 = scmp.ne.s32.totalorder %s73, %s74
      %p85 = scmp.eq.s32.totalorder %s25, 0
      %p86 = por %p84, %p85
      %p87 = scmp.ne.s32.totalorder %s73, %s74
      %p88 = scmp.eq.s32.totalorder %s26, 15
      %p89 = por %p87, %p88
      %p91 = scmp.ne.s32.totalorder %s74, %s90
      %p92 = scmp.eq.s32.totalorder %s26, 0
      %p93 = por %p91, %p92
      %s94 = ssub.s32 %s27, %s39
      %p95 = scmp.eq.s32.totalorder %s94, 0
      %s97 = sadd.s32 %s96, 1
      %s98 = scalar_select %p95, %s96, %s97
      %p101 = pneg %p95
      %p102 = scmp.eq.s32.totalorder %s20, 15
      %p103 = por %p101, %p102
      %p104 = scmp.ne.s32.totalorder %s96, %s99
      %p105 = scmp.eq.s32.totalorder %s20, 0
      %p106 = por %p104, %p105
      %p107 = scmp.ne.s32.totalorder %s96, %s99
      %p108 = scmp.eq.s32.totalorder %s25, 15
      %p109 = por %p107, %p108
      %p110 = scmp.ne.s32.totalorder %s99, %s100
      %p111 = scmp.eq.s32.totalorder %s25, 0
      %p112 = por %p110, %p111
      %p113 = scmp.ne.s32.totalorder %s99, %s100
      %p114 = scmp.eq.s32.totalorder %s26, 15
      %p115 = por %p113, %p114
      %p117 = scmp.ne.s32.totalorder %s100, %s116
      %p118 = scmp.eq.s32.totalorder %s26, 0
      %p119 = por %p117, %p118
      %s120 = ssub.s32 %s27, %s39
      %p121 = scmp.eq.s32.totalorder %s120, 0
      %s123 = sadd.s32 %s122, 1
      %s124 = scalar_select %p121, %s122, %s123
      %p127 = pneg %p121
      %p128 = scmp.eq.s32.totalorder %s20, 15
      %p129 = por %p127, %p128
      %p130 = scmp.ne.s32.totalorder %s122, %s125
      %p131 = scmp.eq.s32.totalorder %s20, 0
      %p132 = por %p130, %p131
      %p133 = scmp.ne.s32.totalorder %s122, %s125
      %p134 = scmp.eq.s32.totalorder %s25, 15
      %p135 = por %p133, %p134
      %p136 = scmp.ne.s32.totalorder %s125, %s126
      %p137 = scmp.eq.s32.totalorder %s25, 0
      %p138 = por %p136, %p137
      %p139 = scmp.ne.s32.totalorder %s125, %s126
      %p140 = scmp.eq.s32.totalorder %s26, 15
      %p141 = por %p139, %p140
      %p143 = scmp.ne.s32.totalorder %s126, %s142
      %p144 = scmp.eq.s32.totalorder %s26, 0
      %p145 = por %p143, %p144
      %s146 = ssub.s32 %s27, %s39
      %p147 = scmp.eq.s32.totalorder %s146, 0
      %s149 = sadd.s32 %s148, 1
      %s150 = scalar_select %p147, %s148, %s149
      %p153 = pneg %p147
      %p154 = scmp.eq.s32.totalorder %s20, 15
      %p155 = por %p153, %p154
      %p156 = scmp.ne.s32.totalorder %s148, %s151
      %p157 = scmp.eq.s32.totalorder %s20, 0
      %p158 = por %p156, %p157
      %p159 = scmp.ne.s32.totalorder %s148, %s151
      %p160 = scmp.eq.s32.totalorder %s25, 15
      %p161 = por %p159, %p160
      %p162 = scmp.ne.s32.totalorder %s151, %s152
      %p163 = scmp.eq.s32.totalorder %s25, 0
      %p164 = por %p162, %p163
      %p165 = scmp.ne.s32.totalorder %s151, %s152
      %p166 = scmp.eq.s32.totalorder %s26, 15
      %p167 = por %p165, %p166
      %p169 = scmp.ne.s32.totalorder %s152, %s168
      %p170 = scmp.eq.s32.totalorder %s26, 0
      %p171 = por %p169, %p170
      %s172 = ssub.s32 %s27, %s39
      %p173 = scmp.eq.s32.totalorder %s172, 0
      %s175 = sadd.s32 %s174, 1
      %s176 = scalar_select %p173, %s174, %s175
      %p179 = pneg %p173
      %p180 = scmp.eq.s32.totalorder %s20, 15
      %p181 = por %p179, %p180
      %p182 = scmp.ne.s32.totalorder %s174, %s177
      %p183 = scmp.eq.s32.totalorder %s20, 0
      %p184 = por %p182, %p183
      %p185 = scmp.ne.s32.totalorder %s174, %s177
      %p186 = scmp.eq.s32.totalorder %s25, 15
      %p187 = por %p185, %p186
      %p188 = scmp.ne.s32.totalorder %s177, %s178
      %p189 = scmp.eq.s32.totalorder %s25, 0
      %p190 = por %p188, %p189
      %p191 = scmp.ne.s32.totalorder %s177, %s178
      %p192 = scmp.eq.s32.totalorder %s26, 15
      %p193 = por %p191, %p192
      %p195 = scmp.ne.s32.totalorder %s178, %s194
      %p196 = scmp.eq.s32.totalorder %s26, 0
      %p197 = por %p195, %p196
      %p198 = scmp.le.s32.totalorder 1, %s20
      %p199 = scmp.lt.s32.totalorder %s20, 17
      %p200 = pnand %p198, %p199
      %p201 = pneg %p200
      // Predicated region
      $region9: #{_lambda_.3} parent=5 // pred_check
        _
      $region10: #{_lambda_.3} parent=5 // pred_check_branch
        %203 = sbr.rel (%p200) target = $region12
      $region11: #{_lambda_.3} parent=5 // pred_region
        %s204 = ssub.s32 %s20, 1
      $region12: #{_lambda_.3} parent=5 // pred_fallthru
        _
      %p205 = scmp.lt.s32.totalorder %s20, 16
      // Predicated region
      $region13: #{_lambda_.3} parent=5 // pred_check
        %p206 = pneg %p205
      $region14: #{_lambda_.3} parent=5 // pred_check_branch
        %208 = sbr.rel (%p206) target = $region16
      $region15: #{_lambda_.3} parent=5 // pred_region
        // Predicated region
        $region17: #{_lambda_.3} parent=15 // pred_check
          %p209 = pneg %p52
        $region18: #{_lambda_.3} parent=15 // pred_check_branch
          %211 = sbr.rel (%p209) target = $region20
        $region19: #{_lambda_.3} parent=15 // pred_region
          %s212 = smul.u32 2, %s28
          %p213 = scmp.lt.s32.totalorder %s212, 7
          %s214 = scalar_select %p213, %s212, 7
          %s215 = smul.addr %s214, 2
          %s216 = scalar_lea.vmem %s0, %s215
          %s217 = smul.u32 2, %s28
        $region20: #{_lambda_.3} parent=15 // pred_fallthru
          _
        // Predicated region
        $region21: #{_lambda_.3} parent=15 // pred_check
          %p218 = pneg %p80
        $region22: #{_lambda_.3} parent=15 // pred_check_branch
          %220 = sbr.rel (%p218) target = $region24
        $region23: #{_lambda_.3} parent=15 // pred_region
          %s221 = sand.u32 %s70, 1
          %s222 = scalar_lea.sflag [#allocation4], %s221
          %s223 = sand.u32 %s70, 1
          %s224 = smul.addr %s223, 512
          %s225 = scalar_lea.vmem [#allocation3], %s224
          %s226 = smul.u32 32, %s28
          %228 = vsyncadd %s222, 0
          %s229 = smul.addr %s226, 4
          %s230 = smul.addr %s27, 512
          %s231 = sadd.s32 %s229, %s230
          %s232 = smul.addr %s231, 4
          %s233 = scalar_lea.hbm %s1, %s232
          %s234 = sshll.u32 %s233, 4
          %s235 = int_to_ptr.hbm [resolvable:$true] %s234
          %s236 = sshll.u32 %s225, 4
          %s237 = int_to_ptr.vmem [resolvable:$true] %s236
          %242 = dma.hbm_to_vmem [thread:$0]  %s235, 8192, %s237, %s222, 256, 256, 16
        $region24: #{_lambda_.3} parent=15 // pred_fallthru
          _
        // Predicated region
        $region25: #{_lambda_.3} parent=15 // pred_check
          %p243 = pneg %p106
        $region26: #{_lambda_.3} parent=15 // pred_check_branch
          %245 = sbr.rel (%p243) target = $region28
        $region27: #{_lambda_.3} parent=15 // pred_region
          %s246 = sand.u32 %s20, 1
          %s247 = scalar_lea.sflag [#allocation6], %s246
          %s248 = sand.u32 %s96, 1
          %s249 = smul.addr %s248, 4
          %s250 = scalar_lea.vmem [#allocation5], %s249
          %252 = vsyncadd %s247, 0
          %s253 = smul.addr %s27, 4
          %s254 = scalar_lea.hbm %s2, %s253
          %s256 = sshll.u32 %s254, 4
          %s257 = int_to_ptr.hbm [resolvable:$true] %s256
          %s258 = sshll.u32 %s250, 4
          %s259 = int_to_ptr.vmem [resolvable:$true] %s258
          %261 = dma.hbm_to_vmem [thread:$0]  %s257, 64, %s259, %s247
        $region28: #{_lambda_.3} parent=15 // pred_fallthru
          _
        // Predicated region
        $region29: #{_lambda_.3} parent=15 // pred_check
          %p262 = pneg %p132
        $region30: #{_lambda_.3} parent=15 // pred_check_branch
          %264 = sbr.rel (%p262) target = $region32
        $region31: #{_lambda_.3} parent=15 // pred_region
          %s265 = sand.u32 %s20, 1
          %s266 = scalar_lea.sflag [#allocation6], %s265
          %s267 = sand.u32 %s122, 1
          %s268 = smul.addr %s267, 512
          %s269 = scalar_lea.vmem [#allocation7], %s268
          %271 = vsyncadd %s266, 0
          %s272 = smul.addr %s27, 64
          %s273 = smul.addr %s272, 8
          %s274 = scalar_lea.hbm %s3, %s273
          %s275 = sshll.u32 %s274, 4
          %s276 = int_to_ptr.hbm [resolvable:$true] %s275
          %s277 = sshll.u32 %s269, 4
          %s278 = int_to_ptr.vmem [resolvable:$true] %s277
          %283 = dma.hbm_to_vmem [thread:$0]  %s276, 8192, %s278, %s266, 128, 128, 8
        $region32: #{_lambda_.3} parent=15 // pred_fallthru
          _
        // Predicated region
        $region33: #{_lambda_.3} parent=15 // pred_check
          %p284 = pneg %p158
        $region34: #{_lambda_.3} parent=15 // pred_check_branch
          %286 = sbr.rel (%p284) target = $region36
        $region35: #{_lambda_.3} parent=15 // pred_region
          %s287 = sand.u32 %s148, 1
          %s288 = scalar_lea.sflag [#allocation9], %s287
          %s289 = sand.u32 %s148, 1
          %s290 = scalar_lea.vmem [#allocation8], %s289
          %292 = vsyncadd %s288, 0
          %s293 = scalar_lea.hbm %s4, %s27
          %s295 = sshll.u32 %s293, 4
          %s296 = int_to_ptr.hbm [resolvable:$true] %s295
          %s297 = sshll.u32 %s290, 4
          %s298 = int_to_ptr.vmem [resolvable:$true] %s297
          %300 = dma.hbm_to_vmem [thread:$0]  %s296, 16, %s298, %s288
        $region36: #{_lambda_.3} parent=15 // pred_fallthru
          _
      $region16: #{_lambda_.3} parent=5 // pred_fallthru
        _
      %p301 = scmp.le.s32.totalorder 1, %s20
      %p302 = scmp.lt.s32.totalorder %s20, 17
      %p303 = pnand %p301, %p302
      %p304 = pneg %p303
      // Predicated region
      $region37: #{_lambda_.3} parent=5 // pred_check
        _
      $region38: #{_lambda_.3} parent=5 // pred_check_branch
        %306 = sbr.rel (%p303) target = $region40
      $region39: #{_lambda_.3} parent=5 // pred_region
        %s307 = ssub.s32 %s20, 1
        %s308 = sand.u32 %s73, 1
        %s309 = scalar_lea.sflag [#allocation4], %s308
        %s310 = sand.u32 %s73, 1
        %s311 = smul.addr %s310, 512
        %s312 = scalar_lea.vmem [#allocation3], %s311
        // Predicated region
        $region41: #{_lambda_.3} parent=39 // pred_check
          %p313 = pneg %p86
        $region42: #{_lambda_.3} parent=39 // pred_check_branch
          %315 = sbr.rel (%p313) target = $region44
        $region43: #{_lambda_.3} parent=39 // pred_region
          %317 = dma.done %s309, 8192
        $region44: #{_lambda_.3} parent=39 // pred_fallthru
          _
        %s318 = sand.u32 %s25, 1
        %s319 = scalar_lea.sflag [#allocation6], %s318
        %s320 = sand.u32 %s99, 1
        %s321 = smul.addr %s320, 4
        %s322 = scalar_lea.vmem [#allocation5], %s321
        // Predicated region
        $region45: #{_lambda_.3} parent=39 // pred_check
          %p323 = pneg %p112
        $region46: #{_lambda_.3} parent=39 // pred_check_branch
          %325 = sbr.rel (%p323) target = $region48
        $region47: #{_lambda_.3} parent=39 // pred_region
          %327 = dma.done %s319, 64
        $region48: #{_lambda_.3} parent=39 // pred_fallthru
          _
        %s328 = sand.u32 %s25, 1
        %s329 = scalar_lea.sflag [#allocation6], %s328
        %s330 = sand.u32 %s125, 1
        %s331 = smul.addr %s330, 512
        %s332 = scalar_lea.vmem [#allocation7], %s331
        // Predicated region
        $region49: #{_lambda_.3} parent=39 // pred_check
          %p333 = pneg %p138
        $region50: #{_lambda_.3} parent=39 // pred_check_branch
          %335 = sbr.rel (%p333) target = $region52
        $region51: #{_lambda_.3} parent=39 // pred_region
          %337 = dma.done %s329, 8192
        $region52: #{_lambda_.3} parent=39 // pred_fallthru
          _
        %s338 = sand.u32 %s151, 1
        %s339 = scalar_lea.sflag [#allocation9], %s338
        %s340 = sand.u32 %s151, 1
        %s341 = scalar_lea.vmem [#allocation8], %s340
        // Predicated region
        $region53: #{_lambda_.3} parent=39 // pred_check
          %p342 = pneg %p164
        $region54: #{_lambda_.3} parent=39 // pred_check_branch
          %344 = sbr.rel (%p342) target = $region56
        $region55: #{_lambda_.3} parent=39 // pred_region
          %346 = dma.done %s339, 16
        $region56: #{_lambda_.3} parent=39 // pred_fallthru
          _
        %s347 = smul.u32 2, %s30
        %p348 = scmp.lt.s32.totalorder %s347, 7
        %s349 = scalar_select %p348, %s347, 7
        %s350 = smul.addr %s349, 2
        %s351 = scalar_lea.vmem %s0, %s350
        %p352 = pneg %p58
        %p353 = pneg %p55
        %s354 = sand.u32 %s73, 1
        %s355 = scalar_lea.sflag [#allocation4], %s354
        %s356 = sand.u32 %s73, 1
        %s357 = smul.addr %s356, 512
        %s358 = scalar_lea.vmem [#allocation3], %s357
        %p359 = pneg %p86
        %p360 = pneg %p83
        %s361 = sand.u32 %s25, 1
        %s362 = scalar_lea.sflag [#allocation6], %s361
        %s363 = sand.u32 %s99, 1
        %s364 = smul.addr %s363, 4
        %s365 = scalar_lea.vmem [#allocation5], %s364
        %p366 = pneg %p112
        %p367 = pneg %p109
        %s368 = sand.u32 %s25, 1
        %s369 = scalar_lea.sflag [#allocation6], %s368
        %s370 = sand.u32 %s125, 1
        %s371 = smul.addr %s370, 512
        %s372 = scalar_lea.vmem [#allocation7], %s371
        %p373 = pneg %p138
        %p374 = pneg %p135
        %s375 = sand.u32 %s151, 1
        %s376 = scalar_lea.sflag [#allocation9], %s375
        %s377 = sand.u32 %s151, 1
        %s378 = scalar_lea.vmem [#allocation8], %s377
        %p379 = pneg %p164
        %p380 = pneg %p161
        %p381 = pneg %p190
        %p382 = pneg %p187
        %p383 = scmp.lt.s32.totalorder %s29, 3
        %s384 = scalar_select %p383, %s29, 3
        %s385 = smul.addr %s384, 2
        %s386 = scalar_lea.vmem %s5, %s385
        %s387 = smul.u32 2, %s30
        %p388 = scmp.lt.s32.totalorder %s387, 7
        %s389 = scalar_select %p388, %s387, 7
        %s390 = smul.addr %s389, 2
        %s391 = scalar_lea.vmem %s0, %s390
        %s392 = smul.u32 2, %s30
        %s393 = smul.u32 32, %s30
        %p394 = scmp.lt.s32.totalorder %s29, 3
        %s395 = scalar_select %p394, %s29, 3
        %s396 = smul.addr %s395, 2
        %s397 = scalar_lea.vmem %s5, %s396
        %p398 = scmp.eq.s32.totalorder %s30, 0
        // Predicated region
        $region57: #{_lambda_.3} parent=39 // pred_check
          %p399 = pneg %p398
        $region58: #{_lambda_.3} parent=39 // pred_check_branch
          %401 = sbr.rel (%p399) target = $region60
        $region59: #{_lambda_.3} parent=39 // pred_region
          %402 = vst [vmem:[#allocation2] sm:$0xff] 0.0
        $region60: #{_lambda_.3} parent=39 // pred_fallthru
          _
        %v403 = vld [vmem:[%s312] sm:$0xff]
        %v404 = vld [vmem:[%s312 + $0x8] sm:$0xff]
        %v405 = vld [vmem:[%s312 + $0x10] sm:$0xff]
        %v406 = vld [vmem:[%s312 + $0x18] sm:$0xff]
        %v407 = vld [vmem:[%s312 + $0x20] sm:$0xff]
        %v408 = vld [vmem:[%s312 + $0x28] sm:$0xff]
        %v409 = vld [vmem:[%s312 + $0x30] sm:$0xff]
        %v410 = vld [vmem:[%s312 + $0x38] sm:$0xff]
        %v411 = vld [vmem:[%s312 + $0x40] sm:$0xff]
        %v412 = vld [vmem:[%s312 + $0x48] sm:$0xff]
        %v413 = vld [vmem:[%s312 + $0x50] sm:$0xff]
        %v414 = vld [vmem:[%s312 + $0x58] sm:$0xff]
        %v415 = vld [vmem:[%s312 + $0x60] sm:$0xff]
        %v416 = vld [vmem:[%s312 + $0x68] sm:$0xff]
        %v417 = vld [vmem:[%s312 + $0x70] sm:$0xff]
        %v418 = vld [vmem:[%s312 + $0x78] sm:$0xff]
        %v419 = vld [vmem:[%s312 + $0x80] sm:$0xff]
        %v420 = vld [vmem:[%s312 + $0x88] sm:$0xff]
        %v421 = vld [vmem:[%s312 + $0x90] sm:$0xff]
        %v422 = vld [vmem:[%s312 + $0x98] sm:$0xff]
        %v423 = vld [vmem:[%s312 + $0xa0] sm:$0xff]
        %v424 = vld [vmem:[%s312 + $0xa8] sm:$0xff]
        %v425 = vld [vmem:[%s312 + $0xb0] sm:$0xff]
        %v426 = vld [vmem:[%s312 + $0xb8] sm:$0xff]
        %v427 = vld [vmem:[%s312 + $0xc0] sm:$0xff]
        %v428 = vld [vmem:[%s312 + $0xc8] sm:$0xff]
        %v429 = vld [vmem:[%s312 + $0xd0] sm:$0xff]
        %v430 = vld [vmem:[%s312 + $0xd8] sm:$0xff]
        %v431 = vld [vmem:[%s312 + $0xe0] sm:$0xff]
        %v432 = vld [vmem:[%s312 + $0xe8] sm:$0xff]
        %v433 = vld [vmem:[%s312 + $0xf0] sm:$0xff]
        %v434 = vld [vmem:[%s312 + $0xf8] sm:$0xff]
        %v435 = vld [vmem:[%s312 + $0x100] sm:$0xff]
        %v436 = vld [vmem:[%s312 + $0x108] sm:$0xff]
        %v437 = vld [vmem:[%s312 + $0x110] sm:$0xff]
        %v438 = vld [vmem:[%s312 + $0x118] sm:$0xff]
        %v439 = vld [vmem:[%s312 + $0x120] sm:$0xff]
        %v440 = vld [vmem:[%s312 + $0x128] sm:$0xff]
        %v441 = vld [vmem:[%s312 + $0x130] sm:$0xff]
        %v442 = vld [vmem:[%s312 + $0x138] sm:$0xff]
        %v443 = vld [vmem:[%s312 + $0x140] sm:$0xff]
        %v444 = vld [vmem:[%s312 + $0x148] sm:$0xff]
        %v445 = vld [vmem:[%s312 + $0x150] sm:$0xff]
        %v446 = vld [vmem:[%s312 + $0x158] sm:$0xff]
        %v447 = vld [vmem:[%s312 + $0x160] sm:$0xff]
        %v448 = vld [vmem:[%s312 + $0x168] sm:$0xff]
        %v449 = vld [vmem:[%s312 + $0x170] sm:$0xff]
        %v450 = vld [vmem:[%s312 + $0x178] sm:$0xff]
        %v451 = vld [vmem:[%s312 + $0x180] sm:$0xff]
        %v452 = vld [vmem:[%s312 + $0x188] sm:$0xff]
        %v453 = vld [vmem:[%s312 + $0x190] sm:$0xff]
        %v454 = vld [vmem:[%s312 + $0x198] sm:$0xff]
        %v455 = vld [vmem:[%s312 + $0x1a0] sm:$0xff]
        %v456 = vld [vmem:[%s312 + $0x1a8] sm:$0xff]
        %v457 = vld [vmem:[%s312 + $0x1b0] sm:$0xff]
        %v458 = vld [vmem:[%s312 + $0x1b8] sm:$0xff]
        %v459 = vld [vmem:[%s312 + $0x1c0] sm:$0xff]
        %v460 = vld [vmem:[%s312 + $0x1c8] sm:$0xff]
        %v461 = vld [vmem:[%s312 + $0x1d0] sm:$0xff]
        %v462 = vld [vmem:[%s312 + $0x1d8] sm:$0xff]
        %v463 = vld [vmem:[%s312 + $0x1e0] sm:$0xff]
        %v464 = vld [vmem:[%s312 + $0x1e8] sm:$0xff]
        %v465 = vld [vmem:[%s312 + $0x1f0] sm:$0xff]
        %v466 = vld [vmem:[%s312 + $0x1f8] sm:$0xff]
        %v467 = vld [vmem:[%s391] sm:$0xf]
        %469 = vst [vmem:[#allocation1] ss:$4 sm:$0xff] %v467
        %v470 = vld.sshfl [vmem:[#allocation1] sm:$0xff pattern:$0x73625140]
        %v471 = vld.sshfl [vmem:[#allocation1 + $0x8] sm:$0xff pattern:$0x73625140]
        %v474 = vpack.c.bf16 %v470, %v470
        %v475 = vpack.c.bf16 %v471, %v471
        %v476 = vld [vmem:[#allocation2] sm:$0xff]
        %v541 = vunpack.c.l.b16 %v403
        %v542 = vunpack.c.h.b16 %v403
        %v543 = vunpack.c.l.b16 %v404
        %v544 = vunpack.c.h.b16 %v404
        %v545 = vunpack.c.l.b16 %v405
        %v546 = vunpack.c.h.b16 %v405
        %v547 = vunpack.c.l.b16 %v406
        %v548 = vunpack.c.h.b16 %v406
        %v549 = vunpack.c.l.b16 %v407
        %v550 = vunpack.c.h.b16 %v407
        %v551 = vunpack.c.l.b16 %v408
        %v552 = vunpack.c.h.b16 %v408
        %v553 = vunpack.c.l.b16 %v409
        %v554 = vunpack.c.h.b16 %v409
        %v555 = vunpack.c.l.b16 %v410
        %v556 = vunpack.c.h.b16 %v410
        %v557 = vunpack.c.l.b16 %v411
        %v558 = vunpack.c.h.b16 %v411
        %v559 = vunpack.c.l.b16 %v412
        %v560 = vunpack.c.h.b16 %v412
        %v561 = vunpack.c.l.b16 %v413
        %v562 = vunpack.c.h.b16 %v413
        %v563 = vunpack.c.l.b16 %v414
        %v564 = vunpack.c.h.b16 %v414
        %v565 = vunpack.c.l.b16 %v415
        %v566 = vunpack.c.h.b16 %v415
        %v567 = vunpack.c.l.b16 %v416
        %v568 = vunpack.c.h.b16 %v416
        %v569 = vunpack.c.l.b16 %v417
        %v570 = vunpack.c.h.b16 %v417
        %v571 = vunpack.c.l.b16 %v418
        %v572 = vunpack.c.h.b16 %v418
        %v573 = vunpack.c.l.b16 %v419
        %v574 = vunpack.c.h.b16 %v419
        %v575 = vunpack.c.l.b16 %v420
        %v576 = vunpack.c.h.b16 %v420
        %v577 = vunpack.c.l.b16 %v421
        %v578 = vunpack.c.h.b16 %v421
        %v579 = vunpack.c.l.b16 %v422
        %v580 = vunpack.c.h.b16 %v422
        %v581 = vunpack.c.l.b16 %v423
        %v582 = vunpack.c.h.b16 %v423
        %v583 = vunpack.c.l.b16 %v424
        %v584 = vunpack.c.h.b16 %v424
        %v585 = vunpack.c.l.b16 %v425
        %v586 = vunpack.c.h.b16 %v425
        %v587 = vunpack.c.l.b16 %v426
        %v588 = vunpack.c.h.b16 %v426
        %v589 = vunpack.c.l.b16 %v427
        %v590 = vunpack.c.h.b16 %v427
        %v591 = vunpack.c.l.b16 %v428
        %v592 = vunpack.c.h.b16 %v428
        %v593 = vunpack.c.l.b16 %v429
        %v594 = vunpack.c.h.b16 %v429
        %v595 = vunpack.c.l.b16 %v430
        %v596 = vunpack.c.h.b16 %v430
        %v597 = vunpack.c.l.b16 %v431
        %v598 = vunpack.c.h.b16 %v431
        %v599 = vunpack.c.l.b16 %v432
        %v600 = vunpack.c.h.b16 %v432
        %v601 = vunpack.c.l.b16 %v433
        %v602 = vunpack.c.h.b16 %v433
        %v603 = vunpack.c.l.b16 %v434
        %v604 = vunpack.c.h.b16 %v434
        %v605 = vunpack.c.l.b16 %v435
        %v606 = vunpack.c.h.b16 %v435
        %v607 = vunpack.c.l.b16 %v436
        %v608 = vunpack.c.h.b16 %v436
        %v609 = vunpack.c.l.b16 %v437
        %v610 = vunpack.c.h.b16 %v437
        %v611 = vunpack.c.l.b16 %v438
        %v612 = vunpack.c.h.b16 %v438
        %v613 = vunpack.c.l.b16 %v439
        %v614 = vunpack.c.h.b16 %v439
        %v615 = vunpack.c.l.b16 %v440
        %v616 = vunpack.c.h.b16 %v440
        %v617 = vunpack.c.l.b16 %v441
        %v618 = vunpack.c.h.b16 %v441
        %v619 = vunpack.c.l.b16 %v442
        %v620 = vunpack.c.h.b16 %v442
        %v621 = vunpack.c.l.b16 %v443
        %v622 = vunpack.c.h.b16 %v443
        %v623 = vunpack.c.l.b16 %v444
        %v624 = vunpack.c.h.b16 %v444
        %v625 = vunpack.c.l.b16 %v445
        %v626 = vunpack.c.h.b16 %v445
        %v627 = vunpack.c.l.b16 %v446
        %v628 = vunpack.c.h.b16 %v446
        %v629 = vunpack.c.l.b16 %v447
        %v630 = vunpack.c.h.b16 %v447
        %v631 = vunpack.c.l.b16 %v448
        %v632 = vunpack.c.h.b16 %v448
        %v633 = vunpack.c.l.b16 %v449
        %v634 = vunpack.c.h.b16 %v449
        %v635 = vunpack.c.l.b16 %v450
        %v636 = vunpack.c.h.b16 %v450
        %v637 = vunpack.c.l.b16 %v451
        %v638 = vunpack.c.h.b16 %v451
        %v639 = vunpack.c.l.b16 %v452
        %v640 = vunpack.c.h.b16 %v452
        %v641 = vunpack.c.l.b16 %v453
        %v642 = vunpack.c.h.b16 %v453
        %v643 = vunpack.c.l.b16 %v454
        %v644 = vunpack.c.h.b16 %v454
        %v645 = vunpack.c.l.b16 %v455
        %v646 = vunpack.c.h.b16 %v455
        %v647 = vunpack.c.l.b16 %v456
        %v648 = vunpack.c.h.b16 %v456
        %v649 = vunpack.c.l.b16 %v457
        %v650 = vunpack.c.h.b16 %v457
        %v651 = vunpack.c.l.b16 %v458
        %v652 = vunpack.c.h.b16 %v458
        %v653 = vunpack.c.l.b16 %v459
        %v654 = vunpack.c.h.b16 %v459
        %v655 = vunpack.c.l.b16 %v460
        %v656 = vunpack.c.h.b16 %v460
        %v657 = vunpack.c.l.b16 %v461
        %v658 = vunpack.c.h.b16 %v461
        %v659 = vunpack.c.l.b16 %v462
        %v660 = vunpack.c.h.b16 %v462
        %v661 = vunpack.c.l.b16 %v463
        %v662 = vunpack.c.h.b16 %v463
        %v663 = vunpack.c.l.b16 %v464
        %v664 = vunpack.c.h.b16 %v464
        %v665 = vunpack.c.l.b16 %v465
        %v666 = vunpack.c.h.b16 %v465
        %v667 = vunpack.c.l.b16 %v466
        %v668 = vunpack.c.h.b16 %v466
        %v669 = vpack.c.b16 %v545, %v541
        %v670 = vpack.c.b16 %v546, %v542
        %v671 = vpack.c.b16 %v547, %v543
        %v672 = vpack.c.b16 %v548, %v544
        %v673 = vpack.c.b16 %v553, %v549
        %v674 = vpack.c.b16 %v554, %v550
        %v675 = vpack.c.b16 %v555, %v551
        %v676 = vpack.c.b16 %v556, %v552
        %v677 = vpack.c.b16 %v561, %v557
        %v678 = vpack.c.b16 %v562, %v558
        %v679 = vpack.c.b16 %v563, %v559
        %v680 = vpack.c.b16 %v564, %v560
        %v681 = vpack.c.b16 %v569, %v565
        %v682 = vpack.c.b16 %v570, %v566
        %v683 = vpack.c.b16 %v571, %v567
        %v684 = vpack.c.b16 %v572, %v568
        %v685 = vpack.c.b16 %v577, %v573
        %v686 = vpack.c.b16 %v578, %v574
        %v687 = vpack.c.b16 %v579, %v575
        %v688 = vpack.c.b16 %v580, %v576
        %v689 = vpack.c.b16 %v585, %v581
        %v690 = vpack.c.b16 %v586, %v582
        %v691 = vpack.c.b16 %v587, %v583
        %v692 = vpack.c.b16 %v588, %v584
        %v693 = vpack.c.b16 %v593, %v589
        %v694 = vpack.c.b16 %v594, %v590
        %v695 = vpack.c.b16 %v595, %v591
        %v696 = vpack.c.b16 %v596, %v592
        %v697 = vpack.c.b16 %v601, %v597
        %v698 = vpack.c.b16 %v602, %v598
        %v699 = vpack.c.b16 %v603, %v599
        %v700 = vpack.c.b16 %v604, %v600
        %v701 = vpack.c.b16 %v609, %v605
        %v702 = vpack.c.b16 %v610, %v606
        %v703 = vpack.c.b16 %v611, %v607
        %v704 = vpack.c.b16 %v612, %v608
        %v705 = vpack.c.b16 %v617, %v613
        %v706 = vpack.c.b16 %v618, %v614
        %v707 = vpack.c.b16 %v619, %v615
        %v708 = vpack.c.b16 %v620, %v616
        %v709 = vpack.c.b16 %v625, %v621
        %v710 = vpack.c.b16 %v626, %v622
        %v711 = vpack.c.b16 %v627, %v623
        %v712 = vpack.c.b16 %v628, %v624
        %v713 = vpack.c.b16 %v633, %v629
        %v714 = vpack.c.b16 %v634, %v630
        %v715 = vpack.c.b16 %v635, %v631
        %v716 = vpack.c.b16 %v636, %v632
        %v717 = vpack.c.b16 %v641, %v637
        %v718 = vpack.c.b16 %v642, %v638
        %v719 = vpack.c.b16 %v643, %v639
        %v720 = vpack.c.b16 %v644, %v640
        %v721 = vpack.c.b16 %v649, %v645
        %v722 = vpack.c.b16 %v650, %v646
        %v723 = vpack.c.b16 %v651, %v647
        %v724 = vpack.c.b16 %v652, %v648
        %v725 = vpack.c.b16 %v657, %v653
        %v726 = vpack.c.b16 %v658, %v654
        %v727 = vpack.c.b16 %v659, %v655
        %v728 = vpack.c.b16 %v660, %v656
        %v729 = vpack.c.b16 %v665, %v661
        %v730 = vpack.c.b16 %v666, %v662
        %v731 = vpack.c.b16 %v667, %v663
        %v732 = vpack.c.b16 %v668, %v664
        %797 = vmatpush.bf16.msra.mxu0 %v697
        %798 = vmatpush.bf16.msra.mxu0 %v693
        %799 = vmatpush.bf16.msra.mxu0 %v689
        %800 = vmatpush.bf16.msra.mxu0 %v685
        %801 = vmatpush.bf16.msra.mxu0 %v681
        %802 = vmatpush.bf16.msra.mxu0 %v677
        %803 = vmatpush.bf16.msra.mxu0 %v673
        %804 = vmatpush.bf16.msra.mxu0 %v669
        %805 = vmatmul.bf16.gmra.mxu0 %v474
        %v806 = vpop.f32.mrf.mxu0
        %v807 = vadd.f32 0.0, %v806
        %v808 = vpop.f32.mrf.mxu0
        %809 = vdwg.mxu0
        %810 = vmatpush.bf16.msra.mxu0 %v729
        %811 = vmatpush.bf16.msra.mxu0 %v725
        %812 = vmatpush.bf16.msra.mxu0 %v721
        %813 = vmatpush.bf16.msra.mxu0 %v717
        %814 = vmatpush.bf16.msra.mxu0 %v713
        %815 = vmatpush.bf16.msra.mxu0 %v709
        %816 = vmatpush.bf16.msra.mxu0 %v705
        %817 = vmatpush.bf16.msra.mxu0 %v701
        %818 = vmatmul.bf16.gmra.mxu0 %v475
        %v819 = vpop.f32.mrf.mxu0
        %v820 = vadd.f32 %v807, %v819
        %v821 = vpop.f32.mrf.mxu0
        %822 = vdwg.mxu0
        %823 = vmatpush.bf16.msra.mxu0 %v698
        %824 = vmatpush.bf16.msra.mxu0 %v694
        %825 = vmatpush.bf16.msra.mxu0 %v690
        %826 = vmatpush.bf16.msra.mxu0 %v686
        %827 = vmatpush.bf16.msra.mxu0 %v682
        %828 = vmatpush.bf16.msra.mxu0 %v678
        %829 = vmatpush.bf16.msra.mxu0 %v674
        %830 = vmatpush.bf16.msra.mxu0 %v670
        %831 = vmatmul.bf16.gmra.mxu0 %v474
        %v832 = vpop.f32.mrf.mxu0
        %v833 = vadd.f32 0.0, %v832
        %v834 = vpop.f32.mrf.mxu0
        %835 = vdwg.mxu0
        %836 = vmatpush.bf16.msra.mxu0 %v730
        %837 = vmatpush.bf16.msra.mxu0 %v726
        %838 = vmatpush.bf16.msra.mxu0 %v722
        %839 = vmatpush.bf16.msra.mxu0 %v718
        %840 = vmatpush.bf16.msra.mxu0 %v714
        %841 = vmatpush.bf16.msra.mxu0 %v710
        %842 = vmatpush.bf16.msra.mxu0 %v706
        %843 = vmatpush.bf16.msra.mxu0 %v702
        %844 = vmatmul.bf16.gmra.mxu0 %v475
        %v845 = vpop.f32.mrf.mxu0
        %v846 = vadd.f32 %v833, %v845
        %v847 = vpop.f32.mrf.mxu0
        %848 = vdwg.mxu0
        %849 = vmatpush.bf16.msra.mxu0 %v699
        %850 = vmatpush.bf16.msra.mxu0 %v695
        %851 = vmatpush.bf16.msra.mxu0 %v691
        %852 = vmatpush.bf16.msra.mxu0 %v687
        %853 = vmatpush.bf16.msra.mxu0 %v683
        %854 = vmatpush.bf16.msra.mxu0 %v679
        %855 = vmatpush.bf16.msra.mxu0 %v675
        %856 = vmatpush.bf16.msra.mxu0 %v671
        %857 = vmatmul.bf16.gmra.mxu0 %v474
        %v858 = vpop.f32.mrf.mxu0
        %v859 = vadd.f32 0.0, %v858
        %v860 = vpop.f32.mrf.mxu0
        %861 = vdwg.mxu0
        %862 = vmatpush.bf16.msra.mxu0 %v731
        %863 = vmatpush.bf16.msra.mxu0 %v727
        %864 = vmatpush.bf16.msra.mxu0 %v723
        %865 = vmatpush.bf16.msra.mxu0 %v719
        %866 = vmatpush.bf16.msra.mxu0 %v715
        %867 = vmatpush.bf16.msra.mxu0 %v711
        %868 = vmatpush.bf16.msra.mxu0 %v707
        %869 = vmatpush.bf16.msra.mxu0 %v703
        %870 = vmatmul.bf16.gmra.mxu0 %v475
        %v871 = vpop.f32.mrf.mxu0
        %v872 = vadd.f32 %v859, %v871
        %v873 = vpop.f32.mrf.mxu0
        %874 = vdwg.mxu0
        %875 = vmatpush.bf16.msra.mxu0 %v700
        %876 = vmatpush.bf16.msra.mxu0 %v696
        %877 = vmatpush.bf16.msra.mxu0 %v692
        %878 = vmatpush.bf16.msra.mxu0 %v688
        %879 = vmatpush.bf16.msra.mxu0 %v684
        %880 = vmatpush.bf16.msra.mxu0 %v680
        %881 = vmatpush.bf16.msra.mxu0 %v676
        %882 = vmatpush.bf16.msra.mxu0 %v672
        %883 = vmatmul.bf16.gmra.mxu0 %v474
        %v884 = vpop.f32.mrf.mxu0
        %v885 = vadd.f32 0.0, %v884
        %v886 = vpop.f32.mrf.mxu0
        %887 = vdwg.mxu0
        %888 = vmatpush.bf16.msra.mxu0 %v732
        %889 = vmatpush.bf16.msra.mxu0 %v728
        %890 = vmatpush.bf16.msra.mxu0 %v724
        %891 = vmatpush.bf16.msra.mxu0 %v720
        %892 = vmatpush.bf16.msra.mxu0 %v716
        %893 = vmatpush.bf16.msra.mxu0 %v712
        %894 = vmatpush.bf16.msra.mxu0 %v708
        %895 = vmatpush.bf16.msra.mxu0 %v704
        %896 = vmatmul.bf16.gmra.mxu0 %v475
        %v897 = vpop.f32.mrf.mxu0
        %v898 = vadd.f32 %v885, %v897
        %v899 = vpop.f32.mrf.mxu0
        %900 = vdwg.mxu0
        %v905 = vrot.slane %v846, 6
        %v906 = vrot.slane %v872, 4
        %v907 = vrot.slane %v898, 2
        %vm908 = vcmask 1041408
        %v909 = vsel %vm908, %v820, %v905
        %vm910 = vcmask 1045508
        %v911 = vsel %vm910, %v906, %v907
        %vm912 = vcmask 1043456
        %v913 = vsel %vm912, %v909, %v911
        %v915 = vadd.f32 %v476, %v913
        %916 = vst [vmem:[#allocation2] sm:$0xff] %v915
        %p917 = scmp.eq.s32.totalorder %s30, 3
        // Predicated region
        $region61: #{_lambda_.3} parent=39 // pred_check
          %p918 = pneg %p917
        $region62: #{_lambda_.3} parent=39 // pred_check_branch
          %920 = sbr.rel (%p918) target = $region64
        $region63: #{_lambda_.3} parent=39 // pred_region
          %v921 = vld [vmem:[#allocation2] sm:$0xff]
          %v922 = vld [vmem:[%s322] sm:$0xf]
          %v924 = vperm.slane %v922, 0
          %v925 = vperm.slane %v922, 1
          %v926 = vperm.slane %v922, 2
          %v927 = vperm.slane %v922, 3
          %v928 = vrot.slane %v925, 6
          %v929 = vrot.slane %v926, 4
          %v930 = vrot.slane %v927, 2
          %v931 = vsel %vm908, %v924, %v928
          %v932 = vsel %vm910, %v929, %v930
          %v933 = vsel %vm912, %v931, %v932
          %v935 = vadd.f32 %v921, %v933
          %v936 = vmax.f32 %v935, 0.0
          %v937 = vld [vmem:[%s332] sm:$0xff]
          %v938 = vld [vmem:[%s332 + $0x8] sm:$0xff]
          %v939 = vld [vmem:[%s332 + $0x10] sm:$0xff]
          %v940 = vld [vmem:[%s332 + $0x18] sm:$0xff]
          %v941 = vld [vmem:[%s332 + $0x20] sm:$0xff]
          %v942 = vld [vmem:[%s332 + $0x28] sm:$0xff]
          %v943 = vld [vmem:[%s332 + $0x30] sm:$0xff]
          %v944 = vld [vmem:[%s332 + $0x38] sm:$0xff]
          %v945 = vld [vmem:[%s332 + $0x40] sm:$0xff]
          %v946 = vld [vmem:[%s332 + $0x48] sm:$0xff]
          %v947 = vld [vmem:[%s332 + $0x50] sm:$0xff]
          %v948 = vld [vmem:[%s332 + $0x58] sm:$0xff]
          %v949 = vld [vmem:[%s332 + $0x60] sm:$0xff]
          %v950 = vld [vmem:[%s332 + $0x68] sm:$0xff]
          %v951 = vld [vmem:[%s332 + $0x70] sm:$0xff]
          %v952 = vld [vmem:[%s332 + $0x78] sm:$0xff]
          %v953 = vld [vmem:[%s332 + $0x80] sm:$0xff]
          %v954 = vld [vmem:[%s332 + $0x88] sm:$0xff]
          %v955 = vld [vmem:[%s332 + $0x90] sm:$0xff]
          %v956 = vld [vmem:[%s332 + $0x98] sm:$0xff]
          %v957 = vld [vmem:[%s332 + $0xa0] sm:$0xff]
          %v958 = vld [vmem:[%s332 + $0xa8] sm:$0xff]
          %v959 = vld [vmem:[%s332 + $0xb0] sm:$0xff]
          %v960 = vld [vmem:[%s332 + $0xb8] sm:$0xff]
          %v961 = vld [vmem:[%s332 + $0xc0] sm:$0xff]
          %v962 = vld [vmem:[%s332 + $0xc8] sm:$0xff]
          %v963 = vld [vmem:[%s332 + $0xd0] sm:$0xff]
          %v964 = vld [vmem:[%s332 + $0xd8] sm:$0xff]
          %v965 = vld [vmem:[%s332 + $0xe0] sm:$0xff]
          %v966 = vld [vmem:[%s332 + $0xe8] sm:$0xff]
          %v967 = vld [vmem:[%s332 + $0xf0] sm:$0xff]
          %v968 = vld [vmem:[%s332 + $0xf8] sm:$0xff]
          %v969 = vld [vmem:[%s332 + $0x100] sm:$0xff]
          %v970 = vld [vmem:[%s332 + $0x108] sm:$0xff]
          %v971 = vld [vmem:[%s332 + $0x110] sm:$0xff]
          %v972 = vld [vmem:[%s332 + $0x118] sm:$0xff]
          %v973 = vld [vmem:[%s332 + $0x120] sm:$0xff]
          %v974 = vld [vmem:[%s332 + $0x128] sm:$0xff]
          %v975 = vld [vmem:[%s332 + $0x130] sm:$0xff]
          %v976 = vld [vmem:[%s332 + $0x138] sm:$0xff]
          %v977 = vld [vmem:[%s332 + $0x140] sm:$0xff]
          %v978 = vld [vmem:[%s332 + $0x148] sm:$0xff]
          %v979 = vld [vmem:[%s332 + $0x150] sm:$0xff]
          %v980 = vld [vmem:[%s332 + $0x158] sm:$0xff]
          %v981 = vld [vmem:[%s332 + $0x160] sm:$0xff]
          %v982 = vld [vmem:[%s332 + $0x168] sm:$0xff]
          %v983 = vld [vmem:[%s332 + $0x170] sm:$0xff]
          %v984 = vld [vmem:[%s332 + $0x178] sm:$0xff]
          %v985 = vld [vmem:[%s332 + $0x180] sm:$0xff]
          %v986 = vld [vmem:[%s332 + $0x188] sm:$0xff]
          %v987 = vld [vmem:[%s332 + $0x190] sm:$0xff]
          %v988 = vld [vmem:[%s332 + $0x198] sm:$0xff]
          %v989 = vld [vmem:[%s332 + $0x1a0] sm:$0xff]
          %v990 = vld [vmem:[%s332 + $0x1a8] sm:$0xff]
          %v991 = vld [vmem:[%s332 + $0x1b0] sm:$0xff]
          %v992 = vld [vmem:[%s332 + $0x1b8] sm:$0xff]
          %v993 = vld [vmem:[%s332 + $0x1c0] sm:$0xff]
          %v994 = vld [vmem:[%s332 + $0x1c8] sm:$0xff]
          %v995 = vld [vmem:[%s332 + $0x1d0] sm:$0xff]
          %v996 = vld [vmem:[%s332 + $0x1d8] sm:$0xff]
          %v997 = vld [vmem:[%s332 + $0x1e0] sm:$0xff]
          %v998 = vld [vmem:[%s332 + $0x1e8] sm:$0xff]
          %v999 = vld [vmem:[%s332 + $0x1f0] sm:$0xff]
          %v1000 = vld [vmem:[%s332 + $0x1f8] sm:$0xff]
          %v1001 = vld [vmem:[%s341] sm:$0x1]
          %v1003 = vperm.slane %v1001, 0
          %1006 = vst [vmem:[#allocation1] ss:$4 sm:$0xff] %v936
          %v1007 = vld.sshfl [vmem:[#allocation1] sm:$0xff pattern:$0x73625140]
          %v1008 = vld.sshfl [vmem:[#allocation1 + $0x8] sm:$0xff pattern:$0x73625140]
          %v1009 = vld.sshfl [vmem:[#allocation1 + $0x10] sm:$0xff pattern:$0x73625140]
          %v1010 = vld.sshfl [vmem:[#allocation1 + $0x18] sm:$0xff pattern:$0x73625140]
          %1015 = vmatpush.msra.mxu0 %v952
          %1016 = vmatpush.msra.mxu0 %v951
          %1017 = vmatpush.msra.mxu0 %v950
          %1018 = vmatpush.msra.mxu0 %v949
          %1019 = vmatpush.msra.mxu0 %v948
          %1020 = vmatpush.msra.mxu0 %v947
          %1021 = vmatpush.msra.mxu0 %v946
          %1022 = vmatpush.msra.mxu0 %v945
          %1023 = vmatpush.msra.mxu0 %v944
          %1024 = vmatpush.msra.mxu0 %v943
          %1025 = vmatpush.msra.mxu0 %v942
          %1026 = vmatpush.msra.mxu0 %v941
          %1027 = vmatpush.msra.mxu0 %v940
          %1028 = vmatpush.msra.mxu0 %v939
          %1029 = vmatpush.msra.mxu0 %v938
          %1030 = vmatpush.msra.mxu0 %v937
          %1031 = vmatmul.f32.gmra.mxu0 %v1007
          %v1032 = vpop.f32.mrf.mxu0
          %v1033 = vadd.f32 %v1003, %v1032
          %1034 = vdwg.mxu0
          %1035 = vmatpush.msra.mxu0 %v968
          %1036 = vmatpush.msra.mxu0 %v967
          %1037 = vmatpush.msra.mxu0 %v966
          %1038 = vmatpush.msra.mxu0 %v965
          %1039 = vmatpush.msra.mxu0 %v964
          %1040 = vmatpush.msra.mxu0 %v963
          %1041 = vmatpush.msra.mxu0 %v962
          %1042 = vmatpush.msra.mxu0 %v961
          %1043 = vmatpush.msra.mxu0 %v960
          %1044 = vmatpush.msra.mxu0 %v959
          %1045 = vmatpush.msra.mxu0 %v958
          %1046 = vmatpush.msra.mxu0 %v957
          %1047 = vmatpush.msra.mxu0 %v956
          %1048 = vmatpush.msra.mxu0 %v955
          %1049 = vmatpush.msra.mxu0 %v954
          %1050 = vmatpush.msra.mxu0 %v953
          %1051 = vmatmul.f32.gmra.mxu0 %v1008
          %v1052 = vpop.f32.mrf.mxu0
          %v1053 = vadd.f32 %v1033, %v1052
          %1054 = vdwg.mxu0
          %1055 = vmatpush.msra.mxu0 %v984
          %1056 = vmatpush.msra.mxu0 %v983
          %1057 = vmatpush.msra.mxu0 %v982
          %1058 = vmatpush.msra.mxu0 %v981
          %1059 = vmatpush.msra.mxu0 %v980
          %1060 = vmatpush.msra.mxu0 %v979
          %1061 = vmatpush.msra.mxu0 %v978
          %1062 = vmatpush.msra.mxu0 %v977
          %1063 = vmatpush.msra.mxu0 %v976
          %1064 = vmatpush.msra.mxu0 %v975
          %1065 = vmatpush.msra.mxu0 %v974
          %1066 = vmatpush.msra.mxu0 %v973
          %1067 = vmatpush.msra.mxu0 %v972
          %1068 = vmatpush.msra.mxu0 %v971
          %1069 = vmatpush.msra.mxu0 %v970
          %1070 = vmatpush.msra.mxu0 %v969
          %1071 = vmatmul.f32.gmra.mxu0 %v1009
          %v1072 = vpop.f32.mrf.mxu0
          %v1073 = vadd.f32 %v1053, %v1072
          %1074 = vdwg.mxu0
          %1075 = vmatpush.msra.mxu0 %v1000
          %1076 = vmatpush.msra.mxu0 %v999
          %1077 = vmatpush.msra.mxu0 %v998
          %1078 = vmatpush.msra.mxu0 %v997
          %1079 = vmatpush.msra.mxu0 %v996
          %1080 = vmatpush.msra.mxu0 %v995
          %1081 = vmatpush.msra.mxu0 %v994
          %1082 = vmatpush.msra.mxu0 %v993
          %1083 = vmatpush.msra.mxu0 %v992
          %1084 = vmatpush.msra.mxu0 %v991
          %1085 = vmatpush.msra.mxu0 %v990
          %1086 = vmatpush.msra.mxu0 %v989
          %1087 = vmatpush.msra.mxu0 %v988
          %1088 = vmatpush.msra.mxu0 %v987
          %1089 = vmatpush.msra.mxu0 %v986
          %1090 = vmatpush.msra.mxu0 %v985
          %1091 = vmatmul.f32.gmra.mxu0 %v1010
          %v1092 = vpop.f32.mrf.mxu0
          %v1093 = vadd.f32 %v1073, %v1092
          %1094 = vdwg.mxu0
          %1095 = vst [vmem:[%s397] sm:$0x3] %v1093
        $region64: #{_lambda_.3} parent=39 // pred_fallthru
          _
        %p1096 = scmp.lt.s32.totalorder %s29, 3
        %s1097 = scalar_select %p1096, %s29, 3
        %s1098 = smul.addr %s1097, 2
        %s1099 = scalar_lea.vmem %s5, %s1098
        // Predicated region
        $region65: #{_lambda_.3} parent=39 // pred_check
          %p1100 = pneg %p187
        $region66: #{_lambda_.3} parent=39 // pred_check_branch
          %1102 = sbr.rel (%p1100) target = $region68
        $region67: #{_lambda_.3} parent=39 // pred_region
          _
        $region68: #{_lambda_.3} parent=39 // pred_fallthru
          _
      $region40: #{_lambda_.3} parent=5 // pred_fallthru
        _
      %p1103 = scmp.le.s32.totalorder 2, %s20
      // Predicated region
      $region69: #{_lambda_.3} parent=5 // pred_check
        %p1104 = pneg %p1103
      $region70: #{_lambda_.3} parent=5 // pred_check_branch
        %1106 = sbr.rel (%p1104) target = $region72
      $region71: #{_lambda_.3} parent=5 // pred_region
        %s1107 = ssub.s32 %s20, 2
        // Predicated region
        $region73: #{_lambda_.3} parent=71 // pred_check
          %p1108 = pneg %p193
        $region74: #{_lambda_.3} parent=71 // pred_check_branch
          %1110 = sbr.rel (%p1108) target = $region76
        $region75: #{_lambda_.3} parent=71 // pred_region
          %p1111 = scmp.lt.s32.totalorder %s31, 3
          %s1112 = scalar_select %p1111, %s31, 3
          %s1113 = smul.addr %s1112, 2
          %s1114 = scalar_lea.vmem %s5, %s1113
        $region76: #{_lambda_.3} parent=71 // pred_fallthru
          _
      $region72: #{_lambda_.3} parent=5 // pred_fallthru
        _
    $region6: #{_lambda_.3} parent=1 // loop_footer
      %s24 = sadd.s32 1, %s20
    $region7: #{_lambda_.3} parent=1 // loop_footer_branch
      %19 = sbr.rel target = $region3
    $region8: #{_lambda_.3} parent=1 // loop_exit
      _
    %1115 = vsyncpa [#allocation4], 1
    %s1116 = scalar_lea.sflag [#allocation4], 1
    %1117 = vsyncpa %s1116, 1
    %1118 = vsyncpa [#allocation6], 1
    %s1119 = scalar_lea.sflag [#allocation6], 1
    %1120 = vsyncpa %s1119, 1
    %1121 = vsyncpa [#allocation9], 1
    %s1122 = scalar_lea.sflag [#allocation9], 1
    %1123 = vsyncpa %s1122, 1

// kernel: _lambda_.2
$region0: #{_lambda_.2}
  #allocation0 [shape = 'u32[]', space=smem, size = 0x4, offset = 0x4, fixed_abs, tag = 'smem constant byte address 0x4 - core index']
  #allocation1 [shape = 'u32[72,128]{1,0:T(1,128)}', space=vmem, size = 0x9000, scoped, tag = 'internal scratch']
  %s0 = inlined_call_operand.vmem [shape: f32[2,25,48], index: 0, kind: input, shape index: {}]
  %s1 = inlined_call_operand.vmem [shape: f32[25,32], index: 1, kind: input, shape index: {}]
  %s2 = inlined_call_operand.hbm [shape: f32[1,48], index: 2, kind: input, shape index: {}]
  %s3 = inlined_call_operand.hbm [shape: f32[1,48], index: 3, kind: input, shape index: {}]
  %s4 = inlined_call_operand.vmem [shape: f32[48,32], index: 4, kind: input, shape index: {}]
  %s5 = inlined_call_operand.hbm [shape: f32[1,32], index: 5, kind: input, shape index: {}]
  %s6 = inlined_call_operand.hbm [shape: f32[1,32], index: 6, kind: input, shape index: {}]
  %s7 = inlined_call_operand.hbm [shape: f32[1,32], index: 7, kind: input, shape index: {}]
  %s8 = inlined_call_operand.hbm [shape: f32[2,1,32], index: 8, kind: input, shape index: {}]
  %s9 = inlined_call_operand.hbm [shape: f32[2,1,32], index: 9, kind: input, shape index: {}]
  %s10 = inlined_call_operand.hbm [shape: f32[2,32,384], index: 10, kind: input, shape index: {}]
  %s11 = inlined_call_operand.vmem [shape: f32[2,128,32], index: 11, kind: input, shape index: {}]
  %s12 = inlined_call_operand.hbm [shape: f32[2,1,32], index: 12, kind: input, shape index: {}]
  %s13 = inlined_call_operand.hbm [shape: f32[2,1,32], index: 13, kind: input, shape index: {}]
  %s14 = inlined_call_operand.hbm [shape: f32[2,32,64], index: 14, kind: input, shape index: {}]
  %s15 = inlined_call_operand.hbm [shape: f32[2,1,64], index: 15, kind: input, shape index: {}]
  %s16 = inlined_call_operand.vmem [shape: f32[2,64,32], index: 16, kind: input, shape index: {}]
  %s17 = inlined_call_operand.hbm [shape: f32[2,1,32], index: 17, kind: input, shape index: {}]
  %s18 = inlined_call_operand.hbm [shape: f32[1,32], index: 18, kind: input, shape index: {}]
  %s19 = inlined_call_operand.hbm [shape: f32[1,32], index: 19, kind: input, shape index: {}]
  %s20 = inlined_call_operand.hbm [shape: f32[32,1024], index: 20, kind: input, shape index: {}]
  %s21 = inlined_call_operand.hbm [shape: f32[1,1024], index: 21, kind: input, shape index: {}]
  %s22 = inlined_call_operand.vmem [shape: f32[2,1,1024], index: 22, kind: output, shape index: {}]
  %s23 = sld [smem:[#allocation0]]
  $region189: #{_lambda_.2} parent=0
    _
  %s25 = ssub.s32 1, %s23
  %s26 = scalar_select 0, %s25, %s23
  $region1: #{_lambda_.2} parent=0
    #allocation2 [shape = 'u8[512]{0}', space=vmem, size = 0x400, scoped, tag = 'input window, operand 2, single buffered']
    #allocation3 [shape = 's32[2]{0}', space=sflag, size = 0x8, scoped, tag = 'scoped memory for _lambda_.2']
    #allocation4 [shape = 'u8[512]{0}', space=vmem, size = 0x400, scoped, tag = 'input window, operand 3, single buffered']
    #allocation5 [shape = 's32[1]{0}', space=sflag, size = 0x4, scoped, tag = 'scoped memory for _lambda_.2']
    #allocation6 [shape = 'u8[512]{0}', space=vmem, size = 0x400, scoped, tag = 'input window, operand 5, single buffered']
    #allocation7 [shape = 'u8[512]{0}', space=vmem, size = 0x400, scoped, tag = 'input window, operand 6, single buffered']
    #allocation8 [shape = 's32[1]{0}', space=sflag, size = 0x4, scoped, tag = 'scoped memory for _lambda_.2']
    #allocation9 [shape = 'u8[512]{0}', space=vmem, size = 0x400, scoped, tag = 'input window, operand 7, single buffered']
    #allocation10 [shape = 'u8[1024]{0}', space=vmem, size = 0x400, scoped, tag = 'input window, operand 8, single buffered']
    #allocation11 [shape = 's32[1]{0}', space=sflag, size = 0x4, scoped, tag = 'scoped memory for _lambda_.2']
    #allocation12 [shape = 'u8[1024]{0}', space=vmem, size = 0x400, scoped, tag = 'input window, operand 9, single buffered']
    #allocation13 [shape = 'u8[98304]{0}', space=vmem, size = 0x18000, scoped, tag = 'input window, operand 10, single buffered']
    #allocation14 [shape = 's32[1]{0}', space=sflag, size = 0x4, scoped, tag = 'scoped memory for _lambda_.2']
    #allocation15 [shape = 'u8[1024]{0}', space=vmem, size = 0x400, scoped, tag = 'input window, operand 12, single buffered']
    #allocation16 [shape = 'u8[1024]{0}', space=vmem, size = 0x400, scoped, tag = 'input window, operand 13, single buffered']
    #allocation17 [shape = 's32[1]{0}', space=sflag, size = 0x4, scoped, tag = 'scoped memory for _lambda_.2']
    #allocation18 [shape = 'u8[32768]{0}', space=vmem, size = 0x8000, scoped, tag = 'input window, operand 14, single buffered']
    #allocation19 [shape = 'u8[1024]{0}', space=vmem, size = 0x400, scoped, tag = 'input window, operand 15, single buffered']
    #allocation20 [shape = 's32[1]{0}', space=sflag, size = 0x4, scoped, tag = 'scoped memory for _lambda_.2']
    #allocation21 [shape = 'u8[1024]{0}', space=vmem, size = 0x400, scoped, tag = 'input window, operand 17, single buffered']
    #allocation22 [shape = 'u8[512]{0}', space=vmem, size = 0x400, scoped, tag = 'input window, operand 18, single buffered']
    #allocation23 [shape = 's32[1]{0}', space=sflag, size = 0x4, scoped, tag = 'scoped memory for _lambda_.2']
    #allocation24 [shape = 'u8[512]{0}', space=vmem, size = 0x400, scoped, tag = 'input window, operand 19, single buffered']
    #allocation25 [shape = 'u8[131072]{0}', space=vmem, size = 0x20000, scoped, tag = 'input window, operand 20, single buffered']
    #allocation26 [shape = 's32[1]{0}', space=sflag, size = 0x4, scoped, tag = 'scoped memory for _lambda_.2']
    #allocation27 [shape = 'u8[4096]{0}', space=vmem, size = 0x1000, scoped, tag = 'input window, operand 21, single buffered']
    %27 = vsyncpa [#allocation3], 0
    %28 = vsyncpa [#allocation5], 0
    %29 = vsyncpa [#allocation8], 0
    %30 = vsyncpa [#allocation11], 0
    %31 = vsyncpa [#allocation14], 0
    %32 = vsyncpa [#allocation17], 0
    %33 = vsyncpa [#allocation20], 0
    %34 = vsyncpa [#allocation23], 0
    %35 = vsyncpa [#allocation26], 0
    loop: start=0, step=1, limit=4
    $region2: #{_lambda_.2} parent=1 // loop_pre_header
      _
    $region3: #{_lambda_.2} parent=1 // loop_header
      %s37 = sphi 0, %s41
      %p38 = scmp.ge.s32.totalorder %s37, 4
      %s47 = sphi 0, %s49
      %s50 = sphi 0, %s47
      %s51 = sphi 0, %s50
      %s67 = sphi 0, %s51
      %s71 = sphi 0, %s71
      %s73 = sphi 0, %s71
      %s74 = sphi 0, %s73
      %s88 = sphi 0, %s74
      %s92 = sphi 0, %s92
      %s94 = sphi 0, %s92
      %s95 = sphi 0, %s94
      %s109 = sphi 0, %s95
      %s113 = sphi 0, %s113
      %s115 = sphi 0, %s113
      %s116 = sphi 0, %s115
      %s130 = sphi 0, %s116
      %s134 = sphi 0, %s134
      %s136 = sphi 0, %s134
      %s137 = sphi 0, %s136
      %s151 = sphi 0, %s137
      %s155 = sphi 0, %s155
      %s157 = sphi 0, %s155
      %s158 = sphi 0, %s157
      %s172 = sphi 0, %s158
      %s176 = sphi 0, %s176
      %s178 = sphi 0, %s176
      %s179 = sphi 0, %s178
      %s193 = sphi 0, %s179
      %s197 = sphi 0, %s197
      %s199 = sphi 0, %s197
      %s200 = sphi 0, %s199
      %s214 = sphi 0, %s200
      %s218 = sphi 0, %s218
      %s220 = sphi 0, %s218
      %s221 = sphi 0, %s220
      %s235 = sphi 0, %s221
      %s239 = sphi 0, %s239
      %s241 = sphi 0, %s239
      %s242 = sphi 0, %s241
      %s256 = sphi 0, %s242
      %s260 = sphi 0, %s260
      %s262 = sphi 0, %s260
      %s263 = sphi 0, %s262
      %s277 = sphi 0, %s263
      %s281 = sphi 0, %s281
      %s283 = sphi 0, %s281
      %s284 = sphi 0, %s283
      %s298 = sphi 0, %s284
      %s302 = sphi 0, %s302
      %s304 = sphi 0, %s302
      %s305 = sphi 0, %s304
      %s319 = sphi 0, %s305
      %s323 = sphi 0, %s323
      %s325 = sphi 0, %s323
      %s326 = sphi 0, %s325
      %s340 = sphi 0, %s326
      %s344 = sphi 0, %s344
      %s346 = sphi 0, %s344
      %s347 = sphi 0, %s346
      %s361 = sphi 0, %s347
      %s365 = sphi 0, %s365
      %s367 = sphi 0, %s365
      %s368 = sphi 0, %s367
      %s382 = sphi 0, %s368
      %s386 = sphi 0, %s386
      %s388 = sphi 0, %s386
      %s389 = sphi 0, %s388
      %s403 = sphi 0, %s389
      %s407 = sphi 0, %s407
      %s409 = sphi 0, %s407
      %s410 = sphi 0, %s409
      %s424 = sphi 0, %s410
      %s428 = sphi 0, %s428
      %s430 = sphi 0, %s428
      %s431 = sphi 0, %s430
      %s445 = sphi 0, %s431
      %s449 = sphi 0, %s449
      %s451 = sphi 0, %s449
      %s452 = sphi 0, %s451
      %s466 = sphi 0, %s452
      %s470 = sphi 0, %s470
      %s472 = sphi 0, %s470
      %s473 = sphi 0, %s472
      %s487 = sphi 0, %s473
      %s491 = sphi 0, %s491
      %s493 = sphi 0, %s491
      %s494 = sphi 0, %s493
      %s508 = sphi 0, %s494
      %s514 = sphi 0, %s516
      %s517 = sphi 0, %s514
      %s518 = sphi 0, %s517
      %s534 = sphi 0, %s518
    $region4: #{_lambda_.2} parent=1 // loop_header_branch
      %40 = sbr.rel (%p38) target = $region8
    $region5: #{_lambda_.2} parent=1 // loop_body
      %s42 = ssub.s32 %s37, 1
      %s43 = ssub.s32 %s37, 2
      %s44 = sadd.s32 %s37, 1
      %s45 = ssub.s32 %s37, %s44
      %p46 = scmp.eq.s32.totalorder %s45, 0
      %s48 = sadd.s32 %s47, 1
      %s49 = scalar_select %p46, %s47, %s48
      %p52 = pneg %p46
      %p53 = scmp.eq.s32.totalorder %s37, 1
      %p54 = por %p52, %p53
      %p55 = scmp.ne.s32.totalorder %s47, %s50
      %p56 = scmp.eq.s32.totalorder %s37, 0
      %p57 = por %p55, %p56
      %p58 = scmp.ne.s32.totalorder %s47, %s50
      %p59 = scmp.eq.s32.totalorder %s42, 1
      %p60 = por %p58, %p59
      %p61 = scmp.ne.s32.totalorder %s50, %s51
      %p62 = scmp.eq.s32.totalorder %s42, 0
      %p63 = por %p61, %p62
      %p64 = scmp.ne.s32.totalorder %s50, %s51
      %p65 = scmp.eq.s32.totalorder %s43, 1
      %p66 = por %p64, %p65
      %p68 = scmp.ne.s32.totalorder %s51, %s67
      %p69 = scmp.eq.s32.totalorder %s43, 0
      %p70 = por %p68, %p69
      %s72 = sadd.s32 %s71, 1
      %p75 = scmp.eq.s32.totalorder %s37, 1
      %p76 = scmp.ne.s32.totalorder %s71, %s73
      %p77 = scmp.eq.s32.totalorder %s37, 0
      %p78 = por %p76, %p77
      %p79 = scmp.ne.s32.totalorder %s71, %s73
      %p80 = scmp.eq.s32.totalorder %s42, 1
      %p81 = por %p79, %p80
      %p82 = scmp.ne.s32.totalorder %s73, %s74
      %p83 = scmp.eq.s32.totalorder %s42, 0
      %p84 = por %p82, %p83
      %p85 = scmp.ne.s32.totalorder %s73, %s74
      %p86 = scmp.eq.s32.totalorder %s43, 1
      %p87 = por %p85, %p86
      %p89 = scmp.ne.s32.totalorder %s74, %s88
      %p90 = scmp.eq.s32.totalorder %s43, 0
      %p91 = por %p89, %p90
      %s93 = sadd.s32 %s92, 1
      %p96 = scmp.eq.s32.totalorder %s37, 1
      %p97 = scmp.ne.s32.totalorder %s92, %s94
      %p98 = scmp.eq.s32.totalorder %s37, 0
      %p99 = por %p97, %p98
      %p100 = scmp.ne.s32.totalorder %s92, %s94
      %p101 = scmp.eq.s32.totalorder %s42, 1
      %p102 = por %p100, %p101
      %p103 = scmp.ne.s32.totalorder %s94, %s95
      %p104 = scmp.eq.s32.totalorder %s42, 0
      %p105 = por %p103, %p104
      %p106 = scmp.ne.s32.totalorder %s94, %s95
      %p107 = scmp.eq.s32.totalorder %s43, 1
      %p108 = por %p106, %p107
      %p110 = scmp.ne.s32.totalorder %s95, %s109
      %p111 = scmp.eq.s32.totalorder %s43, 0
      %p112 = por %p110, %p111
      %s114 = sadd.s32 %s113, 1
      %p117 = scmp.eq.s32.totalorder %s37, 1
      %p118 = scmp.ne.s32.totalorder %s113, %s115
      %p119 = scmp.eq.s32.totalorder %s37, 0
      %p120 = por %p118, %p119
      %p121 = scmp.ne.s32.totalorder %s113, %s115
      %p122 = scmp.eq.s32.totalorder %s42, 1
      %p123 = por %p121, %p122
      %p124 = scmp.ne.s32.totalorder %s115, %s116
      %p125 = scmp.eq.s32.totalorder %s42, 0
      %p126 = por %p124, %p125
      %p127 = scmp.ne.s32.totalorder %s115, %s116
      %p128 = scmp.eq.s32.totalorder %s43, 1
      %p129 = por %p127, %p128
      %p131 = scmp.ne.s32.totalorder %s116, %s130
      %p132 = scmp.eq.s32.totalorder %s43, 0
      %p133 = por %p131, %p132
      %s135 = sadd.s32 %s134, 1
      %p138 = scmp.eq.s32.totalorder %s37, 1
      %p139 = scmp.ne.s32.totalorder %s134, %s136
      %p140 = scmp.eq.s32.totalorder %s37, 0
      %p141 = por %p139, %p140
      %p142 = scmp.ne.s32.totalorder %s134, %s136
      %p143 = scmp.eq.s32.totalorder %s42, 1
      %p144 = por %p142, %p143
      %p145 = scmp.ne.s32.totalorder %s136, %s137
      %p146 = scmp.eq.s32.totalorder %s42, 0
      %p147 = por %p145, %p146
      %p148 = scmp.ne.s32.totalorder %s136, %s137
      %p149 = scmp.eq.s32.totalorder %s43, 1
      %p150 = por %p148, %p149
      %p152 = scmp.ne.s32.totalorder %s137, %s151
      %p153 = scmp.eq.s32.totalorder %s43, 0
      %p154 = por %p152, %p153
      %s156 = sadd.s32 %s155, 1
      %p159 = scmp.eq.s32.totalorder %s37, 1
      %p160 = scmp.ne.s32.totalorder %s155, %s157
      %p161 = scmp.eq.s32.totalorder %s37, 0
      %p162 = por %p160, %p161
      %p163 = scmp.ne.s32.totalorder %s155, %s157
      %p164 = scmp.eq.s32.totalorder %s42, 1
      %p165 = por %p163, %p164
      %p166 = scmp.ne.s32.totalorder %s157, %s158
      %p167 = scmp.eq.s32.totalorder %s42, 0
      %p168 = por %p166, %p167
      %p169 = scmp.ne.s32.totalorder %s157, %s158
      %p170 = scmp.eq.s32.totalorder %s43, 1
      %p171 = por %p169, %p170
      %p173 = scmp.ne.s32.totalorder %s158, %s172
      %p174 = scmp.eq.s32.totalorder %s43, 0
      %p175 = por %p173, %p174
      %s177 = sadd.s32 %s176, 1
      %p180 = scmp.eq.s32.totalorder %s37, 1
      %p181 = scmp.ne.s32.totalorder %s176, %s178
      %p182 = scmp.eq.s32.totalorder %s37, 0
      %p183 = por %p181, %p182
      %p184 = scmp.ne.s32.totalorder %s176, %s178
      %p185 = scmp.eq.s32.totalorder %s42, 1
      %p186 = por %p184, %p185
      %p187 = scmp.ne.s32.totalorder %s178, %s179
      %p188 = scmp.eq.s32.totalorder %s42, 0
      %p189 = por %p187, %p188
      %p190 = scmp.ne.s32.totalorder %s178, %s179
      %p191 = scmp.eq.s32.totalorder %s43, 1
      %p192 = por %p190, %p191
      %p194 = scmp.ne.s32.totalorder %s179, %s193
      %p195 = scmp.eq.s32.totalorder %s43, 0
      %p196 = por %p194, %p195
      %s198 = sadd.s32 %s197, 1
      %p201 = scmp.eq.s32.totalorder %s37, 1
      %p202 = scmp.ne.s32.totalorder %s197, %s199
      %p203 = scmp.eq.s32.totalorder %s37, 0
      %p204 = por %p202, %p203
      %p205 = scmp.ne.s32.totalorder %s197, %s199
      %p206 = scmp.eq.s32.totalorder %s42, 1
      %p207 = por %p205, %p206
      %p208 = scmp.ne.s32.totalorder %s199, %s200
      %p209 = scmp.eq.s32.totalorder %s42, 0
      %p210 = por %p208, %p209
      %p211 = scmp.ne.s32.totalorder %s199, %s200
      %p212 = scmp.eq.s32.totalorder %s43, 1
      %p213 = por %p211, %p212
      %p215 = scmp.ne.s32.totalorder %s200, %s214
      %p216 = scmp.eq.s32.totalorder %s43, 0
      %p217 = por %p215, %p216
      %s219 = sadd.s32 %s218, 1
      %p222 = scmp.eq.s32.totalorder %s37, 1
      %p223 = scmp.ne.s32.totalorder %s218, %s220
      %p224 = scmp.eq.s32.totalorder %s37, 0
      %p225 = por %p223, %p224
      %p226 = scmp.ne.s32.totalorder %s218, %s220
      %p227 = scmp.eq.s32.totalorder %s42, 1
      %p228 = por %p226, %p227
      %p229 = scmp.ne.s32.totalorder %s220, %s221
      %p230 = scmp.eq.s32.totalorder %s42, 0
      %p231 = por %p229, %p230
      %p232 = scmp.ne.s32.totalorder %s220, %s221
      %p233 = scmp.eq.s32.totalorder %s43, 1
      %p234 = por %p232, %p233
      %p236 = scmp.ne.s32.totalorder %s221, %s235
      %p237 = scmp.eq.s32.totalorder %s43, 0
      %p238 = por %p236, %p237
      %s240 = sadd.s32 %s239, 1
      %p243 = scmp.eq.s32.totalorder %s37, 1
      %p244 = scmp.ne.s32.totalorder %s239, %s241
      %p245 = scmp.eq.s32.totalorder %s37, 0
      %p246 = por %p244, %p245
      %p247 = scmp.ne.s32.totalorder %s239, %s241
      %p248 = scmp.eq.s32.totalorder %s42, 1
      %p249 = por %p247, %p248
      %p250 = scmp.ne.s32.totalorder %s241, %s242
      %p251 = scmp.eq.s32.totalorder %s42, 0
      %p252 = por %p250, %p251
      %p253 = scmp.ne.s32.totalorder %s241, %s242
      %p254 = scmp.eq.s32.totalorder %s43, 1
      %p255 = por %p253, %p254
      %p257 = scmp.ne.s32.totalorder %s242, %s256
      %p258 = scmp.eq.s32.totalorder %s43, 0
      %p259 = por %p257, %p258
      %s261 = sadd.s32 %s260, 1
      %p264 = scmp.eq.s32.totalorder %s37, 1
      %p265 = scmp.ne.s32.totalorder %s260, %s262
      %p266 = scmp.eq.s32.totalorder %s37, 0
      %p267 = por %p265, %p266
      %p268 = scmp.ne.s32.totalorder %s260, %s262
      %p269 = scmp.eq.s32.totalorder %s42, 1
      %p270 = por %p268, %p269
      %p271 = scmp.ne.s32.totalorder %s262, %s263
      %p272 = scmp.eq.s32.totalorder %s42, 0
      %p273 = por %p271, %p272
      %p274 = scmp.ne.s32.totalorder %s262, %s263
      %p275 = scmp.eq.s32.totalorder %s43, 1
      %p276 = por %p274, %p275
      %p278 = scmp.ne.s32.totalorder %s263, %s277
      %p279 = scmp.eq.s32.totalorder %s43, 0
      %p280 = por %p278, %p279
      %s282 = sadd.s32 %s281, 1
      %p285 = scmp.eq.s32.totalorder %s37, 1
      %p286 = scmp.ne.s32.totalorder %s281, %s283
      %p287 = scmp.eq.s32.totalorder %s37, 0
      %p288 = por %p286, %p287
      %p289 = scmp.ne.s32.totalorder %s281, %s283
      %p290 = scmp.eq.s32.totalorder %s42, 1
      %p291 = por %p289, %p290
      %p292 = scmp.ne.s32.totalorder %s283, %s284
      %p293 = scmp.eq.s32.totalorder %s42, 0
      %p294 = por %p292, %p293
      %p295 = scmp.ne.s32.totalorder %s283, %s284
      %p296 = scmp.eq.s32.totalorder %s43, 1
      %p297 = por %p295, %p296
      %p299 = scmp.ne.s32.totalorder %s284, %s298
      %p300 = scmp.eq.s32.totalorder %s43, 0
      %p301 = por %p299, %p300
      %s303 = sadd.s32 %s302, 1
      %p306 = scmp.eq.s32.totalorder %s37, 1
      %p307 = scmp.ne.s32.totalorder %s302, %s304
      %p308 = scmp.eq.s32.totalorder %s37, 0
      %p309 = por %p307, %p308
      %p310 = scmp.ne.s32.totalorder %s302, %s304
      %p311 = scmp.eq.s32.totalorder %s42, 1
      %p312 = por %p310, %p311
      %p313 = scmp.ne.s32.totalorder %s304, %s305
      %p314 = scmp.eq.s32.totalorder %s42, 0
      %p315 = por %p313, %p314
      %p316 = scmp.ne.s32.totalorder %s304, %s305
      %p317 = scmp.eq.s32.totalorder %s43, 1
      %p318 = por %p316, %p317
      %p320 = scmp.ne.s32.totalorder %s305, %s319
      %p321 = scmp.eq.s32.totalorder %s43, 0
      %p322 = por %p320, %p321
      %s324 = sadd.s32 %s323, 1
      %p327 = scmp.eq.s32.totalorder %s37, 1
      %p328 = scmp.ne.s32.totalorder %s323, %s325
      %p329 = scmp.eq.s32.totalorder %s37, 0
      %p330 = por %p328, %p329
      %p331 = scmp.ne.s32.totalorder %s323, %s325
      %p332 = scmp.eq.s32.totalorder %s42, 1
      %p333 = por %p331, %p332
      %p334 = scmp.ne.s32.totalorder %s325, %s326
      %p335 = scmp.eq.s32.totalorder %s42, 0
      %p336 = por %p334, %p335
      %p337 = scmp.ne.s32.totalorder %s325, %s326
      %p338 = scmp.eq.s32.totalorder %s43, 1
      %p339 = por %p337, %p338
      %p341 = scmp.ne.s32.totalorder %s326, %s340
      %p342 = scmp.eq.s32.totalorder %s43, 0
      %p343 = por %p341, %p342
      %s345 = sadd.s32 %s344, 1
      %p348 = scmp.eq.s32.totalorder %s37, 1
      %p349 = scmp.ne.s32.totalorder %s344, %s346
      %p350 = scmp.eq.s32.totalorder %s37, 0
      %p351 = por %p349, %p350
      %p352 = scmp.ne.s32.totalorder %s344, %s346
      %p353 = scmp.eq.s32.totalorder %s42, 1
      %p354 = por %p352, %p353
      %p355 = scmp.ne.s32.totalorder %s346, %s347
      %p356 = scmp.eq.s32.totalorder %s42, 0
      %p357 = por %p355, %p356
      %p358 = scmp.ne.s32.totalorder %s346, %s347
      %p359 = scmp.eq.s32.totalorder %s43, 1
      %p360 = por %p358, %p359
      %p362 = scmp.ne.s32.totalorder %s347, %s361
      %p363 = scmp.eq.s32.totalorder %s43, 0
      %p364 = por %p362, %p363
      %s366 = sadd.s32 %s365, 1
      %p369 = scmp.eq.s32.totalorder %s37, 1
      %p370 = scmp.ne.s32.totalorder %s365, %s367
      %p371 = scmp.eq.s32.totalorder %s37, 0
      %p372 = por %p370, %p371
      %p373 = scmp.ne.s32.totalorder %s365, %s367
      %p374 = scmp.eq.s32.totalorder %s42, 1
      %p375 = por %p373, %p374
      %p376 = scmp.ne.s32.totalorder %s367, %s368
      %p377 = scmp.eq.s32.totalorder %s42, 0
      %p378 = por %p376, %p377
      %p379 = scmp.ne.s32.totalorder %s367, %s368
      %p380 = scmp.eq.s32.totalorder %s43, 1
      %p381 = por %p379, %p380
      %p383 = scmp.ne.s32.totalorder %s368, %s382
      %p384 = scmp.eq.s32.totalorder %s43, 0
      %p385 = por %p383, %p384
      %s387 = sadd.s32 %s386, 1
      %p390 = scmp.eq.s32.totalorder %s37, 1
      %p391 = scmp.ne.s32.totalorder %s386, %s388
      %p392 = scmp.eq.s32.totalorder %s37, 0
      %p393 = por %p391, %p392
      %p394 = scmp.ne.s32.totalorder %s386, %s388
      %p395 = scmp.eq.s32.totalorder %s42, 1
      %p396 = por %p394, %p395
      %p397 = scmp.ne.s32.totalorder %s388, %s389
      %p398 = scmp.eq.s32.totalorder %s42, 0
      %p399 = por %p397, %p398
      %p400 = scmp.ne.s32.totalorder %s388, %s389
      %p401 = scmp.eq.s32.totalorder %s43, 1
      %p402 = por %p400, %p401
      %p404 = scmp.ne.s32.totalorder %s389, %s403
      %p405 = scmp.eq.s32.totalorder %s43, 0
      %p406 = por %p404, %p405
      %s408 = sadd.s32 %s407, 1
      %p411 = scmp.eq.s32.totalorder %s37, 1
      %p412 = scmp.ne.s32.totalorder %s407, %s409
      %p413 = scmp.eq.s32.totalorder %s37, 0
      %p414 = por %p412, %p413
      %p415 = scmp.ne.s32.totalorder %s407, %s409
      %p416 = scmp.eq.s32.totalorder %s42, 1
      %p417 = por %p415, %p416
      %p418 = scmp.ne.s32.totalorder %s409, %s410
      %p419 = scmp.eq.s32.totalorder %s42, 0
      %p420 = por %p418, %p419
      %p421 = scmp.ne.s32.totalorder %s409, %s410
      %p422 = scmp.eq.s32.totalorder %s43, 1
      %p423 = por %p421, %p422
      %p425 = scmp.ne.s32.totalorder %s410, %s424
      %p426 = scmp.eq.s32.totalorder %s43, 0
      %p427 = por %p425, %p426
      %s429 = sadd.s32 %s428, 1
      %p432 = scmp.eq.s32.totalorder %s37, 1
      %p433 = scmp.ne.s32.totalorder %s428, %s430
      %p434 = scmp.eq.s32.totalorder %s37, 0
      %p435 = por %p433, %p434
      %p436 = scmp.ne.s32.totalorder %s428, %s430
      %p437 = scmp.eq.s32.totalorder %s42, 1
      %p438 = por %p436, %p437
      %p439 = scmp.ne.s32.totalorder %s430, %s431
      %p440 = scmp.eq.s32.totalorder %s42, 0
      %p441 = por %p439, %p440
      %p442 = scmp.ne.s32.totalorder %s430, %s431
      %p443 = scmp.eq.s32.totalorder %s43, 1
      %p444 = por %p442, %p443
      %p446 = scmp.ne.s32.totalorder %s431, %s445
      %p447 = scmp.eq.s32.totalorder %s43, 0
      %p448 = por %p446, %p447
      %s450 = sadd.s32 %s449, 1
      %p453 = scmp.eq.s32.totalorder %s37, 1
      %p454 = scmp.ne.s32.totalorder %s449, %s451
      %p455 = scmp.eq.s32.totalorder %s37, 0
      %p456 = por %p454, %p455
      %p457 = scmp.ne.s32.totalorder %s449, %s451
      %p458 = scmp.eq.s32.totalorder %s42, 1
      %p459 = por %p457, %p458
      %p460 = scmp.ne.s32.totalorder %s451, %s452
      %p461 = scmp.eq.s32.totalorder %s42, 0
      %p462 = por %p460, %p461
      %p463 = scmp.ne.s32.totalorder %s451, %s452
      %p464 = scmp.eq.s32.totalorder %s43, 1
      %p465 = por %p463, %p464
      %p467 = scmp.ne.s32.totalorder %s452, %s466
      %p468 = scmp.eq.s32.totalorder %s43, 0
      %p469 = por %p467, %p468
      %s471 = sadd.s32 %s470, 1
      %p474 = scmp.eq.s32.totalorder %s37, 1
      %p475 = scmp.ne.s32.totalorder %s470, %s472
      %p476 = scmp.eq.s32.totalorder %s37, 0
      %p477 = por %p475, %p476
      %p478 = scmp.ne.s32.totalorder %s470, %s472
      %p479 = scmp.eq.s32.totalorder %s42, 1
      %p480 = por %p478, %p479
      %p481 = scmp.ne.s32.totalorder %s472, %s473
      %p482 = scmp.eq.s32.totalorder %s42, 0
      %p483 = por %p481, %p482
      %p484 = scmp.ne.s32.totalorder %s472, %s473
      %p485 = scmp.eq.s32.totalorder %s43, 1
      %p486 = por %p484, %p485
      %p488 = scmp.ne.s32.totalorder %s473, %s487
      %p489 = scmp.eq.s32.totalorder %s43, 0
      %p490 = por %p488, %p489
      %s492 = sadd.s32 %s491, 1
      %p495 = scmp.eq.s32.totalorder %s37, 1
      %p496 = scmp.ne.s32.totalorder %s491, %s493
      %p497 = scmp.eq.s32.totalorder %s37, 0
      %p498 = por %p496, %p497
      %p499 = scmp.ne.s32.totalorder %s491, %s493
      %p500 = scmp.eq.s32.totalorder %s42, 1
      %p501 = por %p499, %p500
      %p502 = scmp.ne.s32.totalorder %s493, %s494
      %p503 = scmp.eq.s32.totalorder %s42, 0
      %p504 = por %p502, %p503
      %p505 = scmp.ne.s32.totalorder %s493, %s494
      %p506 = scmp.eq.s32.totalorder %s43, 1
      %p507 = por %p505, %p506
      %p509 = scmp.ne.s32.totalorder %s494, %s508
      %p510 = scmp.eq.s32.totalorder %s43, 0
      %p511 = por %p509, %p510
      %s512 = ssub.s32 %s37, %s44
      %p513 = scmp.eq.s32.totalorder %s512, 0
      %s515 = sadd.s32 %s514, 1
      %s516 = scalar_select %p513, %s514, %s515
      %p519 = pneg %p513
      %p520 = scmp.eq.s32.totalorder %s37, 1
      %p521 = por %p519, %p520
      %p522 = scmp.ne.s32.totalorder %s514, %s517
      %p523 = scmp.eq.s32.totalorder %s37, 0
      %p524 = por %p522, %p523
      %p525 = scmp.ne.s32.totalorder %s514, %s517
      %p526 = scmp.eq.s32.totalorder %s42, 1
      %p527 = por %p525, %p526
      %p528 = scmp.ne.s32.totalorder %s517, %s518
      %p529 = scmp.eq.s32.totalorder %s42, 0
      %p530 = por %p528, %p529
      %p531 = scmp.ne.s32.totalorder %s517, %s518
      %p532 = scmp.eq.s32.totalorder %s43, 1
      %p533 = por %p531, %p532
      %p535 = scmp.ne.s32.totalorder %s518, %s534
      %p536 = scmp.eq.s32.totalorder %s43, 0
      %p537 = por %p535, %p536
      %p538 = scmp.le.s32.totalorder 1, %s37
      %p539 = scmp.lt.s32.totalorder %s37, 3
      %p540 = pnand %p538, %p539
      %p541 = pneg %p540
      // Predicated region
      $region9: #{_lambda_.2} parent=5 // pred_check
        _
      $region10: #{_lambda_.2} parent=5 // pred_check_branch
        %543 = sbr.rel (%p540) target = $region12
      $region11: #{_lambda_.2} parent=5 // pred_region
        %s544 = ssub.s32 %s37, 1
        // Predicated region
        $region13: #{_lambda_.2} parent=11 // pred_check
          %p545 = pneg %p84
        $region14: #{_lambda_.2} parent=11 // pred_check_branch
          %547 = sbr.rel (%p545) target = $region16
        $region15: #{_lambda_.2} parent=11 // pred_region
          _
        $region16: #{_lambda_.2} parent=11 // pred_fallthru
          _
        // Predicated region
        $region17: #{_lambda_.2} parent=11 // pred_check
          %p548 = pneg %p105
        $region18: #{_lambda_.2} parent=11 // pred_check_branch
          %550 = sbr.rel (%p548) target = $region20
        $region19: #{_lambda_.2} parent=11 // pred_region
          %552 = vsyncadd [#allocation3], 0
          %s554 = sshll.u32 %s2, 4
          %s555 = int_to_ptr.hbm [resolvable:$true] %s554
          %s556 = sshll.u32 [#allocation2], 4
          %s557 = int_to_ptr.vmem [resolvable:$true] %s556
          %559 = dma.hbm_to_vmem [thread:$0]  %s555, 16, %s557, [#allocation3]
        $region20: #{_lambda_.2} parent=11 // pred_fallthru
          _
        // Predicated region
        $region21: #{_lambda_.2} parent=11 // pred_check
          %p560 = pneg %p126
        $region22: #{_lambda_.2} parent=11 // pred_check_branch
          %562 = sbr.rel (%p560) target = $region24
        $region23: #{_lambda_.2} parent=11 // pred_region
          %564 = vsyncadd [#allocation5], 0
          %s566 = sshll.u32 %s3, 4
          %s567 = int_to_ptr.hbm [resolvable:$true] %s566
          %s568 = sshll.u32 [#allocation4], 4
          %s569 = int_to_ptr.vmem [resolvable:$true] %s568
          %571 = dma.hbm_to_vmem [thread:$0]  %s567, 16, %s569, [#allocation5]
        $region24: #{_lambda_.2} parent=11 // pred_fallthru
          _
        // Predicated region
        $region25: #{_lambda_.2} parent=11 // pred_check
          %p572 = pneg %p147
        $region26: #{_lambda_.2} parent=11 // pred_check_branch
          %574 = sbr.rel (%p572) target = $region28
        $region27: #{_lambda_.2} parent=11 // pred_region
          _
        $region28: #{_lambda_.2} parent=11 // pred_fallthru
          _
        // Predicated region
        $region29: #{_lambda_.2} parent=11 // pred_check
          %p575 = pneg %p168
        $region30: #{_lambda_.2} parent=11 // pred_check_branch
          %577 = sbr.rel (%p575) target = $region32
        $region31: #{_lambda_.2} parent=11 // pred_region
          %579 = vsyncadd [#allocation5], 0
          %s581 = sshll.u32 %s5, 4
          %s582 = int_to_ptr.hbm [resolvable:$true] %s581
          %s583 = sshll.u32 [#allocation6], 4
          %s584 = int_to_ptr.vmem [resolvable:$true] %s583
          %586 = dma.hbm_to_vmem [thread:$0]  %s582, 16, %s584, [#allocation5]
        $region32: #{_lambda_.2} parent=11 // pred_fallthru
          _
        // Predicated region
        $region33: #{_lambda_.2} parent=11 // pred_check
          %p587 = pneg %p189
        $region34: #{_lambda_.2} parent=11 // pred_check_branch
          %589 = sbr.rel (%p587) target = $region36
        $region35: #{_lambda_.2} parent=11 // pred_region
          %591 = vsyncadd [#allocation8], 0
          %s593 = sshll.u32 %s6, 4
          %s594 = int_to_ptr.hbm [resolvable:$true] %s593
          %s595 = sshll.u32 [#allocation7], 4
          %s596 = int_to_ptr.vmem [resolvable:$true] %s595
          %598 = dma.hbm_to_vmem [thread:$0]  %s594, 16, %s596, [#allocation8]
        $region36: #{_lambda_.2} parent=11 // pred_fallthru
          _
        // Predicated region
        $region37: #{_lambda_.2} parent=11 // pred_check
          %p599 = pneg %p210
        $region38: #{_lambda_.2} parent=11 // pred_check_branch
          %601 = sbr.rel (%p599) target = $region40
        $region39: #{_lambda_.2} parent=11 // pred_region
          %603 = vsyncadd [#allocation8], 0
          %s605 = sshll.u32 %s7, 4
          %s606 = int_to_ptr.hbm [resolvable:$true] %s605
          %s607 = sshll.u32 [#allocation9], 4
          %s608 = int_to_ptr.vmem [resolvable:$true] %s607
          %610 = dma.hbm_to_vmem [thread:$0]  %s606, 16, %s608, [#allocation8]
        $region40: #{_lambda_.2} parent=11 // pred_fallthru
          _
        // Predicated region
        $region41: #{_lambda_.2} parent=11 // pred_check
          %p611 = pneg %p231
        $region42: #{_lambda_.2} parent=11 // pred_check_branch
          %613 = sbr.rel (%p611) target = $region44
        $region43: #{_lambda_.2} parent=11 // pred_region
          %615 = vsyncadd [#allocation11], 0
          %s616 = sshll.u32 %s8, 4
          %s617 = int_to_ptr.hbm [resolvable:$true] %s616
          %s618 = sshll.u32 [#allocation10], 4
          %s619 = int_to_ptr.vmem [resolvable:$true] %s618
          %624 = dma.hbm_to_vmem [thread:$0]  %s617, 32, %s619, [#allocation11], 16, 16, 1
        $region44: #{_lambda_.2} parent=11 // pred_fallthru
          _
        // Predicated region
        $region45: #{_lambda_.2} parent=11 // pred_check
          %p625 = pneg %p252
        $region46: #{_lambda_.2} parent=11 // pred_check_branch
          %627 = sbr.rel (%p625) target = $region48
        $region47: #{_lambda_.2} parent=11 // pred_region
          %629 = vsyncadd [#allocation11], 0
          %s630 = sshll.u32 %s9, 4
          %s631 = int_to_ptr.hbm [resolvable:$true] %s630
          %s632 = sshll.u32 [#allocation12], 4
          %s633 = int_to_ptr.vmem [resolvable:$true] %s632
          %638 = dma.hbm_to_vmem [thread:$0]  %s631, 32, %s633, [#allocation11], 16, 16, 1
        $region48: #{_lambda_.2} parent=11 // pred_fallthru
          _
        // Predicated region
        $region49: #{_lambda_.2} parent=11 // pred_check
          %p639 = pneg %p273
        $region50: #{_lambda_.2} parent=11 // pred_check_branch
          %641 = sbr.rel (%p639) target = $region52
        $region51: #{_lambda_.2} parent=11 // pred_region
          %643 = vsyncadd [#allocation14], 0
          %s644 = sshll.u32 %s10, 4
          %s645 = int_to_ptr.hbm [resolvable:$true] %s644
          %s646 = sshll.u32 [#allocation13], 4
          %s647 = int_to_ptr.vmem [resolvable:$true] %s646
          %652 = dma.hbm_to_vmem [thread:$0]  %s645, 3072, %s647, [#allocation14], 384, 384, 24
        $region52: #{_lambda_.2} parent=11 // pred_fallthru
          _
        // Predicated region
        $region53: #{_lambda_.2} parent=11 // pred_check
          %p653 = pneg %p294
        $region54: #{_lambda_.2} parent=11 // pred_check_branch
          %655 = sbr.rel (%p653) target = $region56
        $region55: #{_lambda_.2} parent=11 // pred_region
          _
        $region56: #{_lambda_.2} parent=11 // pred_fallthru
          _
        // Predicated region
        $region57: #{_lambda_.2} parent=11 // pred_check
          %p656 = pneg %p315
        $region58: #{_lambda_.2} parent=11 // pred_check_branch
          %658 = sbr.rel (%p656) target = $region60
        $region59: #{_lambda_.2} parent=11 // pred_region
          %660 = vsyncadd [#allocation14], 0
          %s661 = sshll.u32 %s12, 4
          %s662 = int_to_ptr.hbm [resolvable:$true] %s661
          %s663 = sshll.u32 [#allocation15], 4
          %s664 = int_to_ptr.vmem [resolvable:$true] %s663
          %669 = dma.hbm_to_vmem [thread:$0]  %s662, 32, %s664, [#allocation14], 16, 16, 1
        $region60: #{_lambda_.2} parent=11 // pred_fallthru
          _
        // Predicated region
        $region61: #{_lambda_.2} parent=11 // pred_check
          %p670 = pneg %p336
        $region62: #{_lambda_.2} parent=11 // pred_check_branch
          %672 = sbr.rel (%p670) target = $region64
        $region63: #{_lambda_.2} parent=11 // pred_region
          %674 = vsyncadd [#allocation17], 0
          %s675 = sshll.u32 %s13, 4
          %s676 = int_to_ptr.hbm [resolvable:$true] %s675
          %s677 = sshll.u32 [#allocation16], 4
          %s678 = int_to_ptr.vmem [resolvable:$true] %s677
          %683 = dma.hbm_to_vmem [thread:$0]  %s676, 32, %s678, [#allocation17], 16, 16, 1
        $region64: #{_lambda_.2} parent=11 // pred_fallthru
          _
        // Predicated region
        $region65: #{_lambda_.2} parent=11 // pred_check
          %p684 = pneg %p357
        $region66: #{_lambda_.2} parent=11 // pred_check_branch
          %686 = sbr.rel (%p684) target = $region68
        $region67: #{_lambda_.2} parent=11 // pred_region
          %688 = vsyncadd [#allocation17], 0
          %s689 = sshll.u32 %s14, 4
          %s690 = int_to_ptr.hbm [resolvable:$true] %s689
          %s691 = sshll.u32 [#allocation18], 4
          %s692 = int_to_ptr.vmem [resolvable:$true] %s691
          %697 = dma.hbm_to_vmem [thread:$0]  %s690, 1024, %s692, [#allocation17], 128, 128, 8
        $region68: #{_lambda_.2} parent=11 // pred_fallthru
          _
        // Predicated region
        $region69: #{_lambda_.2} parent=11 // pred_check
          %p698 = pneg %p378
        $region70: #{_lambda_.2} parent=11 // pred_check_branch
          %700 = sbr.rel (%p698) target = $region72
        $region71: #{_lambda_.2} parent=11 // pred_region
          %702 = vsyncadd [#allocation20], 0
          %s703 = sshll.u32 %s15, 4
          %s704 = int_to_ptr.hbm [resolvable:$true] %s703
          %s705 = sshll.u32 [#allocation19], 4
          %s706 = int_to_ptr.vmem [resolvable:$true] %s705
          %711 = dma.hbm_to_vmem [thread:$0]  %s704, 32, %s706, [#allocation20], 16, 16, 1
        $region72: #{_lambda_.2} parent=11 // pred_fallthru
          _
        // Predicated region
        $region73: #{_lambda_.2} parent=11 // pred_check
          %p712 = pneg %p399
        $region74: #{_lambda_.2} parent=11 // pred_check_branch
          %714 = sbr.rel (%p712) target = $region76
        $region75: #{_lambda_.2} parent=11 // pred_region
          _
        $region76: #{_lambda_.2} parent=11 // pred_fallthru
          _
        // Predicated region
        $region77: #{_lambda_.2} parent=11 // pred_check
          %p715 = pneg %p420
        $region78: #{_lambda_.2} parent=11 // pred_check_branch
          %717 = sbr.rel (%p715) target = $region80
        $region79: #{_lambda_.2} parent=11 // pred_region
          %719 = vsyncadd [#allocation20], 0
          %s720 = sshll.u32 %s17, 4
          %s721 = int_to_ptr.hbm [resolvable:$true] %s720
          %s722 = sshll.u32 [#allocation21], 4
          %s723 = int_to_ptr.vmem [resolvable:$true] %s722
          %728 = dma.hbm_to_vmem [thread:$0]  %s721, 32, %s723, [#allocation20], 16, 16, 1
        $region80: #{_lambda_.2} parent=11 // pred_fallthru
          _
        // Predicated region
        $region81: #{_lambda_.2} parent=11 // pred_check
          %p729 = pneg %p441
        $region82: #{_lambda_.2} parent=11 // pred_check_branch
          %731 = sbr.rel (%p729) target = $region84
        $region83: #{_lambda_.2} parent=11 // pred_region
          %733 = vsyncadd [#allocation23], 0
          %s735 = sshll.u32 %s18, 4
          %s736 = int_to_ptr.hbm [resolvable:$true] %s735
          %s737 = sshll.u32 [#allocation22], 4
          %s738 = int_to_ptr.vmem [resolvable:$true] %s737
          %740 = dma.hbm_to_vmem [thread:$0]  %s736, 16, %s738, [#allocation23]
        $region84: #{_lambda_.2} parent=11 // pred_fallthru
          _
        // Predicated region
        $region85: #{_lambda_.2} parent=11 // pred_check
          %p741 = pneg %p462
        $region86: #{_lambda_.2} parent=11 // pred_check_branch
          %743 = sbr.rel (%p741) target = $region88
        $region87: #{_lambda_.2} parent=11 // pred_region
          %745 = vsyncadd [#allocation23], 0
          %s747 = sshll.u32 %s19, 4
          %s748 = int_to_ptr.hbm [resolvable:$true] %s747
          %s749 = sshll.u32 [#allocation24], 4
          %s750 = int_to_ptr.vmem [resolvable:$true] %s749
          %752 = dma.hbm_to_vmem [thread:$0]  %s748, 16, %s750, [#allocation23]
        $region88: #{_lambda_.2} parent=11 // pred_fallthru
          _
        // Predicated region
        $region89: #{_lambda_.2} parent=11 // pred_check
          %p753 = pneg %p483
        $region90: #{_lambda_.2} parent=11 // pred_check_branch
          %755 = sbr.rel (%p753) target = $region92
        $region91: #{_lambda_.2} parent=11 // pred_region
          %757 = vsyncadd [#allocation26], 0
          %s758 = sshll.u32 %s20, 4
          %s759 = int_to_ptr.hbm [resolvable:$true] %s758
          %s760 = sshll.u32 [#allocation25], 4
          %s761 = int_to_ptr.vmem [resolvable:$true] %s760
          %766 = dma.hbm_to_vmem [thread:$0]  %s759, 4096, %s761, [#allocation26], 1024, 1024, 64
        $region92: #{_lambda_.2} parent=11 // pred_fallthru
          _
        // Predicated region
        $region93: #{_lambda_.2} parent=11 // pred_check
          %p767 = pneg %p504
        $region94: #{_lambda_.2} parent=11 // pred_check_branch
          %769 = sbr.rel (%p767) target = $region96
        $region95: #{_lambda_.2} parent=11 // pred_region
          %771 = vsyncadd [#allocation26], 0
          %s773 = sshll.u32 %s21, 4
          %s774 = int_to_ptr.hbm [resolvable:$true] %s773
          %s775 = sshll.u32 [#allocation27], 4
          %s776 = int_to_ptr.vmem [resolvable:$true] %s775
          %778 = dma.hbm_to_vmem [thread:$0]  %s774, 128, %s776, [#allocation26]
        $region96: #{_lambda_.2} parent=11 // pred_fallthru
          _
      $region12: #{_lambda_.2} parent=5 // pred_fallthru
        _
      %p779 = scmp.lt.s32.totalorder %s37, 2
      // Predicated region
      $region97: #{_lambda_.2} parent=5 // pred_check
        %p780 = pneg %p779
      $region98: #{_lambda_.2} parent=5 // pred_check_branch
        %782 = sbr.rel (%p780) target = $region100
      $region99: #{_lambda_.2} parent=5 // pred_region
        // Predicated region
        $region101: #{_lambda_.2} parent=99 // pred_check
          %p783 = pneg %p57
        $region102: #{_lambda_.2} parent=99 // pred_check_branch
          %785 = sbr.rel (%p783) target = $region104
        $region103: #{_lambda_.2} parent=99 // pred_region
          %p786 = scmp.lt.s32.totalorder %s37, 1
          %s787 = scalar_select %p786, %s37, 1
          %s788 = smul.addr %s787, 4
          %s789 = smul.addr %s788, 8
          %s790 = scalar_lea.vmem %s0, %s789
        $region104: #{_lambda_.2} parent=99 // pred_fallthru
          _
      $region100: #{_lambda_.2} parent=5 // pred_fallthru
        _
      %p791 = scmp.le.s32.totalorder 1, %s37
      %p792 = scmp.lt.s32.totalorder %s37, 3
      %p793 = pnand %p791, %p792
      %p794 = pneg %p793
      // Predicated region
      $region105: #{_lambda_.2} parent=5 // pred_check
        _
      $region106: #{_lambda_.2} parent=5 // pred_check_branch
        %796 = sbr.rel (%p793) target = $region108
      $region107: #{_lambda_.2} parent=5 // pred_region
        %s797 = ssub.s32 %s37, 1
        // Predicated region
        $region109: #{_lambda_.2} parent=107 // pred_check
          %p798 = pneg %p105
        $region110: #{_lambda_.2} parent=107 // pred_check_branch
          %800 = sbr.rel (%p798) target = $region112
        $region111: #{_lambda_.2} parent=107 // pred_region
          %802 = dma.done [#allocation3], 16
        $region112: #{_lambda_.2} parent=107 // pred_fallthru
          _
        // Predicated region
        $region113: #{_lambda_.2} parent=107 // pred_check
          %p803 = pneg %p126
        $region114: #{_lambda_.2} parent=107 // pred_check_branch
          %805 = sbr.rel (%p803) target = $region116
        $region115: #{_lambda_.2} parent=107 // pred_region
          %807 = dma.done [#allocation5], 16
        $region116: #{_lambda_.2} parent=107 // pred_fallthru
          _
        // Predicated region
        $region117: #{_lambda_.2} parent=107 // pred_check
          %p808 = pneg %p168
        $region118: #{_lambda_.2} parent=107 // pred_check_branch
          %810 = sbr.rel (%p808) target = $region120
        $region119: #{_lambda_.2} parent=107 // pred_region
          %812 = dma.done [#allocation5], 16
        $region120: #{_lambda_.2} parent=107 // pred_fallthru
          _
        // Predicated region
        $region121: #{_lambda_.2} parent=107 // pred_check
          %p813 = pneg %p189
        $region122: #{_lambda_.2} parent=107 // pred_check_branch
          %815 = sbr.rel (%p813) target = $region124
        $region123: #{_lambda_.2} parent=107 // pred_region
          %817 = dma.done [#allocation8], 16
        $region124: #{_lambda_.2} parent=107 // pred_fallthru
          _
        // Predicated region
        $region125: #{_lambda_.2} parent=107 // pred_check
          %p818 = pneg %p210
        $region126: #{_lambda_.2} parent=107 // pred_check_branch
          %820 = sbr.rel (%p818) target = $region128
        $region127: #{_lambda_.2} parent=107 // pred_region
          %822 = dma.done [#allocation8], 16
        $region128: #{_lambda_.2} parent=107 // pred_fallthru
          _
        // Predicated region
        $region129: #{_lambda_.2} parent=107 // pred_check
          %p823 = pneg %p231
        $region130: #{_lambda_.2} parent=107 // pred_check_branch
          %825 = sbr.rel (%p823) target = $region132
        $region131: #{_lambda_.2} parent=107 // pred_region
          %827 = dma.done [#allocation11], 32
        $region132: #{_lambda_.2} parent=107 // pred_fallthru
          _
        // Predicated region
        $region133: #{_lambda_.2} parent=107 // pred_check
          %p828 = pneg %p252
        $region134: #{_lambda_.2} parent=107 // pred_check_branch
          %830 = sbr.rel (%p828) target = $region136
        $region135: #{_lambda_.2} parent=107 // pred_region
          %832 = dma.done [#allocation11], 32
        $region136: #{_lambda_.2} parent=107 // pred_fallthru
          _
        // Predicated region
        $region137: #{_lambda_.2} parent=107 // pred_check
          %p833 = pneg %p273
        $region138: #{_lambda_.2} parent=107 // pred_check_branch
          %835 = sbr.rel (%p833) target = $region140
        $region139: #{_lambda_.2} parent=107 // pred_region
          %837 = dma.done [#allocation14], 3072
        $region140: #{_lambda_.2} parent=107 // pred_fallthru
          _
        // Predicated region
        $region141: #{_lambda_.2} parent=107 // pred_check
          %p838 = pneg %p315
        $region142: #{_lambda_.2} parent=107 // pred_check_branch
          %840 = sbr.rel (%p838) target = $region144
        $region143: #{_lambda_.2} parent=107 // pred_region
          %842 = dma.done [#allocation14], 32
        $region144: #{_lambda_.2} parent=107 // pred_fallthru
          _
        // Predicated region
        $region145: #{_lambda_.2} parent=107 // pred_check
          %p843 = pneg %p336
        $region146: #{_lambda_.2} parent=107 // pred_check_branch
          %845 = sbr.rel (%p843) target = $region148
        $region147: #{_lambda_.2} parent=107 // pred_region
          %847 = dma.done [#allocation17], 32
        $region148: #{_lambda_.2} parent=107 // pred_fallthru
          _
        // Predicated region
        $region149: #{_lambda_.2} parent=107 // pred_check
          %p848 = pneg %p357
        $region150: #{_lambda_.2} parent=107 // pred_check_branch
          %850 = sbr.rel (%p848) target = $region152
        $region151: #{_lambda_.2} parent=107 // pred_region
          %852 = dma.done [#allocation17], 1024
        $region152: #{_lambda_.2} parent=107 // pred_fallthru
          _
        // Predicated region
        $region153: #{_lambda_.2} parent=107 // pred_check
          %p853 = pneg %p378
        $region154: #{_lambda_.2} parent=107 // pred_check_branch
          %855 = sbr.rel (%p853) target = $region156
        $region155: #{_lambda_.2} parent=107 // pred_region
          %857 = dma.done [#allocation20], 32
        $region156: #{_lambda_.2} parent=107 // pred_fallthru
          _
        // Predicated region
        $region157: #{_lambda_.2} parent=107 // pred_check
          %p858 = pneg %p420
        $region158: #{_lambda_.2} parent=107 // pred_check_branch
          %860 = sbr.rel (%p858) target = $region160
        $region159: #{_lambda_.2} parent=107 // pred_region
          %862 = dma.done [#allocation20], 32
        $region160: #{_lambda_.2} parent=107 // pred_fallthru
          _
        // Predicated region
        $region161: #{_lambda_.2} parent=107 // pred_check
          %p863 = pneg %p441
        $region162: #{_lambda_.2} parent=107 // pred_check_branch
          %865 = sbr.rel (%p863) target = $region164
        $region163: #{_lambda_.2} parent=107 // pred_region
          %867 = dma.done [#allocation23], 16
        $region164: #{_lambda_.2} parent=107 // pred_fallthru
          _
        // Predicated region
        $region165: #{_lambda_.2} parent=107 // pred_check
          %p868 = pneg %p462
        $region166: #{_lambda_.2} parent=107 // pred_check_branch
          %870 = sbr.rel (%p868) target = $region168
        $region167: #{_lambda_.2} parent=107 // pred_region
          %872 = dma.done [#allocation23], 16
        $region168: #{_lambda_.2} parent=107 // pred_fallthru
          _
        // Predicated region
        $region169: #{_lambda_.2} parent=107 // pred_check
          %p873 = pneg %p483
        $region170: #{_lambda_.2} parent=107 // pred_check_branch
          %875 = sbr.rel (%p873) target = $region172
        $region171: #{_lambda_.2} parent=107 // pred_region
          %877 = dma.done [#allocation26], 4096
        $region172: #{_lambda_.2} parent=107 // pred_fallthru
          _
        // Predicated region
        $region173: #{_lambda_.2} parent=107 // pred_check
          %p878 = pneg %p504
        $region174: #{_lambda_.2} parent=107 // pred_check_branch
          %880 = sbr.rel (%p878) target = $region176
        $region175: #{_lambda_.2} parent=107 // pred_region
          %882 = dma.done [#allocation26], 128
        $region176: #{_lambda_.2} parent=107 // pred_fallthru
          _
        %p883 = scmp.lt.s32.totalorder %s42, 1
        %s884 = scalar_select %p883, %s42, 1
        %s885 = smul.addr %s884, 4
        %s886 = smul.addr %s885, 8
        %s887 = scalar_lea.vmem %s0, %s886
        %p888 = pneg %p63
        %p889 = pneg %p60
        %p890 = pneg %p84
        %p891 = pneg %p81
        %p892 = pneg %p105
        %p893 = pneg %p102
        %p894 = pneg %p126
        %p895 = pneg %p123
        %p896 = pneg %p147
        %p897 = pneg %p144
        %p898 = pneg %p168
        %p899 = pneg %p165
        %p900 = pneg %p189
        %p901 = pneg %p186
        %p902 = pneg %p210
        %p903 = pneg %p207
        %p904 = pneg %p231
        %p905 = pneg %p228
        %p906 = pneg %p252
        %p907 = pneg %p249
        %p908 = pneg %p273
        %p909 = pneg %p270
        %p910 = pneg %p294
        %p911 = pneg %p291
        %p912 = pneg %p315
        %p913 = pneg %p312
        %p914 = pneg %p336
        %p915 = pneg %p333
        %p916 = pneg %p357
        %p917 = pneg %p354
        %p918 = pneg %p378
        %p919 = pneg %p375
        %p920 = pneg %p399
        %p921 = pneg %p396
        %p922 = pneg %p420
        %p923 = pneg %p417
        %p924 = pneg %p441
        %p925 = pneg %p438
        %p926 = pneg %p462
        %p927 = pneg %p459
        %p928 = pneg %p483
        %p929 = pneg %p480
        %p930 = pneg %p504
        %p931 = pneg %p501
        %p932 = pneg %p530
        %p933 = pneg %p527
        %p934 = scmp.lt.s32.totalorder %s42, 1
        %s935 = scalar_select %p934, %s42, 1
        %s936 = smul.addr %s935, 8
        %s937 = scalar_lea.vmem %s22, %s936
        %p938 = scmp.lt.s32.totalorder %s42, 1
        %s939 = scalar_select %p938, %s42, 1
        %s940 = smul.addr %s939, 4
        %s941 = smul.addr %s940, 8
        %s942 = scalar_lea.vmem %s0, %s941
        %p943 = scmp.lt.s32.totalorder %s42, 1
        %s944 = scalar_select %p943, %s42, 1
        %s945 = smul.addr %s944, 8
        %s946 = scalar_lea.vmem %s22, %s945
        %v947 = vld [vmem:[%s942] sm:$0xff]
        %v948 = vld [vmem:[%s942 + $0x8] sm:$0xff]
        %v949 = vld [vmem:[%s942 + $0x10] sm:$0xff]
        %v950 = vld [vmem:[%s942 + $0x18] sm:$0x1]
        %v951 = vld [vmem:[#allocation2] sm:$0x1]
        %v952 = vld [vmem:[#allocation4] sm:$0x1]
        %vm953 = vcmask 392192
        %v954 = vsel %vm953, %v947, 0.0
        %955 = vadd.xlane.f32.xlu0 %v954
        %v956 = vpop.xlane.xlu0 %955
        %v957 = vsel %vm953, %v948, 0.0
        %958 = vadd.xlane.f32.xlu0 %v957
        %v959 = vpop.xlane.xlu0 %958
        %v960 = vsel %vm953, %v949, 0.0
        %961 = vadd.xlane.f32.xlu0 %v960
        %v962 = vpop.xlane.xlu0 %961
        %vm963 = vcmask 385024
        %v964 = vsel %vm963, %v950, 0.0
        %965 = vadd.xlane.f32.xlu0 %v964
        %v966 = vpop.xlane.xlu0 %965
        %v967 = vrcp.pop 48.0
        %v968 = vmul.f32 48.0, %v967
        %v969 = vsub.f32 1.0, %v968
        %v970 = vmul.f32 %v967, %v969
        %v971 = vadd.f32 %v967, %v970
        %vm972 = vweird.f32 %v967
        %v973 = vsel %vm972, %v967, %v971
        %v974 = vmul.f32 %v956, %v973
        %v975 = vmul.f32 %v959, %v973
        %v976 = vmul.f32 %v962, %v973
        %v977 = vmul.f32 %v966, %v973
        %v978 = vsub.f32 %v947, %v974
        %v979 = vsub.f32 %v948, %v975
        %v980 = vsub.f32 %v949, %v976
        %v981 = vsub.f32 %v950, %v977
        %v982 = vmul.f32 %v978, %v978
        %v983 = vmul.f32 %v979, %v979
        %v984 = vmul.f32 %v980, %v980
        %v985 = vmul.f32 %v981, %v981
        %v986 = vsel %vm953, %v982, 0.0
        %987 = vadd.xlane.f32.xlu0 %v986
        %v988 = vpop.xlane.xlu0 %987
        %v989 = vsel %vm953, %v983, 0.0
        %990 = vadd.xlane.f32.xlu0 %v989
        %v991 = vpop.xlane.xlu0 %990
        %v992 = vsel %vm953, %v984, 0.0
        %993 = vadd.xlane.f32.xlu0 %v992
        %v994 = vpop.xlane.xlu0 %993
        %v995 = vsel %vm963, %v985, 0.0
        %996 = vadd.xlane.f32.xlu0 %v995
        %v997 = vpop.xlane.xlu0 %996
        %v998 = vmul.f32 %v988, %v973
        %v999 = vmul.f32 %v991, %v973
        %v1000 = vmul.f32 %v994, %v973
        %v1001 = vmul.f32 %v997, %v973
        %v1002 = vadd.f32 %v998, 1e-05
        %v1003 = vadd.f32 %v999, 1e-05
        %v1004 = vadd.f32 %v1000, 1e-05
        %v1005 = vadd.f32 %v1001, 1e-05
        %v1006 = vrsqrt.pop %v1002
        %v1007 = vmul.f32 %v1006, %v1002
        %v1008 = vmul.f32 %v1007, %v1006
        %v1009 = vmul.f32 0.5, %v1008
        %v1010 = vsub.f32 1.5, %v1009
        %v1011 = vmul.f32 %v1006, %v1010
        %vm1012 = vweird.f32 %v1002
        %vm1013 = vweird.f32 %v1006
        %vm1014 = vmor %vm1012, %vm1013
        %v1015 = vsel %vm1014, %v1006, %v1011
        %v1016 = vrsqrt.pop %v1003
        %v1017 = vmul.f32 %v1016, %v1003
        %v1018 = vmul.f32 %v1017, %v1016
        %v1019 = vmul.f32 0.5, %v1018
        %v1020 = vsub.f32 1.5, %v1019
        %v1021 = vmul.f32 %v1016, %v1020
        %vm1022 = vweird.f32 %v1003
        %vm1023 = vweird.f32 %v1016
        %vm1024 = vmor %vm1022, %vm1023
        %v1025 = vsel %vm1024, %v1016, %v1021
        %v1026 = vrsqrt.pop %v1004
        %v1027 = vmul.f32 %v1026, %v1004
        %v1028 = vmul.f32 %v1027, %v1026
        %v1029 = vmul.f32 0.5, %v1028
        %v1030 = vsub.f32 1.5, %v1029
        %v1031 = vmul.f32 %v1026, %v1030
        %vm1032 = vweird.f32 %v1004
        %vm1033 = vweird.f32 %v1026
        %vm1034 = vmor %vm1032, %vm1033
        %v1035 = vsel %vm1034, %v1026, %v1031
        %v1036 = vrsqrt.pop %v1005
        %v1037 = vmul.f32 %v1036, %v1005
        %v1038 = vmul.f32 %v1037, %v1036
        %v1039 = vmul.f32 0.5, %v1038
        %v1040 = vsub.f32 1.5, %v1039
        %v1041 = vmul.f32 %v1036, %v1040
        %vm1042 = vweird.f32 %v1005
        %vm1043 = vweird.f32 %v1036
        %vm1044 = vmor %vm1042, %vm1043
        %v1045 = vsel %vm1044, %v1036, %v1041
        %v1046 = vmul.f32 %v978, %v1015
        %v1047 = vmul.f32 %v979, %v1025
        %v1048 = vmul.f32 %v980, %v1035
        %v1049 = vmul.f32 %v981, %v1045
        %v1051 = vperm.slane %v951, 0
        %v1053 = vmul.f32 %v1046, %v1051
        %v1054 = vmul.f32 %v1047, %v1051
        %v1055 = vmul.f32 %v1048, %v1051
        %v1056 = vmul.f32 %v1049, %v1051
        %v1058 = vperm.slane %v952, 0
        %v1060 = vadd.f32 %v1053, %v1058
        %v1061 = vadd.f32 %v1054, %v1058
        %v1062 = vadd.f32 %v1055, %v1058
        %v1063 = vadd.f32 %v1056, %v1058
        %v1064 = vld [vmem:[%s4] sm:$0xff]
        %v1065 = vld [vmem:[%s4 + $0x8] sm:$0xff]
        %v1066 = vld [vmem:[%s4 + $0x10] sm:$0xff]
        %v1067 = vld [vmem:[%s4 + $0x18] sm:$0xff]
        %v1068 = vld [vmem:[%s4 + $0x20] sm:$0xff]
        %v1069 = vld [vmem:[%s4 + $0x28] sm:$0xff]
        %v1070 = vld [vmem:[#allocation6] sm:$0x1]
        %v1072 = vperm.slane %v1070, 0
        %v1075 = vsel %vm953, %v1060, 0
        %v1078 = vsel %vm953, %v1061, 0
        %v1081 = vsel %vm953, %v1062, 0
        %v1084 = vsel %vm953, %v1063, 0
        %1086 = vmatpush.msra.mxu0 0.0
        %1087 = vmatpush.msra.mxu0 0.0
        %1088 = vmatpush.msra.mxu0 0.0
        %1089 = vmatpush.msra.mxu0 0.0
        %1090 = vmatpush.msra.mxu0 0.0
        %1091 = vmatpush.msra.mxu0 0.0
        %1092 = vmatpush.msra.mxu0 0.0
        %1093 = vmatpush.msra.mxu0 0.0
        %1094 = vmatpush.msra.mxu0 0.0
        %1095 = vmatpush.msra.mxu0 0.0
        %1096 = vmatpush.msra.mxu0 %v1069
        %1097 = vmatpush.msra.mxu0 %v1068
        %1098 = vmatpush.msra.mxu0 %v1067
        %1099 = vmatpush.msra.mxu0 %v1066
        %1100 = vmatpush.msra.mxu0 %v1065
        %1101 = vmatpush.msra.mxu0 %v1064
        %1102 = vmatmul.f32.gmra.mxu0 %v1075
        %v1103 = vpop.f32.mrf.mxu0
        %v1104 = vadd.f32 %v1072, %v1103
        %1105 = vmatmul.f32.gmra.mxu0 %v1078
        %v1106 = vpop.f32.mrf.mxu0
        %v1107 = vadd.f32 %v1072, %v1106
        %1108 = vmatmul.f32.gmra.mxu0 %v1081
        %v1109 = vpop.f32.mrf.mxu0
        %v1110 = vadd.f32 %v1072, %v1109
        %1111 = vmatmul.f32.gmra.mxu0 %v1084
        %v1112 = vpop.f32.mrf.mxu0
        %v1113 = vadd.f32 %v1072, %v1112
        %1114 = vdwg.mxu0
        %v1115 = vld [vmem:[#allocation7] sm:$0x1]
        %v1116 = vld [vmem:[#allocation9] sm:$0x1]
        %vm1117 = vcmask 261120
        %v1118 = vsel %vm1117, %v1104, 0.0
        %1119 = vadd.xlane.f32.xlu0 %v1118
        %v1120 = vpop.xlane.xlu0 %1119
        %v1121 = vsel %vm1117, %v1107, 0.0
        %1122 = vadd.xlane.f32.xlu0 %v1121
        %v1123 = vpop.xlane.xlu0 %1122
        %v1124 = vsel %vm1117, %v1110, 0.0
        %1125 = vadd.xlane.f32.xlu0 %v1124
        %v1126 = vpop.xlane.xlu0 %1125
        %vm1127 = vcmask 253952
        %v1128 = vsel %vm1127, %v1113, 0.0
        %1129 = vadd.xlane.f32.xlu0 %v1128
        %v1130 = vpop.xlane.xlu0 %1129
        %v1131 = vrcp.pop 32.0
        %v1132 = vmul.f32 32.0, %v1131
        %v1133 = vsub.f32 1.0, %v1132
        %v1134 = vmul.f32 %v1131, %v1133
        %v1135 = vadd.f32 %v1131, %v1134
        %vm1136 = vweird.f32 %v1131
        %v1137 = vsel %vm1136, %v1131, %v1135
        %v1138 = vmul.f32 %v1120, %v1137
        %v1139 = vmul.f32 %v1123, %v1137
        %v1140 = vmul.f32 %v1126, %v1137
        %v1141 = vmul.f32 %v1130, %v1137
        %v1142 = vsub.f32 %v1104, %v1138
        %v1143 = vsub.f32 %v1107, %v1139
        %v1144 = vsub.f32 %v1110, %v1140
        %v1145 = vsub.f32 %v1113, %v1141
        %v1146 = vmul.f32 %v1142, %v1142
        %v1147 = vmul.f32 %v1143, %v1143
        %v1148 = vmul.f32 %v1144, %v1144
        %v1149 = vmul.f32 %v1145, %v1145
        %v1150 = vsel %vm1117, %v1146, 0.0
        %1151 = vadd.xlane.f32.xlu0 %v1150
        %v1152 = vpop.xlane.xlu0 %1151
        %v1153 = vsel %vm1117, %v1147, 0.0
        %1154 = vadd.xlane.f32.xlu0 %v1153
        %v1155 = vpop.xlane.xlu0 %1154
        %v1156 = vsel %vm1117, %v1148, 0.0
        %1157 = vadd.xlane.f32.xlu0 %v1156
        %v1158 = vpop.xlane.xlu0 %1157
        %v1159 = vsel %vm1127, %v1149, 0.0
        %1160 = vadd.xlane.f32.xlu0 %v1159
        %v1161 = vpop.xlane.xlu0 %1160
        %v1162 = vmul.f32 %v1152, %v1137
        %v1163 = vmul.f32 %v1155, %v1137
        %v1164 = vmul.f32 %v1158, %v1137
        %v1165 = vmul.f32 %v1161, %v1137
        %v1166 = vadd.f32 %v1162, 1e-05
        %v1167 = vadd.f32 %v1163, 1e-05
        %v1168 = vadd.f32 %v1164, 1e-05
        %v1169 = vadd.f32 %v1165, 1e-05
        %v1170 = vrsqrt.pop %v1166
        %v1171 = vmul.f32 %v1170, %v1166
        %v1172 = vmul.f32 %v1171, %v1170
        %v1173 = vmul.f32 0.5, %v1172
        %v1174 = vsub.f32 1.5, %v1173
        %v1175 = vmul.f32 %v1170, %v1174
        %vm1176 = vweird.f32 %v1166
        %vm1177 = vweird.f32 %v1170
        %vm1178 = vmor %vm1176, %vm1177
        %v1179 = vsel %vm1178, %v1170, %v1175
        %v1180 = vrsqrt.pop %v1167
        %v1181 = vmul.f32 %v1180, %v1167
        %v1182 = vmul.f32 %v1181, %v1180
        %v1183 = vmul.f32 0.5, %v1182
        %v1184 = vsub.f32 1.5, %v1183
        %v1185 = vmul.f32 %v1180, %v1184
        %vm1186 = vweird.f32 %v1167
        %vm1187 = vweird.f32 %v1180
        %vm1188 = vmor %vm1186, %vm1187
        %v1189 = vsel %vm1188, %v1180, %v1185
        %v1190 = vrsqrt.pop %v1168
        %v1191 = vmul.f32 %v1190, %v1168
        %v1192 = vmul.f32 %v1191, %v1190
        %v1193 = vmul.f32 0.5, %v1192
        %v1194 = vsub.f32 1.5, %v1193
        %v1195 = vmul.f32 %v1190, %v1194
        %vm1196 = vweird.f32 %v1168
        %vm1197 = vweird.f32 %v1190
        %vm1198 = vmor %vm1196, %vm1197
        %v1199 = vsel %vm1198, %v1190, %v1195
        %v1200 = vrsqrt.pop %v1169
        %v1201 = vmul.f32 %v1200, %v1169
        %v1202 = vmul.f32 %v1201, %v1200
        %v1203 = vmul.f32 0.5, %v1202
        %v1204 = vsub.f32 1.5, %v1203
        %v1205 = vmul.f32 %v1200, %v1204
        %vm1206 = vweird.f32 %v1169
        %vm1207 = vweird.f32 %v1200
        %vm1208 = vmor %vm1206, %vm1207
        %v1209 = vsel %vm1208, %v1200, %v1205
        %v1210 = vmul.f32 %v1142, %v1179
        %v1211 = vmul.f32 %v1143, %v1189
        %v1212 = vmul.f32 %v1144, %v1199
        %v1213 = vmul.f32 %v1145, %v1209
        %v1215 = vperm.slane %v1115, 0
        %v1217 = vmul.f32 %v1210, %v1215
        %v1218 = vmul.f32 %v1211, %v1215
        %v1219 = vmul.f32 %v1212, %v1215
        %v1220 = vmul.f32 %v1213, %v1215
        %v1222 = vperm.slane %v1116, 0
        %v1224 = vadd.f32 %v1217, %v1222
        %v1225 = vadd.f32 %v1218, %v1222
        %v1226 = vadd.f32 %v1219, %v1222
        %v1227 = vadd.f32 %v1220, %v1222
        %v1228 = vld [vmem:[%s1] sm:$0xff]
        %v1229 = vld [vmem:[%s1 + $0x8] sm:$0xff]
        %v1230 = vld [vmem:[%s1 + $0x10] sm:$0xff]
        %v1231 = vld [vmem:[%s1 + $0x18] sm:$0x1]
        %v1232 = vadd.f32 %v1224, %v1228
        %v1233 = vadd.f32 %v1225, %v1229
        %v1234 = vadd.f32 %v1226, %v1230
        %v1235 = vadd.f32 %v1227, %v1231
        %v1236 = vld [vmem:[#allocation10] sm:$0x1]
        %v1237 = vld [vmem:[#allocation12] sm:$0x1]
        %v1238 = vsel %vm1117, %v1232, 0.0
        %1239 = vadd.xlane.f32.xlu0 %v1238
        %v1240 = vpop.xlane.xlu0 %1239
        %v1241 = vsel %vm1117, %v1233, 0.0
        %1242 = vadd.xlane.f32.xlu0 %v1241
        %v1243 = vpop.xlane.xlu0 %1242
        %v1244 = vsel %vm1117, %v1234, 0.0
        %1245 = vadd.xlane.f32.xlu0 %v1244
        %v1246 = vpop.xlane.xlu0 %1245
        %v1247 = vsel %vm1127, %v1235, 0.0
        %1248 = vadd.xlane.f32.xlu0 %v1247
        %v1249 = vpop.xlane.xlu0 %1248
        %v1250 = vmul.f32 %v1240, %v1137
        %v1251 = vmul.f32 %v1243, %v1137
        %v1252 = vmul.f32 %v1246, %v1137
        %v1253 = vmul.f32 %v1249, %v1137
        %v1254 = vsub.f32 %v1232, %v1250
        %v1255 = vsub.f32 %v1233, %v1251
        %v1256 = vsub.f32 %v1234, %v1252
        %v1257 = vsub.f32 %v1235, %v1253
        %v1258 = vmul.f32 %v1254, %v1254
        %v1259 = vmul.f32 %v1255, %v1255
        %v1260 = vmul.f32 %v1256, %v1256
        %v1261 = vmul.f32 %v1257, %v1257
        %v1262 = vsel %vm1117, %v1258, 0.0
        %1263 = vadd.xlane.f32.xlu0 %v1262
        %v1264 = vpop.xlane.xlu0 %1263
        %v1265 = vsel %vm1117, %v1259, 0.0
        %1266 = vadd.xlane.f32.xlu0 %v1265
        %v1267 = vpop.xlane.xlu0 %1266
        %v1268 = vsel %vm1117, %v1260, 0.0
        %1269 = vadd.xlane.f32.xlu0 %v1268
        %v1270 = vpop.xlane.xlu0 %1269
        %v1271 = vsel %vm1127, %v1261, 0.0
        %1272 = vadd.xlane.f32.xlu0 %v1271
        %v1273 = vpop.xlane.xlu0 %1272
        %v1274 = vmul.f32 %v1264, %v1137
        %v1275 = vmul.f32 %v1267, %v1137
        %v1276 = vmul.f32 %v1270, %v1137
        %v1277 = vmul.f32 %v1273, %v1137
        %v1278 = vadd.f32 %v1274, 1e-05
        %v1279 = vadd.f32 %v1275, 1e-05
        %v1280 = vadd.f32 %v1276, 1e-05
        %v1281 = vadd.f32 %v1277, 1e-05
        %v1282 = vrsqrt.pop %v1278
        %v1283 = vmul.f32 %v1282, %v1278
        %v1284 = vmul.f32 %v1283, %v1282
        %v1285 = vmul.f32 0.5, %v1284
        %v1286 = vsub.f32 1.5, %v1285
        %v1287 = vmul.f32 %v1282, %v1286
        %vm1288 = vweird.f32 %v1278
        %vm1289 = vweird.f32 %v1282
        %vm1290 = vmor %vm1288, %vm1289
        %v1291 = vsel %vm1290, %v1282, %v1287
        %v1292 = vrsqrt.pop %v1279
        %v1293 = vmul.f32 %v1292, %v1279
        %v1294 = vmul.f32 %v1293, %v1292
        %v1295 = vmul.f32 0.5, %v1294
        %v1296 = vsub.f32 1.5, %v1295
        %v1297 = vmul.f32 %v1292, %v1296
        %vm1298 = vweird.f32 %v1279
        %vm1299 = vweird.f32 %v1292
        %vm1300 = vmor %vm1298, %vm1299
        %v1301 = vsel %vm1300, %v1292, %v1297
        %v1302 = vrsqrt.pop %v1280
        %v1303 = vmul.f32 %v1302, %v1280
        %v1304 = vmul.f32 %v1303, %v1302
        %v1305 = vmul.f32 0.5, %v1304
        %v1306 = vsub.f32 1.5, %v1305
        %v1307 = vmul.f32 %v1302, %v1306
        %vm1308 = vweird.f32 %v1280
        %vm1309 = vweird.f32 %v1302
        %vm1310 = vmor %vm1308, %vm1309
        %v1311 = vsel %vm1310, %v1302, %v1307
        %v1312 = vrsqrt.pop %v1281
        %v1313 = vmul.f32 %v1312, %v1281
        %v1314 = vmul.f32 %v1313, %v1312
        %v1315 = vmul.f32 0.5, %v1314
        %v1316 = vsub.f32 1.5, %v1315
        %v1317 = vmul.f32 %v1312, %v1316
        %vm1318 = vweird.f32 %v1281
        %vm1319 = vweird.f32 %v1312
        %vm1320 = vmor %vm1318, %vm1319
        %v1321 = vsel %vm1320, %v1312, %v1317
        %v1322 = vmul.f32 %v1254, %v1291
        %v1323 = vmul.f32 %v1255, %v1301
        %v1324 = vmul.f32 %v1256, %v1311
        %v1325 = vmul.f32 %v1257, %v1321
        %v1327 = vperm.slane %v1236, 0
        %v1329 = vmul.f32 %v1322, %v1327
        %v1330 = vmul.f32 %v1323, %v1327
        %v1331 = vmul.f32 %v1324, %v1327
        %v1332 = vmul.f32 %v1325, %v1327
        %v1334 = vperm.slane %v1237, 0
        %v1336 = vadd.f32 %v1329, %v1334
        %v1337 = vadd.f32 %v1330, %v1334
        %v1338 = vadd.f32 %v1331, %v1334
        %v1339 = vadd.f32 %v1332, %v1334
        %v1340 = vld [vmem:[#allocation13] sm:$0xff]
        %v1341 = vld [vmem:[#allocation13 + $0x8] sm:$0xff]
        %v1342 = vld [vmem:[#allocation13 + $0x10] sm:$0xff]
        %v1343 = vld [vmem:[#allocation13 + $0x18] sm:$0xff]
        %v1344 = vld [vmem:[#allocation13 + $0x20] sm:$0xff]
        %v1345 = vld [vmem:[#allocation13 + $0x28] sm:$0xff]
        %v1346 = vld [vmem:[#allocation13 + $0x30] sm:$0xff]
        %v1347 = vld [vmem:[#allocation13 + $0x38] sm:$0xff]
        %v1348 = vld [vmem:[#allocation13 + $0x40] sm:$0xff]
        %v1349 = vld [vmem:[#allocation13 + $0x48] sm:$0xff]
        %v1350 = vld [vmem:[#allocation13 + $0x50] sm:$0xff]
        %v1351 = vld [vmem:[#allocation13 + $0x58] sm:$0xff]
        %v1353 = vsel %vm1117, %v1336, 0
        %v1356 = vsel %vm1117, %v1337, 0
        %v1359 = vsel %vm1117, %v1338, 0
        %v1362 = vsel %vm1117, %v1339, 0
        %1364 = vmatpush.msra.mxu0 0.0
        %1365 = vmatpush.msra.mxu0 0.0
        %1366 = vmatpush.msra.mxu0 0.0
        %1367 = vmatpush.msra.mxu0 0.0
        %1368 = vmatpush.msra.mxu0 0.0
        %1369 = vmatpush.msra.mxu0 0.0
        %1370 = vmatpush.msra.mxu0 0.0
        %1371 = vmatpush.msra.mxu0 0.0
        %1372 = vmatpush.msra.mxu0 0.0
        %1373 = vmatpush.msra.mxu0 0.0
        %1374 = vmatpush.msra.mxu0 0.0
        %1375 = vmatpush.msra.mxu0 0.0
        %1376 = vmatpush.msra.mxu0 %v1349
        %1377 = vmatpush.msra.mxu0 %v1346
        %1378 = vmatpush.msra.mxu0 %v1343
        %1379 = vmatpush.msra.mxu0 %v1340
        %1380 = vmatmul.f32.gmra.mxu0 %v1353
        %v1381 = vpop.f32.mrf.mxu0
        %v1382 = vadd.f32 0.0, %v1381
        %1383 = vmatmul.f32.gmra.mxu0 %v1356
        %v1384 = vpop.f32.mrf.mxu0
        %v1385 = vadd.f32 0.0, %v1384
        %1386 = vmatmul.f32.gmra.mxu0 %v1359
        %v1387 = vpop.f32.mrf.mxu0
        %v1388 = vadd.f32 0.0, %v1387
        %1389 = vmatmul.f32.gmra.mxu0 %v1362
        %v1390 = vpop.f32.mrf.mxu0
        %v1391 = vadd.f32 0.0, %v1390
        %1392 = vdwg.mxu0
        %1393 = vmatpush.msra.mxu0 0.0
        %1394 = vmatpush.msra.mxu0 0.0
        %1395 = vmatpush.msra.mxu0 0.0
        %1396 = vmatpush.msra.mxu0 0.0
        %1397 = vmatpush.msra.mxu0 0.0
        %1398 = vmatpush.msra.mxu0 0.0
        %1399 = vmatpush.msra.mxu0 0.0
        %1400 = vmatpush.msra.mxu0 0.0
        %1401 = vmatpush.msra.mxu0 0.0
        %1402 = vmatpush.msra.mxu0 0.0
        %1403 = vmatpush.msra.mxu0 0.0
        %1404 = vmatpush.msra.mxu0 0.0
        %1405 = vmatpush.msra.mxu0 %v1350
        %1406 = vmatpush.msra.mxu0 %v1347
        %1407 = vmatpush.msra.mxu0 %v1344
        %1408 = vmatpush.msra.mxu0 %v1341
        %1409 = vmatmul.f32.gmra.mxu0 %v1353
        %v1410 = vpop.f32.mrf.mxu0
        %v1411 = vadd.f32 0.0, %v1410
        %1412 = vmatmul.f32.gmra.mxu0 %v1356
        %v1413 = vpop.f32.mrf.mxu0
        %v1414 = vadd.f32 0.0, %v1413
        %1415 = vmatmul.f32.gmra.mxu0 %v1359
        %v1416 = vpop.f32.mrf.mxu0
        %v1417 = vadd.f32 0.0, %v1416
        %1418 = vmatmul.f32.gmra.mxu0 %v1362
        %v1419 = vpop.f32.mrf.mxu0
        %v1420 = vadd.f32 0.0, %v1419
        %1421 = vdwg.mxu0
        %1422 = vmatpush.msra.mxu0 0.0
        %1423 = vmatpush.msra.mxu0 0.0
        %1424 = vmatpush.msra.mxu0 0.0
        %1425 = vmatpush.msra.mxu0 0.0
        %1426 = vmatpush.msra.mxu0 0.0
        %1427 = vmatpush.msra.mxu0 0.0
        %1428 = vmatpush.msra.mxu0 0.0
        %1429 = vmatpush.msra.mxu0 0.0
        %1430 = vmatpush.msra.mxu0 0.0
        %1431 = vmatpush.msra.mxu0 0.0
        %1432 = vmatpush.msra.mxu0 0.0
        %1433 = vmatpush.msra.mxu0 0.0
        %1434 = vmatpush.msra.mxu0 %v1351
        %1435 = vmatpush.msra.mxu0 %v1348
        %1436 = vmatpush.msra.mxu0 %v1345
        %1437 = vmatpush.msra.mxu0 %v1342
        %1438 = vmatmul.f32.gmra.mxu0 %v1353
        %v1439 = vpop.f32.mrf.mxu0
        %v1440 = vadd.f32 0.0, %v1439
        %1441 = vmatmul.f32.gmra.mxu0 %v1356
        %v1442 = vpop.f32.mrf.mxu0
        %v1443 = vadd.f32 0.0, %v1442
        %1444 = vmatmul.f32.gmra.mxu0 %v1359
        %v1445 = vpop.f32.mrf.mxu0
        %v1446 = vadd.f32 0.0, %v1445
        %1447 = vmatmul.f32.gmra.mxu0 %v1362
        %v1448 = vpop.f32.mrf.mxu0
        %v1449 = vadd.f32 0.0, %v1448
        %1450 = vdwg.mxu0
        %vm1451 = vcmask 523264
        %v1453 = vsel %vm1451, %v1382, 0
        %v1456 = vsel %vm1451, %v1385, 0
        %v1459 = vsel %vm1451, %v1388, 0
        %v1462 = vsel %vm1451, %v1391, 0
        %v1465 = vsel %vm1451, %v1411, 0
        %v1468 = vsel %vm1451, %v1414, 0
        %v1471 = vsel %vm1451, %v1417, 0
        %v1474 = vsel %vm1451, %v1420, 0
        %1476 = vmatpush.xpose.msra.mxu0 0.0
        %1477 = vmatpush.xpose.msra.mxu0 0.0
        %1478 = vmatpush.xpose.msra.mxu0 0.0
        %1479 = vmatpush.xpose.msra.mxu0 0.0
        %1480 = vmatpush.xpose.msra.mxu0 0.0
        %1481 = vmatpush.xpose.msra.mxu0 0.0
        %1482 = vmatpush.xpose.msra.mxu0 0.0
        %1483 = vmatpush.xpose.msra.mxu0 0.0
        %1484 = vmatpush.xpose.msra.mxu0 0.0
        %1485 = vmatpush.xpose.msra.mxu0 0.0
        %1486 = vmatpush.xpose.msra.mxu0 0.0
        %1487 = vmatpush.xpose.msra.mxu0 0.0
        %1488 = vmatpush.xpose.msra.mxu0 %v1474
        %1489 = vmatpush.xpose.msra.mxu0 %v1471
        %1490 = vmatpush.xpose.msra.mxu0 %v1468
        %1491 = vmatpush.xpose.msra.mxu0 %v1465
        %1492 = vmatmul.f32.gmra.mxu0 %v1453
        %v1493 = vpop.f32.mrf.mxu0
        %v1494 = vadd.f32 0.0, %v1493
        %1495 = vmatmul.f32.gmra.mxu0 %v1456
        %v1496 = vpop.f32.mrf.mxu0
        %v1497 = vadd.f32 0.0, %v1496
        %1498 = vmatmul.f32.gmra.mxu0 %v1459
        %v1499 = vpop.f32.mrf.mxu0
        %v1500 = vadd.f32 0.0, %v1499
        %1501 = vmatmul.f32.gmra.mxu0 %v1462
        %v1502 = vpop.f32.mrf.mxu0
        %v1503 = vadd.f32 0.0, %v1502
        %1504 = vdwg.mxu0
        %v1505 = vmul.f32 %v1494, 0.125
        %v1506 = vmul.f32 %v1497, 0.125
        %v1507 = vmul.f32 %v1500, 0.125
        %v1508 = vmul.f32 %v1503, 0.125
        %vm1509 = vcmask 203776
        %v1510 = vsel %vm1509, %v1505, -inf
        %1511 = vmax.xlane.f32.xlu0 %v1510
        %v1512 = vpop.xlane.xlu0 %1511
        %v1513 = vsel %vm1509, %v1506, -inf
        %1514 = vmax.xlane.f32.xlu0 %v1513
        %v1515 = vpop.xlane.xlu0 %1514
        %v1516 = vsel %vm1509, %v1507, -inf
        %1517 = vmax.xlane.f32.xlu0 %v1516
        %v1518 = vpop.xlane.xlu0 %1517
        %vm1519 = vcmask 196608
        %v1520 = vsel %vm1519, %v1508, -inf
        %1521 = vmax.xlane.f32.xlu0 %v1520
        %v1522 = vpop.xlane.xlu0 %1521
        %v1523 = vsub.f32 %v1505, %v1512
        %v1524 = vsub.f32 %v1506, %v1515
        %v1525 = vsub.f32 %v1507, %v1518
        %v1526 = vsub.f32 %v1508, %v1522
        %v1527 = vmul.f32 %v1523, 1.442695
        %v1528 = vpow.pop %v1527
        %v1529 = vmul.f32 %v1524, 1.442695
        %v1530 = vpow.pop %v1529
        %v1531 = vmul.f32 %v1525, 1.442695
        %v1532 = vpow.pop %v1531
        %v1533 = vmul.f32 %v1526, 1.442695
        %v1534 = vpow.pop %v1533
        %v1535 = vsel %vm1509, %v1528, 0.0
        %1536 = vadd.xlane.f32.xlu0 %v1535
        %v1537 = vpop.xlane.xlu0 %1536
        %v1538 = vsel %vm1509, %v1530, 0.0
        %1539 = vadd.xlane.f32.xlu0 %v1538
        %v1540 = vpop.xlane.xlu0 %1539
        %v1541 = vsel %vm1509, %v1532, 0.0
        %1542 = vadd.xlane.f32.xlu0 %v1541
        %v1543 = vpop.xlane.xlu0 %1542
        %v1544 = vsel %vm1519, %v1534, 0.0
        %1545 = vadd.xlane.f32.xlu0 %v1544
        %v1546 = vpop.xlane.xlu0 %1545
        %v1547 = vrcp.pop %v1537
        %v1548 = vmul.f32 %v1537, %v1547
        %v1549 = vsub.f32 1.0, %v1548
        %v1550 = vmul.f32 %v1547, %v1549
        %v1551 = vadd.f32 %v1547, %v1550
        %vm1552 = vweird.f32 %v1537
        %vm1553 = vweird.f32 %v1547
        %vm1554 = vmor %vm1552, %vm1553
        %v1555 = vsel %vm1554, %v1547, %v1551
        %v1556 = vand.u32 2147483647, %v1537
        %vm1557 = vcmp.eq.f32.partialorder %v1556, 8.507059e+37
        %v1558 = vand.u32 %v1537, 2147483648
        %v1559 = vor.u32 1.1754944e-38, %v1558
        %v1560 = vsel %vm1557, %v1559, %v1555
        %v1561 = vmul.f32 %v1528, %v1560
        %v1562 = vrcp.pop %v1540
        %v1563 = vmul.f32 %v1540, %v1562
        %v1564 = vsub.f32 1.0, %v1563
        %v1565 = vmul.f32 %v1562, %v1564
        %v1566 = vadd.f32 %v1562, %v1565
        %vm1567 = vweird.f32 %v1540
        %vm1568 = vweird.f32 %v1562
        %vm1569 = vmor %vm1567, %vm1568
        %v1570 = vsel %vm1569, %v1562, %v1566
        %v1571 = vand.u32 2147483647, %v1540
        %vm1572 = vcmp.eq.f32.partialorder %v1571, 8.507059e+37
        %v1573 = vand.u32 %v1540, 2147483648
        %v1574 = vor.u32 1.1754944e-38, %v1573
        %v1575 = vsel %vm1572, %v1574, %v1570
        %v1576 = vmul.f32 %v1530, %v1575
        %v1577 = vrcp.pop %v1543
        %v1578 = vmul.f32 %v1543, %v1577
        %v1579 = vsub.f32 1.0, %v1578
        %v1580 = vmul.f32 %v1577, %v1579
        %v1581 = vadd.f32 %v1577, %v1580
        %vm1582 = vweird.f32 %v1543
        %vm1583 = vweird.f32 %v1577
        %vm1584 = vmor %vm1582, %vm1583
        %v1585 = vsel %vm1584, %v1577, %v1581
        %v1586 = vand.u32 2147483647, %v1543
        %vm1587 = vcmp.eq.f32.partialorder %v1586, 8.507059e+37
        %v1588 = vand.u32 %v1543, 2147483648
        %v1589 = vor.u32 1.1754944e-38, %v1588
        %v1590 = vsel %vm1587, %v1589, %v1585
        %v1591 = vmul.f32 %v1532, %v1590
        %v1592 = vrcp.pop %v1546
        %v1593 = vmul.f32 %v1546, %v1592
        %v1594 = vsub.f32 1.0, %v1593
        %v1595 = vmul.f32 %v1592, %v1594
        %v1596 = vadd.f32 %v1592, %v1595
        %vm1597 = vweird.f32 %v1546
        %vm1598 = vweird.f32 %v1592
        %vm1599 = vmor %vm1597, %vm1598
        %v1600 = vsel %vm1599, %v1592, %v1596
        %v1601 = vand.u32 2147483647, %v1546
        %vm1602 = vcmp.eq.f32.partialorder %v1601, 8.507059e+37
        %v1603 = vand.u32 %v1546, 2147483648
        %v1604 = vor.u32 1.1754944e-38, %v1603
        %v1605 = vsel %vm1602, %v1604, %v1600
        %v1606 = vmul.f32 %v1534, %v1605
        %v1608 = vsel %vm1509, %v1561, 0
        %v1611 = vsel %vm1509, %v1576, 0
        %v1614 = vsel %vm1509, %v1591, 0
        %v1617 = vsel %vm1509, %v1606, 0
        %vm1619 = vcmask 1040384
        %v1621 = vsel %vm1619, %v1449, 0
        %1623 = vmatpush.msra.mxu0 0.0
        %1624 = vmatpush.msra.mxu0 0.0
        %1625 = vmatpush.msra.mxu0 0.0
        %1626 = vmatpush.msra.mxu0 0.0
        %1627 = vmatpush.msra.mxu0 0.0
        %1628 = vmatpush.msra.mxu0 0.0
        %1629 = vmatpush.msra.mxu0 0.0
        %1630 = vmatpush.msra.mxu0 0.0
        %1631 = vmatpush.msra.mxu0 0.0
        %1632 = vmatpush.msra.mxu0 0.0
        %1633 = vmatpush.msra.mxu0 0.0
        %1634 = vmatpush.msra.mxu0 0.0
        %1635 = vmatpush.msra.mxu0 %v1621
        %1636 = vmatpush.msra.mxu0 %v1446
        %1637 = vmatpush.msra.mxu0 %v1443
        %1638 = vmatpush.msra.mxu0 %v1440
        %1639 = vmatmul.f32.gmra.mxu0 %v1608
        %v1640 = vpop.f32.mrf.mxu0
        %v1641 = vadd.f32 0.0, %v1640
        %1642 = vmatmul.f32.gmra.mxu0 %v1611
        %v1643 = vpop.f32.mrf.mxu0
        %v1644 = vadd.f32 0.0, %v1643
        %1645 = vmatmul.f32.gmra.mxu0 %v1614
        %v1646 = vpop.f32.mrf.mxu0
        %v1647 = vadd.f32 0.0, %v1646
        %1648 = vmatmul.f32.gmra.mxu0 %v1617
        %v1649 = vpop.f32.mrf.mxu0
        %v1650 = vadd.f32 0.0, %v1649
        %1651 = vdwg.mxu0
        %1652 = vrot.lane.b32.xlu0 %v1382, 64
        %v1653 = vpop.permute.xlu0 %1652
        %1654 = vrot.lane.b32.xlu0 %v1385, 64
        %v1655 = vpop.permute.xlu0 %1654
        %1656 = vrot.lane.b32.xlu0 %v1388, 64
        %v1657 = vpop.permute.xlu0 %1656
        %1658 = vrot.lane.b32.xlu0 %v1391, 64
        %v1659 = vpop.permute.xlu0 %1658
        %1660 = vrot.lane.b32.xlu0 %v1411, 64
        %v1661 = vpop.permute.xlu0 %1660
        %1662 = vrot.lane.b32.xlu0 %v1414, 64
        %v1663 = vpop.permute.xlu0 %1662
        %1664 = vrot.lane.b32.xlu0 %v1417, 64
        %v1665 = vpop.permute.xlu0 %1664
        %1666 = vrot.lane.b32.xlu0 %v1420, 64
        %v1667 = vpop.permute.xlu0 %1666
        %v1668 = vsel %vm1451, %v1653, 0
        %v1670 = vsel %vm1451, %v1655, 0
        %v1672 = vsel %vm1451, %v1657, 0
        %v1674 = vsel %vm1451, %v1659, 0
        %v1676 = vsel %vm1451, %v1661, 0
        %v1678 = vsel %vm1451, %v1663, 0
        %v1680 = vsel %vm1451, %v1665, 0
        %v1682 = vsel %vm1451, %v1667, 0
        %1684 = vmatpush.xpose.msra.mxu0 0.0
        %1685 = vmatpush.xpose.msra.mxu0 0.0
        %1686 = vmatpush.xpose.msra.mxu0 0.0
        %1687 = vmatpush.xpose.msra.mxu0 0.0
        %1688 = vmatpush.xpose.msra.mxu0 0.0
        %1689 = vmatpush.xpose.msra.mxu0 0.0
        %1690 = vmatpush.xpose.msra.mxu0 0.0
        %1691 = vmatpush.xpose.msra.mxu0 0.0
        %1692 = vmatpush.xpose.msra.mxu0 0.0
        %1693 = vmatpush.xpose.msra.mxu0 0.0
        %1694 = vmatpush.xpose.msra.mxu0 0.0
        %1695 = vmatpush.xpose.msra.mxu0 0.0
        %1696 = vmatpush.xpose.msra.mxu0 %v1682
        %1697 = vmatpush.xpose.msra.mxu0 %v1680
        %1698 = vmatpush.xpose.msra.mxu0 %v1678
        %1699 = vmatpush.xpose.msra.mxu0 %v1676
        %1700 = vmatmul.f32.gmra.mxu0 %v1668
        %v1701 = vpop.f32.mrf.mxu0
        %v1702 = vadd.f32 0.0, %v1701
        %1703 = vmatmul.f32.gmra.mxu0 %v1670
        %v1704 = vpop.f32.mrf.mxu0
        %v1705 = vadd.f32 0.0, %v1704
        %1706 = vmatmul.f32.gmra.mxu0 %v1672
        %v1707 = vpop.f32.mrf.mxu0
        %v1708 = vadd.f32 0.0, %v1707
        %1709 = vmatmul.f32.gmra.mxu0 %v1674
        %v1710 = vpop.f32.mrf.mxu0
        %v1711 = vadd.f32 0.0, %v1710
        %1712 = vdwg.mxu0
        %v1713 = vmul.f32 %v1702, 0.125
        %v1714 = vmul.f32 %v1705, 0.125
        %v1715 = vmul.f32 %v1708, 0.125
        %v1716 = vmul.f32 %v1711, 0.125
        %v1717 = vsel %vm1509, %v1713, -inf
        %1718 = vmax.xlane.f32.xlu0 %v1717
        %v1719 = vpop.xlane.xlu0 %1718
        %v1720 = vsel %vm1509, %v1714, -inf
        %1721 = vmax.xlane.f32.xlu0 %v1720
        %v1722 = vpop.xlane.xlu0 %1721
        %v1723 = vsel %vm1509, %v1715, -inf
        %1724 = vmax.xlane.f32.xlu0 %v1723
        %v1725 = vpop.xlane.xlu0 %1724
        %v1726 = vsel %vm1519, %v1716, -inf
        %1727 = vmax.xlane.f32.xlu0 %v1726
        %v1728 = vpop.xlane.xlu0 %1727
        %v1729 = vsub.f32 %v1713, %v1719
        %v1730 = vsub.f32 %v1714, %v1722
        %v1731 = vsub.f32 %v1715, %v1725
        %v1732 = vsub.f32 %v1716, %v1728
        %v1733 = vmul.f32 %v1729, 1.442695
        %v1734 = vpow.pop %v1733
        %v1735 = vmul.f32 %v1730, 1.442695
        %v1736 = vpow.pop %v1735
        %v1737 = vmul.f32 %v1731, 1.442695
        %v1738 = vpow.pop %v1737
        %v1739 = vmul.f32 %v1732, 1.442695
        %v1740 = vpow.pop %v1739
        %v1741 = vsel %vm1509, %v1734, 0.0
        %1742 = vadd.xlane.f32.xlu0 %v1741
        %v1743 = vpop.xlane.xlu0 %1742
        %v1744 = vsel %vm1509, %v1736, 0.0
        %1745 = vadd.xlane.f32.xlu0 %v1744
        %v1746 = vpop.xlane.xlu0 %1745
        %v1747 = vsel %vm1509, %v1738, 0.0
        %1748 = vadd.xlane.f32.xlu0 %v1747
        %v1749 = vpop.xlane.xlu0 %1748
        %v1750 = vsel %vm1519, %v1740, 0.0
        %1751 = vadd.xlane.f32.xlu0 %v1750
        %v1752 = vpop.xlane.xlu0 %1751
        %v1753 = vrcp.pop %v1743
        %v1754 = vmul.f32 %v1743, %v1753
        %v1755 = vsub.f32 1.0, %v1754
        %v1756 = vmul.f32 %v1753, %v1755
        %v1757 = vadd.f32 %v1753, %v1756
        %vm1758 = vweird.f32 %v1743
        %vm1759 = vweird.f32 %v1753
        %vm1760 = vmor %vm1758, %vm1759
        %v1761 = vsel %vm1760, %v1753, %v1757
        %v1762 = vand.u32 2147483647, %v1743
        %vm1763 = vcmp.eq.f32.partialorder %v1762, 8.507059e+37
        %v1764 = vand.u32 %v1743, 2147483648
        %v1765 = vor.u32 1.1754944e-38, %v1764
        %v1766 = vsel %vm1763, %v1765, %v1761
        %v1767 = vmul.f32 %v1734, %v1766
        %v1768 = vrcp.pop %v1746
        %v1769 = vmul.f32 %v1746, %v1768
        %v1770 = vsub.f32 1.0, %v1769
        %v1771 = vmul.f32 %v1768, %v1770
        %v1772 = vadd.f32 %v1768, %v1771
        %vm1773 = vweird.f32 %v1746
        %vm1774 = vweird.f32 %v1768
        %vm1775 = vmor %vm1773, %vm1774
        %v1776 = vsel %vm1775, %v1768, %v1772
        %v1777 = vand.u32 2147483647, %v1746
        %vm1778 = vcmp.eq.f32.partialorder %v1777, 8.507059e+37
        %v1779 = vand.u32 %v1746, 2147483648
        %v1780 = vor.u32 1.1754944e-38, %v1779
        %v1781 = vsel %vm1778, %v1780, %v1776
        %v1782 = vmul.f32 %v1736, %v1781
        %v1783 = vrcp.pop %v1749
        %v1784 = vmul.f32 %v1749, %v1783
        %v1785 = vsub.f32 1.0, %v1784
        %v1786 = vmul.f32 %v1783, %v1785
        %v1787 = vadd.f32 %v1783, %v1786
        %vm1788 = vweird.f32 %v1749
        %vm1789 = vweird.f32 %v1783
        %vm1790 = vmor %vm1788, %vm1789
        %v1791 = vsel %vm1790, %v1783, %v1787
        %v1792 = vand.u32 2147483647, %v1749
        %vm1793 = vcmp.eq.f32.partialorder %v1792, 8.507059e+37
        %v1794 = vand.u32 %v1749, 2147483648
        %v1795 = vor.u32 1.1754944e-38, %v1794
        %v1796 = vsel %vm1793, %v1795, %v1791
        %v1797 = vmul.f32 %v1738, %v1796
        %v1798 = vrcp.pop %v1752
        %v1799 = vmul.f32 %v1752, %v1798
        %v1800 = vsub.f32 1.0, %v1799
        %v1801 = vmul.f32 %v1798, %v1800
        %v1802 = vadd.f32 %v1798, %v1801
        %vm1803 = vweird.f32 %v1752
        %vm1804 = vweird.f32 %v1798
        %vm1805 = vmor %vm1803, %vm1804
        %v1806 = vsel %vm1805, %v1798, %v1802
        %v1807 = vand.u32 2147483647, %v1752
        %vm1808 = vcmp.eq.f32.partialorder %v1807, 8.507059e+37
        %v1809 = vand.u32 %v1752, 2147483648
        %v1810 = vor.u32 1.1754944e-38, %v1809
        %v1811 = vsel %vm1808, %v1810, %v1806
        %v1812 = vmul.f32 %v1740, %v1811
        %1816 = vrot.lane.b32.xlu0 %v1440, 64
        %v1817 = vpop.permute.xlu0 %1816
        %1818 = vrot.lane.b32.xlu0 %v1443, 64
        %v1819 = vpop.permute.xlu0 %1818
        %1820 = vrot.lane.b32.xlu0 %v1446, 64
        %v1821 = vpop.permute.xlu0 %1820
        %1822 = vrot.lane.b32.xlu0 %v1449, 64
        %v1823 = vpop.permute.xlu0 %1822
        %v1828 = vsel %vm1509, %v1767, 0
        %v1831 = vsel %vm1509, %v1782, 0
        %v1834 = vsel %vm1509, %v1797, 0
        %v1837 = vsel %vm1509, %v1812, 0
        %v1839 = vsel %vm1619, %v1823, 0
        %1841 = vmatpush.msra.mxu0 0.0
        %1842 = vmatpush.msra.mxu0 0.0
        %1843 = vmatpush.msra.mxu0 0.0
        %1844 = vmatpush.msra.mxu0 0.0
        %1845 = vmatpush.msra.mxu0 0.0
        %1846 = vmatpush.msra.mxu0 0.0
        %1847 = vmatpush.msra.mxu0 0.0
        %1848 = vmatpush.msra.mxu0 0.0
        %1849 = vmatpush.msra.mxu0 0.0
        %1850 = vmatpush.msra.mxu0 0.0
        %1851 = vmatpush.msra.mxu0 0.0
        %1852 = vmatpush.msra.mxu0 0.0
        %1853 = vmatpush.msra.mxu0 %v1839
        %1854 = vmatpush.msra.mxu0 %v1821
        %1855 = vmatpush.msra.mxu0 %v1819
        %1856 = vmatpush.msra.mxu0 %v1817
        %1857 = vmatmul.f32.gmra.mxu0 %v1828
        %v1858 = vpop.f32.mrf.mxu0
        %v1859 = vadd.f32 0.0, %v1858
        %1860 = vmatmul.f32.gmra.mxu0 %v1831
        %v1861 = vpop.f32.mrf.mxu0
        %v1862 = vadd.f32 0.0, %v1861
        %1863 = vmatmul.f32.gmra.mxu0 %v1834
        %v1864 = vpop.f32.mrf.mxu0
        %v1865 = vadd.f32 0.0, %v1864
        %1866 = vmatmul.f32.gmra.mxu0 %v1837
        %v1867 = vpop.f32.mrf.mxu0
        %v1868 = vadd.f32 0.0, %v1867
        %1869 = vdwg.mxu0
        %1874 = vrot.lane.b32.xlu0 %v1859, 64
        %v1875 = vpop.permute.xlu0 %1874
        %1876 = vrot.lane.b32.xlu0 %v1862, 64
        %v1877 = vpop.permute.xlu0 %1876
        %1878 = vrot.lane.b32.xlu0 %v1865, 64
        %v1879 = vpop.permute.xlu0 %1878
        %1880 = vrot.lane.b32.xlu0 %v1868, 64
        %v1881 = vpop.permute.xlu0 %1880
        %v1886 = vsel %vm1451, %v1641, %v1875
        %v1887 = vsel %vm1451, %v1644, %v1877
        %v1888 = vsel %vm1451, %v1647, %v1879
        %v1889 = vsel %vm1451, %v1650, %v1881
        %v1890 = vld [vmem:[%s11] sm:$0xff]
        %v1891 = vld [vmem:[%s11 + $0x8] sm:$0xff]
        %v1892 = vld [vmem:[%s11 + $0x10] sm:$0xff]
        %v1893 = vld [vmem:[%s11 + $0x18] sm:$0xff]
        %v1894 = vld [vmem:[%s11 + $0x20] sm:$0xff]
        %v1895 = vld [vmem:[%s11 + $0x28] sm:$0xff]
        %v1896 = vld [vmem:[%s11 + $0x30] sm:$0xff]
        %v1897 = vld [vmem:[%s11 + $0x38] sm:$0xff]
        %v1898 = vld [vmem:[%s11 + $0x40] sm:$0xff]
        %v1899 = vld [vmem:[%s11 + $0x48] sm:$0xff]
        %v1900 = vld [vmem:[%s11 + $0x50] sm:$0xff]
        %v1901 = vld [vmem:[%s11 + $0x58] sm:$0xff]
        %v1902 = vld [vmem:[%s11 + $0x60] sm:$0xff]
        %v1903 = vld [vmem:[%s11 + $0x68] sm:$0xff]
        %v1904 = vld [vmem:[%s11 + $0x70] sm:$0xff]
        %v1905 = vld [vmem:[%s11 + $0x78] sm:$0xff]
        %1906 = vmatpush.msra.mxu0 %v1905
        %1907 = vmatpush.msra.mxu0 %v1904
        %1908 = vmatpush.msra.mxu0 %v1903
        %1909 = vmatpush.msra.mxu0 %v1902
        %1910 = vmatpush.msra.mxu0 %v1901
        %1911 = vmatpush.msra.mxu0 %v1900
        %1912 = vmatpush.msra.mxu0 %v1899
        %1913 = vmatpush.msra.mxu0 %v1898
        %1914 = vmatpush.msra.mxu0 %v1897
        %1915 = vmatpush.msra.mxu0 %v1896
        %1916 = vmatpush.msra.mxu0 %v1895
        %1917 = vmatpush.msra.mxu0 %v1894
        %1918 = vmatpush.msra.mxu0 %v1893
        %1919 = vmatpush.msra.mxu0 %v1892
        %1920 = vmatpush.msra.mxu0 %v1891
        %1921 = vmatpush.msra.mxu0 %v1890
        %1922 = vmatmul.f32.gmra.mxu0 %v1886
        %v1923 = vpop.f32.mrf.mxu0
        %v1924 = vadd.f32 0.0, %v1923
        %1925 = vmatmul.f32.gmra.mxu0 %v1887
        %v1926 = vpop.f32.mrf.mxu0
        %v1927 = vadd.f32 0.0, %v1926
        %1928 = vmatmul.f32.gmra.mxu0 %v1888
        %v1929 = vpop.f32.mrf.mxu0
        %v1930 = vadd.f32 0.0, %v1929
        %1931 = vmatmul.f32.gmra.mxu0 %v1889
        %v1932 = vpop.f32.mrf.mxu0
        %v1933 = vadd.f32 0.0, %v1932
        %1934 = vdwg.mxu0
        %v1935 = vadd.f32 %v1232, %v1924
        %v1936 = vadd.f32 %v1233, %v1927
        %v1937 = vadd.f32 %v1234, %v1930
        %v1938 = vadd.f32 %v1235, %v1933
        %v1939 = vld [vmem:[#allocation15] sm:$0x1]
        %v1940 = vld [vmem:[#allocation16] sm:$0x1]
        %v1941 = vsel %vm1117, %v1935, 0.0
        %1942 = vadd.xlane.f32.xlu0 %v1941
        %v1943 = vpop.xlane.xlu0 %1942
        %v1944 = vsel %vm1117, %v1936, 0.0
        %1945 = vadd.xlane.f32.xlu0 %v1944
        %v1946 = vpop.xlane.xlu0 %1945
        %v1947 = vsel %vm1117, %v1937, 0.0
        %1948 = vadd.xlane.f32.xlu0 %v1947
        %v1949 = vpop.xlane.xlu0 %1948
        %v1950 = vsel %vm1127, %v1938, 0.0
        %1951 = vadd.xlane.f32.xlu0 %v1950
        %v1952 = vpop.xlane.xlu0 %1951
        %v1953 = vmul.f32 %v1943, %v1137
        %v1954 = vmul.f32 %v1946, %v1137
        %v1955 = vmul.f32 %v1949, %v1137
        %v1956 = vmul.f32 %v1952, %v1137
        %v1957 = vsub.f32 %v1935, %v1953
        %v1958 = vsub.f32 %v1936, %v1954
        %v1959 = vsub.f32 %v1937, %v1955
        %v1960 = vsub.f32 %v1938, %v1956
        %v1961 = vmul.f32 %v1957, %v1957
        %v1962 = vmul.f32 %v1958, %v1958
        %v1963 = vmul.f32 %v1959, %v1959
        %v1964 = vmul.f32 %v1960, %v1960
        %v1965 = vsel %vm1117, %v1961, 0.0
        %1966 = vadd.xlane.f32.xlu0 %v1965
        %v1967 = vpop.xlane.xlu0 %1966
        %v1968 = vsel %vm1117, %v1962, 0.0
        %1969 = vadd.xlane.f32.xlu0 %v1968
        %v1970 = vpop.xlane.xlu0 %1969
        %v1971 = vsel %vm1117, %v1963, 0.0
        %1972 = vadd.xlane.f32.xlu0 %v1971
        %v1973 = vpop.xlane.xlu0 %1972
        %v1974 = vsel %vm1127, %v1964, 0.0
        %1975 = vadd.xlane.f32.xlu0 %v1974
        %v1976 = vpop.xlane.xlu0 %1975
        %v1977 = vmul.f32 %v1967, %v1137
        %v1978 = vmul.f32 %v1970, %v1137
        %v1979 = vmul.f32 %v1973, %v1137
        %v1980 = vmul.f32 %v1976, %v1137
        %v1981 = vadd.f32 %v1977, 1e-05
        %v1982 = vadd.f32 %v1978, 1e-05
        %v1983 = vadd.f32 %v1979, 1e-05
        %v1984 = vadd.f32 %v1980, 1e-05
        %v1985 = vrsqrt.pop %v1981
        %v1986 = vmul.f32 %v1985, %v1981
        %v1987 = vmul.f32 %v1986, %v1985
        %v1988 = vmul.f32 0.5, %v1987
        %v1989 = vsub.f32 1.5, %v1988
        %v1990 = vmul.f32 %v1985, %v1989
        %vm1991 = vweird.f32 %v1981
        %vm1992 = vweird.f32 %v1985
        %vm1993 = vmor %vm1991, %vm1992
        %v1994 = vsel %vm1993, %v1985, %v1990
        %v1995 = vrsqrt.pop %v1982
        %v1996 = vmul.f32 %v1995, %v1982
        %v1997 = vmul.f32 %v1996, %v1995
        %v1998 = vmul.f32 0.5, %v1997
        %v1999 = vsub.f32 1.5, %v1998
        %v2000 = vmul.f32 %v1995, %v1999
        %vm2001 = vweird.f32 %v1982
        %vm2002 = vweird.f32 %v1995
        %vm2003 = vmor %vm2001, %vm2002
        %v2004 = vsel %vm2003, %v1995, %v2000
        %v2005 = vrsqrt.pop %v1983
        %v2006 = vmul.f32 %v2005, %v1983
        %v2007 = vmul.f32 %v2006, %v2005
        %v2008 = vmul.f32 0.5, %v2007
        %v2009 = vsub.f32 1.5, %v2008
        %v2010 = vmul.f32 %v2005, %v2009
        %vm2011 = vweird.f32 %v1983
        %vm2012 = vweird.f32 %v2005
        %vm2013 = vmor %vm2011, %vm2012
        %v2014 = vsel %vm2013, %v2005, %v2010
        %v2015 = vrsqrt.pop %v1984
        %v2016 = vmul.f32 %v2015, %v1984
        %v2017 = vmul.f32 %v2016, %v2015
        %v2018 = vmul.f32 0.5, %v2017
        %v2019 = vsub.f32 1.5, %v2018
        %v2020 = vmul.f32 %v2015, %v2019
        %vm2021 = vweird.f32 %v1984
        %vm2022 = vweird.f32 %v2015
        %vm2023 = vmor %vm2021, %vm2022
        %v2024 = vsel %vm2023, %v2015, %v2020
        %v2025 = vmul.f32 %v1957, %v1994
        %v2026 = vmul.f32 %v1958, %v2004
        %v2027 = vmul.f32 %v1959, %v2014
        %v2028 = vmul.f32 %v1960, %v2024
        %v2030 = vperm.slane %v1939, 0
        %v2032 = vmul.f32 %v2025, %v2030
        %v2033 = vmul.f32 %v2026, %v2030
        %v2034 = vmul.f32 %v2027, %v2030
        %v2035 = vmul.f32 %v2028, %v2030
        %v2037 = vperm.slane %v1940, 0
        %v2039 = vadd.f32 %v2032, %v2037
        %v2040 = vadd.f32 %v2033, %v2037
        %v2041 = vadd.f32 %v2034, %v2037
        %v2042 = vadd.f32 %v2035, %v2037
        %v2043 = vld [vmem:[#allocation18] sm:$0xff]
        %v2044 = vld [vmem:[#allocation18 + $0x8] sm:$0xff]
        %v2045 = vld [vmem:[#allocation18 + $0x10] sm:$0xff]
        %v2046 = vld [vmem:[#allocation18 + $0x18] sm:$0xff]
        %v2047 = vld [vmem:[#allocation19] sm:$0x1]
        %v2049 = vperm.slane %v2047, 0
        %v2052 = vsel %vm1117, %v2039, 0
        %v2055 = vsel %vm1117, %v2040, 0
        %v2058 = vsel %vm1117, %v2041, 0
        %v2061 = vsel %vm1117, %v2042, 0
        %2063 = vmatpush.msra.mxu0 0.0
        %2064 = vmatpush.msra.mxu0 0.0
        %2065 = vmatpush.msra.mxu0 0.0
        %2066 = vmatpush.msra.mxu0 0.0
        %2067 = vmatpush.msra.mxu0 0.0
        %2068 = vmatpush.msra.mxu0 0.0
        %2069 = vmatpush.msra.mxu0 0.0
        %2070 = vmatpush.msra.mxu0 0.0
        %2071 = vmatpush.msra.mxu0 0.0
        %2072 = vmatpush.msra.mxu0 0.0
        %2073 = vmatpush.msra.mxu0 0.0
        %2074 = vmatpush.msra.mxu0 0.0
        %2075 = vmatpush.msra.mxu0 %v2046
        %2076 = vmatpush.msra.mxu0 %v2045
        %2077 = vmatpush.msra.mxu0 %v2044
        %2078 = vmatpush.msra.mxu0 %v2043
        %2079 = vmatmul.f32.gmra.mxu0 %v2052
        %v2080 = vpop.f32.mrf.mxu0
        %v2081 = vadd.f32 %v2049, %v2080
        %2082 = vmatmul.f32.gmra.mxu0 %v2055
        %v2083 = vpop.f32.mrf.mxu0
        %v2084 = vadd.f32 %v2049, %v2083
        %2085 = vmatmul.f32.gmra.mxu0 %v2058
        %v2086 = vpop.f32.mrf.mxu0
        %v2087 = vadd.f32 %v2049, %v2086
        %2088 = vmatmul.f32.gmra.mxu0 %v2061
        %v2089 = vpop.f32.mrf.mxu0
        %v2090 = vadd.f32 %v2049, %v2089
        %2091 = vdwg.mxu0
        %v2092 = vmul.f32 %v2081, 0.5
        %v2093 = vmul.f32 %v2084, 0.5
        %v2094 = vmul.f32 %v2087, 0.5
        %v2095 = vmul.f32 %v2090, 0.5
        %v2096 = vmul.f32 %v2081, 0.70710677
        %v2097 = vmul.f32 %v2084, 0.70710677
        %v2098 = vmul.f32 %v2087, 0.70710677
        %v2099 = vmul.f32 %v2090, 0.70710677
        %vm2100 = vcmp.ge.f32.partialorder %v2096, 0.0
        %vm2101 = vcmp.ge.f32.partialorder %v2097, 0.0
        %vm2102 = vcmp.ge.f32.partialorder %v2098, 0.0
        %vm2103 = vcmp.ge.f32.partialorder %v2099, 0.0
        %v2104 = vsel %vm2100, 1.0, -1.0
        %v2105 = vsel %vm2101, 1.0, -1.0
        %v2106 = vsel %vm2102, 1.0, -1.0
        %v2107 = vsel %vm2103, 1.0, -1.0
        %v2108 = vand.u32 2147483647, %v2096
        %v2109 = vand.u32 2147483647, %v2097
        %v2110 = vand.u32 2147483647, %v2098
        %v2111 = vand.u32 2147483647, %v2099
        %v2112 = vmul.f32 %v2108, 0.3275911
        %v2113 = vmul.f32 %v2109, 0.3275911
        %v2114 = vmul.f32 %v2110, 0.3275911
        %v2115 = vmul.f32 %v2111, 0.3275911
        %v2116 = vadd.f32 %v2112, 1.0
        %v2117 = vadd.f32 %v2113, 1.0
        %v2118 = vadd.f32 %v2114, 1.0
        %v2119 = vadd.f32 %v2115, 1.0
        %v2120 = vrcp.pop %v2116
        %v2121 = vmul.f32 %v2116, %v2120
        %v2122 = vsub.f32 1.0, %v2121
        %v2123 = vmul.f32 %v2120, %v2122
        %v2124 = vadd.f32 %v2120, %v2123
        %vm2125 = vweird.f32 %v2116
        %vm2126 = vweird.f32 %v2120
        %vm2127 = vmor %vm2125, %vm2126
        %v2128 = vsel %vm2127, %v2120, %v2124
        %v2129 = vand.u32 2147483647, %v2116
        %vm2130 = vcmp.eq.f32.partialorder %v2129, 8.507059e+37
        %v2131 = vand.u32 %v2116, 2147483648
        %v2132 = vor.u32 1.1754944e-38, %v2131
        %v2133 = vsel %vm2130, %v2132, %v2128
        %v2134 = vmul.f32 1.0, %v2133
        %v2135 = vrcp.pop %v2117
        %v2136 = vmul.f32 %v2117, %v2135
        %v2137 = vsub.f32 1.0, %v2136
        %v2138 = vmul.f32 %v2135, %v2137
        %v2139 = vadd.f32 %v2135, %v2138
        %vm2140 = vweird.f32 %v2117
        %vm2141 = vweird.f32 %v2135
        %vm2142 = vmor %vm2140, %vm2141
        %v2143 = vsel %vm2142, %v2135, %v2139
        %v2144 = vand.u32 2147483647, %v2117
        %vm2145 = vcmp.eq.f32.partialorder %v2144, 8.507059e+37
        %v2146 = vand.u32 %v2117, 2147483648
        %v2147 = vor.u32 1.1754944e-38, %v2146
        %v2148 = vsel %vm2145, %v2147, %v2143
        %v2149 = vmul.f32 1.0, %v2148
        %v2150 = vrcp.pop %v2118
        %v2151 = vmul.f32 %v2118, %v2150
        %v2152 = vsub.f32 1.0, %v2151
        %v2153 = vmul.f32 %v2150, %v2152
        %v2154 = vadd.f32 %v2150, %v2153
        %vm2155 = vweird.f32 %v2118
        %vm2156 = vweird.f32 %v2150
        %vm2157 = vmor %vm2155, %vm2156
        %v2158 = vsel %vm2157, %v2150, %v2154
        %v2159 = vand.u32 2147483647, %v2118
        %vm2160 = vcmp.eq.f32.partialorder %v2159, 8.507059e+37
        %v2161 = vand.u32 %v2118, 2147483648
        %v2162 = vor.u32 1.1754944e-38, %v2161
        %v2163 = vsel %vm2160, %v2162, %v2158
        %v2164 = vmul.f32 1.0, %v2163
        %v2165 = vrcp.pop %v2119
        %v2166 = vmul.f32 %v2119, %v2165
        %v2167 = vsub.f32 1.0, %v2166
        %v2168 = vmul.f32 %v2165, %v2167
        %v2169 = vadd.f32 %v2165, %v2168
        %vm2170 = vweird.f32 %v2119
        %vm2171 = vweird.f32 %v2165
        %vm2172 = vmor %vm2170, %vm2171
        %v2173 = vsel %vm2172, %v2165, %v2169
        %v2174 = vand.u32 2147483647, %v2119
        %vm2175 = vcmp.eq.f32.partialorder %v2174, 8.507059e+37
        %v2176 = vand.u32 %v2119, 2147483648
        %v2177 = vor.u32 1.1754944e-38, %v2176
        %v2178 = vsel %vm2175, %v2177, %v2173
        %v2179 = vmul.f32 1.0, %v2178
        %v2180 = vmul.f32 %v2134, 1.0614054
        %v2181 = vmul.f32 %v2149, 1.0614054
        %v2182 = vmul.f32 %v2164, 1.0614054
        %v2183 = vmul.f32 %v2179, 1.0614054
        %v2184 = vadd.f32 %v2180, -1.4531521
        %v2185 = vadd.f32 %v2181, -1.4531521
        %v2186 = vadd.f32 %v2182, -1.4531521
        %v2187 = vadd.f32 %v2183, -1.4531521
        %v2188 = vmul.f32 %v2184, %v2134
        %v2189 = vmul.f32 %v2185, %v2149
        %v2190 = vmul.f32 %v2186, %v2164
        %v2191 = vmul.f32 %v2187, %v2179
        %v2192 = vadd.f32 %v2188, 1.4214138
        %v2193 = vadd.f32 %v2189, 1.4214138
        %v2194 = vadd.f32 %v2190, 1.4214138
        %v2195 = vadd.f32 %v2191, 1.4214138
        %v2196 = vmul.f32 %v2192, %v2134
        %v2197 = vmul.f32 %v2193, %v2149
        %v2198 = vmul.f32 %v2194, %v2164
        %v2199 = vmul.f32 %v2195, %v2179
        %v2200 = vadd.f32 %v2196, -0.28449672
        %v2201 = vadd.f32 %v2197, -0.28449672
        %v2202 = vadd.f32 %v2198, -0.28449672
        %v2203 = vadd.f32 %v2199, -0.28449672
        %v2204 = vmul.f32 %v2200, %v2134
        %v2205 = vmul.f32 %v2201, %v2149
        %v2206 = vmul.f32 %v2202, %v2164
        %v2207 = vmul.f32 %v2203, %v2179
        %v2208 = vadd.f32 %v2204, 0.2548296
        %v2209 = vadd.f32 %v2205, 0.2548296
        %v2210 = vadd.f32 %v2206, 0.2548296
        %v2211 = vadd.f32 %v2207, 0.2548296
        %v2212 = vmul.f32 %v2208, %v2134
        %v2213 = vmul.f32 %v2209, %v2149
        %v2214 = vmul.f32 %v2210, %v2164
        %v2215 = vmul.f32 %v2211, %v2179
        %v2216 = vsub.f32 0.0, %v2108
        %v2217 = vsub.f32 0.0, %v2109
        %v2218 = vsub.f32 0.0, %v2110
        %v2219 = vsub.f32 0.0, %v2111
        %v2220 = vmul.f32 %v2216, %v2108
        %v2221 = vmul.f32 %v2217, %v2109
        %v2222 = vmul.f32 %v2218, %v2110
        %v2223 = vmul.f32 %v2219, %v2111
        %v2224 = vmul.f32 %v2220, 1.442695
        %v2225 = vpow.pop %v2224
        %v2226 = vmul.f32 %v2221, 1.442695
        %v2227 = vpow.pop %v2226
        %v2228 = vmul.f32 %v2222, 1.442695
        %v2229 = vpow.pop %v2228
        %v2230 = vmul.f32 %v2223, 1.442695
        %v2231 = vpow.pop %v2230
        %v2232 = vmul.f32 %v2212, %v2225
        %v2233 = vmul.f32 %v2213, %v2227
        %v2234 = vmul.f32 %v2214, %v2229
        %v2235 = vmul.f32 %v2215, %v2231
        %v2236 = vsub.f32 1.0, %v2232
        %v2237 = vsub.f32 1.0, %v2233
        %v2238 = vsub.f32 1.0, %v2234
        %v2239 = vsub.f32 1.0, %v2235
        %v2240 = vmul.f32 %v2104, %v2236
        %v2241 = vmul.f32 %v2105, %v2237
        %v2242 = vmul.f32 %v2106, %v2238
        %v2243 = vmul.f32 %v2107, %v2239
        %v2244 = vadd.f32 %v2240, 1.0
        %v2245 = vadd.f32 %v2241, 1.0
        %v2246 = vadd.f32 %v2242, 1.0
        %v2247 = vadd.f32 %v2243, 1.0
        %v2248 = vmul.f32 %v2092, %v2244
        %v2249 = vmul.f32 %v2093, %v2245
        %v2250 = vmul.f32 %v2094, %v2246
        %v2251 = vmul.f32 %v2095, %v2247
        %v2252 = vld [vmem:[%s16] sm:$0xff]
        %v2253 = vld [vmem:[%s16 + $0x8] sm:$0xff]
        %v2254 = vld [vmem:[%s16 + $0x10] sm:$0xff]
        %v2255 = vld [vmem:[%s16 + $0x18] sm:$0xff]
        %v2256 = vld [vmem:[%s16 + $0x20] sm:$0xff]
        %v2257 = vld [vmem:[%s16 + $0x28] sm:$0xff]
        %v2258 = vld [vmem:[%s16 + $0x30] sm:$0xff]
        %v2259 = vld [vmem:[%s16 + $0x38] sm:$0xff]
        %v2260 = vld [vmem:[#allocation21] sm:$0x1]
        %v2262 = vperm.slane %v2260, 0
        %v2265 = vsel %vm1451, %v2248, 0
        %v2268 = vsel %vm1451, %v2249, 0
        %v2271 = vsel %vm1451, %v2250, 0
        %v2274 = vsel %vm1451, %v2251, 0
        %2276 = vmatpush.msra.mxu0 0.0
        %2277 = vmatpush.msra.mxu0 0.0
        %2278 = vmatpush.msra.mxu0 0.0
        %2279 = vmatpush.msra.mxu0 0.0
        %2280 = vmatpush.msra.mxu0 0.0
        %2281 = vmatpush.msra.mxu0 0.0
        %2282 = vmatpush.msra.mxu0 0.0
        %2283 = vmatpush.msra.mxu0 0.0
        %2284 = vmatpush.msra.mxu0 %v2259
        %2285 = vmatpush.msra.mxu0 %v2258
        %2286 = vmatpush.msra.mxu0 %v2257
        %2287 = vmatpush.msra.mxu0 %v2256
        %2288 = vmatpush.msra.mxu0 %v2255
        %2289 = vmatpush.msra.mxu0 %v2254
        %2290 = vmatpush.msra.mxu0 %v2253
        %2291 = vmatpush.msra.mxu0 %v2252
        %2292 = vmatmul.f32.gmra.mxu0 %v2265
        %v2293 = vpop.f32.mrf.mxu0
        %v2294 = vadd.f32 %v2262, %v2293
        %2295 = vmatmul.f32.gmra.mxu0 %v2268
        %v2296 = vpop.f32.mrf.mxu0
        %v2297 = vadd.f32 %v2262, %v2296
        %2298 = vmatmul.f32.gmra.mxu0 %v2271
        %v2299 = vpop.f32.mrf.mxu0
        %v2300 = vadd.f32 %v2262, %v2299
        %2301 = vmatmul.f32.gmra.mxu0 %v2274
        %v2302 = vpop.f32.mrf.mxu0
        %v2303 = vadd.f32 %v2262, %v2302
        %2304 = vdwg.mxu0
        %v2305 = vadd.f32 %v1935, %v2294
        %v2306 = vadd.f32 %v1936, %v2297
        %v2307 = vadd.f32 %v1937, %v2300
        %v2308 = vadd.f32 %v1938, %v2303
        %s2309 = scalar_lea.vmem [#allocation10], 1
        %v2310 = vld [vmem:[%s2309] sm:$0x1]
        %s2311 = scalar_lea.vmem [#allocation12], 1
        %v2312 = vld [vmem:[%s2311] sm:$0x1]
        %v2313 = vsel %vm1117, %v2305, 0.0
        %2314 = vadd.xlane.f32.xlu0 %v2313
        %v2315 = vpop.xlane.xlu0 %2314
        %v2316 = vsel %vm1117, %v2306, 0.0
        %2317 = vadd.xlane.f32.xlu0 %v2316
        %v2318 = vpop.xlane.xlu0 %2317
        %v2319 = vsel %vm1117, %v2307, 0.0
        %2320 = vadd.xlane.f32.xlu0 %v2319
        %v2321 = vpop.xlane.xlu0 %2320
        %v2322 = vsel %vm1127, %v2308, 0.0
        %2323 = vadd.xlane.f32.xlu0 %v2322
        %v2324 = vpop.xlane.xlu0 %2323
        %v2325 = vmul.f32 %v2315, %v1137
        %v2326 = vmul.f32 %v2318, %v1137
        %v2327 = vmul.f32 %v2321, %v1137
        %v2328 = vmul.f32 %v2324, %v1137
        %v2329 = vsub.f32 %v2305, %v2325
        %v2330 = vsub.f32 %v2306, %v2326
        %v2331 = vsub.f32 %v2307, %v2327
        %v2332 = vsub.f32 %v2308, %v2328
        %v2333 = vmul.f32 %v2329, %v2329
        %v2334 = vmul.f32 %v2330, %v2330
        %v2335 = vmul.f32 %v2331, %v2331
        %v2336 = vmul.f32 %v2332, %v2332
        %v2337 = vsel %vm1117, %v2333, 0.0
        %2338 = vadd.xlane.f32.xlu0 %v2337
        %v2339 = vpop.xlane.xlu0 %2338
        %v2340 = vsel %vm1117, %v2334, 0.0
        %2341 = vadd.xlane.f32.xlu0 %v2340
        %v2342 = vpop.xlane.xlu0 %2341
        %v2343 = vsel %vm1117, %v2335, 0.0
        %2344 = vadd.xlane.f32.xlu0 %v2343
        %v2345 = vpop.xlane.xlu0 %2344
        %v2346 = vsel %vm1127, %v2336, 0.0
        %2347 = vadd.xlane.f32.xlu0 %v2346
        %v2348 = vpop.xlane.xlu0 %2347
        %v2349 = vmul.f32 %v2339, %v1137
        %v2350 = vmul.f32 %v2342, %v1137
        %v2351 = vmul.f32 %v2345, %v1137
        %v2352 = vmul.f32 %v2348, %v1137
        %v2353 = vadd.f32 %v2349, 1e-05
        %v2354 = vadd.f32 %v2350, 1e-05
        %v2355 = vadd.f32 %v2351, 1e-05
        %v2356 = vadd.f32 %v2352, 1e-05
        %v2357 = vrsqrt.pop %v2353
        %v2358 = vmul.f32 %v2357, %v2353
        %v2359 = vmul.f32 %v2358, %v2357
        %v2360 = vmul.f32 0.5, %v2359
        %v2361 = vsub.f32 1.5, %v2360
        %v2362 = vmul.f32 %v2357, %v2361
        %vm2363 = vweird.f32 %v2353
        %vm2364 = vweird.f32 %v2357
        %vm2365 = vmor %vm2363, %vm2364
        %v2366 = vsel %vm2365, %v2357, %v2362
        %v2367 = vrsqrt.pop %v2354
        %v2368 = vmul.f32 %v2367, %v2354
        %v2369 = vmul.f32 %v2368, %v2367
        %v2370 = vmul.f32 0.5, %v2369
        %v2371 = vsub.f32 1.5, %v2370
        %v2372 = vmul.f32 %v2367, %v2371
        %vm2373 = vweird.f32 %v2354
        %vm2374 = vweird.f32 %v2367
        %vm2375 = vmor %vm2373, %vm2374
        %v2376 = vsel %vm2375, %v2367, %v2372
        %v2377 = vrsqrt.pop %v2355
        %v2378 = vmul.f32 %v2377, %v2355
        %v2379 = vmul.f32 %v2378, %v2377
        %v2380 = vmul.f32 0.5, %v2379
        %v2381 = vsub.f32 1.5, %v2380
        %v2382 = vmul.f32 %v2377, %v2381
        %vm2383 = vweird.f32 %v2355
        %vm2384 = vweird.f32 %v2377
        %vm2385 = vmor %vm2383, %vm2384
        %v2386 = vsel %vm2385, %v2377, %v2382
        %v2387 = vrsqrt.pop %v2356
        %v2388 = vmul.f32 %v2387, %v2356
        %v2389 = vmul.f32 %v2388, %v2387
        %v2390 = vmul.f32 0.5, %v2389
        %v2391 = vsub.f32 1.5, %v2390
        %v2392 = vmul.f32 %v2387, %v2391
        %vm2393 = vweird.f32 %v2356
        %vm2394 = vweird.f32 %v2387
        %vm2395 = vmor %vm2393, %vm2394
        %v2396 = vsel %vm2395, %v2387, %v2392
        %v2397 = vmul.f32 %v2329, %v2366
        %v2398 = vmul.f32 %v2330, %v2376
        %v2399 = vmul.f32 %v2331, %v2386
        %v2400 = vmul.f32 %v2332, %v2396
        %v2402 = vperm.slane %v2310, 0
        %v2404 = vmul.f32 %v2397, %v2402
        %v2405 = vmul.f32 %v2398, %v2402
        %v2406 = vmul.f32 %v2399, %v2402
        %v2407 = vmul.f32 %v2400, %v2402
        %v2409 = vperm.slane %v2312, 0
        %v2411 = vadd.f32 %v2404, %v2409
        %v2412 = vadd.f32 %v2405, %v2409
        %v2413 = vadd.f32 %v2406, %v2409
        %v2414 = vadd.f32 %v2407, %v2409
        %s2415 = scalar_lea.vmem [#allocation13], 96
        %v2416 = vld [vmem:[%s2415] sm:$0xff]
        %v2417 = vld [vmem:[%s2415 + $0x8] sm:$0xff]
        %v2418 = vld [vmem:[%s2415 + $0x10] sm:$0xff]
        %v2419 = vld [vmem:[%s2415 + $0x18] sm:$0xff]
        %v2420 = vld [vmem:[%s2415 + $0x20] sm:$0xff]
        %v2421 = vld [vmem:[%s2415 + $0x28] sm:$0xff]
        %v2422 = vld [vmem:[%s2415 + $0x30] sm:$0xff]
        %v2423 = vld [vmem:[%s2415 + $0x38] sm:$0xff]
        %v2424 = vld [vmem:[%s2415 + $0x40] sm:$0xff]
        %v2425 = vld [vmem:[%s2415 + $0x48] sm:$0xff]
        %v2426 = vld [vmem:[%s2415 + $0x50] sm:$0xff]
        %v2427 = vld [vmem:[%s2415 + $0x58] sm:$0xff]
        %v2429 = vsel %vm1117, %v2411, 0
        %v2432 = vsel %vm1117, %v2412, 0
        %v2435 = vsel %vm1117, %v2413, 0
        %v2438 = vsel %vm1117, %v2414, 0
        %2440 = vmatpush.msra.mxu0 0.0
        %2441 = vmatpush.msra.mxu0 0.0
        %2442 = vmatpush.msra.mxu0 0.0
        %2443 = vmatpush.msra.mxu0 0.0
        %2444 = vmatpush.msra.mxu0 0.0
        %2445 = vmatpush.msra.mxu0 0.0
        %2446 = vmatpush.msra.mxu0 0.0
        %2447 = vmatpush.msra.mxu0 0.0
        %2448 = vmatpush.msra.mxu0 0.0
        %2449 = vmatpush.msra.mxu0 0.0
        %2450 = vmatpush.msra.mxu0 0.0
        %2451 = vmatpush.msra.mxu0 0.0
        %2452 = vmatpush.msra.mxu0 %v2425
        %2453 = vmatpush.msra.mxu0 %v2422
        %2454 = vmatpush.msra.mxu0 %v2419
        %2455 = vmatpush.msra.mxu0 %v2416
        %2456 = vmatmul.f32.gmra.mxu0 %v2429
        %v2457 = vpop.f32.mrf.mxu0
        %v2458 = vadd.f32 0.0, %v2457
        %2459 = vmatmul.f32.gmra.mxu0 %v2432
        %v2460 = vpop.f32.mrf.mxu0
        %v2461 = vadd.f32 0.0, %v2460
        %2462 = vmatmul.f32.gmra.mxu0 %v2435
        %v2463 = vpop.f32.mrf.mxu0
        %v2464 = vadd.f32 0.0, %v2463
        %2465 = vmatmul.f32.gmra.mxu0 %v2438
        %v2466 = vpop.f32.mrf.mxu0
        %v2467 = vadd.f32 0.0, %v2466
        %2468 = vdwg.mxu0
        %2469 = vmatpush.msra.mxu0 0.0
        %2470 = vmatpush.msra.mxu0 0.0
        %2471 = vmatpush.msra.mxu0 0.0
        %2472 = vmatpush.msra.mxu0 0.0
        %2473 = vmatpush.msra.mxu0 0.0
        %2474 = vmatpush.msra.mxu0 0.0
        %2475 = vmatpush.msra.mxu0 0.0
        %2476 = vmatpush.msra.mxu0 0.0
        %2477 = vmatpush.msra.mxu0 0.0
        %2478 = vmatpush.msra.mxu0 0.0
        %2479 = vmatpush.msra.mxu0 0.0
        %2480 = vmatpush.msra.mxu0 0.0
        %2481 = vmatpush.msra.mxu0 %v2426
        %2482 = vmatpush.msra.mxu0 %v2423
        %2483 = vmatpush.msra.mxu0 %v2420
        %2484 = vmatpush.msra.mxu0 %v2417
        %2485 = vmatmul.f32.gmra.mxu0 %v2429
        %v2486 = vpop.f32.mrf.mxu0
        %v2487 = vadd.f32 0.0, %v2486
        %2488 = vmatmul.f32.gmra.mxu0 %v2432
        %v2489 = vpop.f32.mrf.mxu0
        %v2490 = vadd.f32 0.0, %v2489
        %2491 = vmatmul.f32.gmra.mxu0 %v2435
        %v2492 = vpop.f32.mrf.mxu0
        %v2493 = vadd.f32 0.0, %v2492
        %2494 = vmatmul.f32.gmra.mxu0 %v2438
        %v2495 = vpop.f32.mrf.mxu0
        %v2496 = vadd.f32 0.0, %v2495
        %2497 = vdwg.mxu0
        %2498 = vmatpush.msra.mxu0 0.0
        %2499 = vmatpush.msra.mxu0 0.0
        %2500 = vmatpush.msra.mxu0 0.0
        %2501 = vmatpush.msra.mxu0 0.0
        %2502 = vmatpush.msra.mxu0 0.0
        %2503 = vmatpush.msra.mxu0 0.0
        %2504 = vmatpush.msra.mxu0 0.0
        %2505 = vmatpush.msra.mxu0 0.0
        %2506 = vmatpush.msra.mxu0 0.0
        %2507 = vmatpush.msra.mxu0 0.0
        %2508 = vmatpush.msra.mxu0 0.0
        %2509 = vmatpush.msra.mxu0 0.0
        %2510 = vmatpush.msra.mxu0 %v2427
        %2511 = vmatpush.msra.mxu0 %v2424
        %2512 = vmatpush.msra.mxu0 %v2421
        %2513 = vmatpush.msra.mxu0 %v2418
        %2514 = vmatmul.f32.gmra.mxu0 %v2429
        %v2515 = vpop.f32.mrf.mxu0
        %v2516 = vadd.f32 0.0, %v2515
        %2517 = vmatmul.f32.gmra.mxu0 %v2432
        %v2518 = vpop.f32.mrf.mxu0
        %v2519 = vadd.f32 0.0, %v2518
        %2520 = vmatmul.f32.gmra.mxu0 %v2435
        %v2521 = vpop.f32.mrf.mxu0
        %v2522 = vadd.f32 0.0, %v2521
        %2523 = vmatmul.f32.gmra.mxu0 %v2438
        %v2524 = vpop.f32.mrf.mxu0
        %v2525 = vadd.f32 0.0, %v2524
        %2526 = vdwg.mxu0
        %v2528 = vsel %vm1451, %v2458, 0
        %v2531 = vsel %vm1451, %v2461, 0
        %v2534 = vsel %vm1451, %v2464, 0
        %v2537 = vsel %vm1451, %v2467, 0
        %v2540 = vsel %vm1451, %v2487, 0
        %v2543 = vsel %vm1451, %v2490, 0
        %v2546 = vsel %vm1451, %v2493, 0
        %v2549 = vsel %vm1451, %v2496, 0
        %2551 = vmatpush.xpose.msra.mxu0 0.0
        %2552 = vmatpush.xpose.msra.mxu0 0.0
        %2553 = vmatpush.xpose.msra.mxu0 0.0
        %2554 = vmatpush.xpose.msra.mxu0 0.0
        %2555 = vmatpush.xpose.msra.mxu0 0.0
        %2556 = vmatpush.xpose.msra.mxu0 0.0
        %2557 = vmatpush.xpose.msra.mxu0 0.0
        %2558 = vmatpush.xpose.msra.mxu0 0.0
        %2559 = vmatpush.xpose.msra.mxu0 0.0
        %2560 = vmatpush.xpose.msra.mxu0 0.0
        %2561 = vmatpush.xpose.msra.mxu0 0.0
        %2562 = vmatpush.xpose.msra.mxu0 0.0
        %2563 = vmatpush.xpose.msra.mxu0 %v2549
        %2564 = vmatpush.xpose.msra.mxu0 %v2546
        %2565 = vmatpush.xpose.msra.mxu0 %v2543
        %2566 = vmatpush.xpose.msra.mxu0 %v2540
        %2567 = vmatmul.f32.gmra.mxu0 %v2528
        %v2568 = vpop.f32.mrf.mxu0
        %v2569 = vadd.f32 0.0, %v2568
        %2570 = vmatmul.f32.gmra.mxu0 %v2531
        %v2571 = vpop.f32.mrf.mxu0
        %v2572 = vadd.f32 0.0, %v2571
        %2573 = vmatmul.f32.gmra.mxu0 %v2534
        %v2574 = vpop.f32.mrf.mxu0
        %v2575 = vadd.f32 0.0, %v2574
        %2576 = vmatmul.f32.gmra.mxu0 %v2537
        %v2577 = vpop.f32.mrf.mxu0
        %v2578 = vadd.f32 0.0, %v2577
        %2579 = vdwg.mxu0
        %v2580 = vmul.f32 %v2569, 0.125
        %v2581 = vmul.f32 %v2572, 0.125
        %v2582 = vmul.f32 %v2575, 0.125
        %v2583 = vmul.f32 %v2578, 0.125
        %v2584 = vsel %vm1509, %v2580, -inf
        %2585 = vmax.xlane.f32.xlu0 %v2584
        %v2586 = vpop.xlane.xlu0 %2585
        %v2587 = vsel %vm1509, %v2581, -inf
        %2588 = vmax.xlane.f32.xlu0 %v2587
        %v2589 = vpop.xlane.xlu0 %2588
        %v2590 = vsel %vm1509, %v2582, -inf
        %2591 = vmax.xlane.f32.xlu0 %v2590
        %v2592 = vpop.xlane.xlu0 %2591
        %v2593 = vsel %vm1519, %v2583, -inf
        %2594 = vmax.xlane.f32.xlu0 %v2593
        %v2595 = vpop.xlane.xlu0 %2594
        %v2596 = vsub.f32 %v2580, %v2586
        %v2597 = vsub.f32 %v2581, %v2589
        %v2598 = vsub.f32 %v2582, %v2592
        %v2599 = vsub.f32 %v2583, %v2595
        %v2600 = vmul.f32 %v2596, 1.442695
        %v2601 = vpow.pop %v2600
        %v2602 = vmul.f32 %v2597, 1.442695
        %v2603 = vpow.pop %v2602
        %v2604 = vmul.f32 %v2598, 1.442695
        %v2605 = vpow.pop %v2604
        %v2606 = vmul.f32 %v2599, 1.442695
        %v2607 = vpow.pop %v2606
        %v2608 = vsel %vm1509, %v2601, 0.0
        %2609 = vadd.xlane.f32.xlu0 %v2608
        %v2610 = vpop.xlane.xlu0 %2609
        %v2611 = vsel %vm1509, %v2603, 0.0
        %2612 = vadd.xlane.f32.xlu0 %v2611
        %v2613 = vpop.xlane.xlu0 %2612
        %v2614 = vsel %vm1509, %v2605, 0.0
        %2615 = vadd.xlane.f32.xlu0 %v2614
        %v2616 = vpop.xlane.xlu0 %2615
        %v2617 = vsel %vm1519, %v2607, 0.0
        %2618 = vadd.xlane.f32.xlu0 %v2617
        %v2619 = vpop.xlane.xlu0 %2618
        %v2620 = vrcp.pop %v2610
        %v2621 = vmul.f32 %v2610, %v2620
        %v2622 = vsub.f32 1.0, %v2621
        %v2623 = vmul.f32 %v2620, %v2622
        %v2624 = vadd.f32 %v2620, %v2623
        %vm2625 = vweird.f32 %v2610
        %vm2626 = vweird.f32 %v2620
        %vm2627 = vmor %vm2625, %vm2626
        %v2628 = vsel %vm2627, %v2620, %v2624
        %v2629 = vand.u32 2147483647, %v2610
        %vm2630 = vcmp.eq.f32.partialorder %v2629, 8.507059e+37
        %v2631 = vand.u32 %v2610, 2147483648
        %v2632 = vor.u32 1.1754944e-38, %v2631
        %v2633 = vsel %vm2630, %v2632, %v2628
        %v2634 = vmul.f32 %v2601, %v2633
        %v2635 = vrcp.pop %v2613
        %v2636 = vmul.f32 %v2613, %v2635
        %v2637 = vsub.f32 1.0, %v2636
        %v2638 = vmul.f32 %v2635, %v2637
        %v2639 = vadd.f32 %v2635, %v2638
        %vm2640 = vweird.f32 %v2613
        %vm2641 = vweird.f32 %v2635
        %vm2642 = vmor %vm2640, %vm2641
        %v2643 = vsel %vm2642, %v2635, %v2639
        %v2644 = vand.u32 2147483647, %v2613
        %vm2645 = vcmp.eq.f32.partialorder %v2644, 8.507059e+37
        %v2646 = vand.u32 %v2613, 2147483648
        %v2647 = vor.u32 1.1754944e-38, %v2646
        %v2648 = vsel %vm2645, %v2647, %v2643
        %v2649 = vmul.f32 %v2603, %v2648
        %v2650 = vrcp.pop %v2616
        %v2651 = vmul.f32 %v2616, %v2650
        %v2652 = vsub.f32 1.0, %v2651
        %v2653 = vmul.f32 %v2650, %v2652
        %v2654 = vadd.f32 %v2650, %v2653
        %vm2655 = vweird.f32 %v2616
        %vm2656 = vweird.f32 %v2650
        %vm2657 = vmor %vm2655, %vm2656
        %v2658 = vsel %vm2657, %v2650, %v2654
        %v2659 = vand.u32 2147483647, %v2616
        %vm2660 = vcmp.eq.f32.partialorder %v2659, 8.507059e+37
        %v2661 = vand.u32 %v2616, 2147483648
        %v2662 = vor.u32 1.1754944e-38, %v2661
        %v2663 = vsel %vm2660, %v2662, %v2658
        %v2664 = vmul.f32 %v2605, %v2663
        %v2665 = vrcp.pop %v2619
        %v2666 = vmul.f32 %v2619, %v2665
        %v2667 = vsub.f32 1.0, %v2666
        %v2668 = vmul.f32 %v2665, %v2667
        %v2669 = vadd.f32 %v2665, %v2668
        %vm2670 = vweird.f32 %v2619
        %vm2671 = vweird.f32 %v2665
        %vm2672 = vmor %vm2670, %vm2671
        %v2673 = vsel %vm2672, %v2665, %v2669
        %v2674 = vand.u32 2147483647, %v2619
        %vm2675 = vcmp.eq.f32.partialorder %v2674, 8.507059e+37
        %v2676 = vand.u32 %v2619, 2147483648
        %v2677 = vor.u32 1.1754944e-38, %v2676
        %v2678 = vsel %vm2675, %v2677, %v2673
        %v2679 = vmul.f32 %v2607, %v2678
        %v2681 = vsel %vm1509, %v2634, 0
        %v2684 = vsel %vm1509, %v2649, 0
        %v2687 = vsel %vm1509, %v2664, 0
        %v2690 = vsel %vm1509, %v2679, 0
        %v2693 = vsel %vm1619, %v2525, 0
        %2695 = vmatpush.msra.mxu0 0.0
        %2696 = vmatpush.msra.mxu0 0.0
        %2697 = vmatpush.msra.mxu0 0.0
        %2698 = vmatpush.msra.mxu0 0.0
        %2699 = vmatpush.msra.mxu0 0.0
        %2700 = vmatpush.msra.mxu0 0.0
        %2701 = vmatpush.msra.mxu0 0.0
        %2702 = vmatpush.msra.mxu0 0.0
        %2703 = vmatpush.msra.mxu0 0.0
        %2704 = vmatpush.msra.mxu0 0.0
        %2705 = vmatpush.msra.mxu0 0.0
        %2706 = vmatpush.msra.mxu0 0.0
        %2707 = vmatpush.msra.mxu0 %v2693
        %2708 = vmatpush.msra.mxu0 %v2522
        %2709 = vmatpush.msra.mxu0 %v2519
        %2710 = vmatpush.msra.mxu0 %v2516
        %2711 = vmatmul.f32.gmra.mxu0 %v2681
        %v2712 = vpop.f32.mrf.mxu0
        %v2713 = vadd.f32 0.0, %v2712
        %2714 = vmatmul.f32.gmra.mxu0 %v2684
        %v2715 = vpop.f32.mrf.mxu0
        %v2716 = vadd.f32 0.0, %v2715
        %2717 = vmatmul.f32.gmra.mxu0 %v2687
        %v2718 = vpop.f32.mrf.mxu0
        %v2719 = vadd.f32 0.0, %v2718
        %2720 = vmatmul.f32.gmra.mxu0 %v2690
        %v2721 = vpop.f32.mrf.mxu0
        %v2722 = vadd.f32 0.0, %v2721
        %2723 = vdwg.mxu0
        %2724 = vrot.lane.b32.xlu0 %v2458, 64
        %v2725 = vpop.permute.xlu0 %2724
        %2726 = vrot.lane.b32.xlu0 %v2461, 64
        %v2727 = vpop.permute.xlu0 %2726
        %2728 = vrot.lane.b32.xlu0 %v2464, 64
        %v2729 = vpop.permute.xlu0 %2728
        %2730 = vrot.lane.b32.xlu0 %v2467, 64
        %v2731 = vpop.permute.xlu0 %2730
        %2732 = vrot.lane.b32.xlu0 %v2487, 64
        %v2733 = vpop.permute.xlu0 %2732
        %2734 = vrot.lane.b32.xlu0 %v2490, 64
        %v2735 = vpop.permute.xlu0 %2734
        %2736 = vrot.lane.b32.xlu0 %v2493, 64
        %v2737 = vpop.permute.xlu0 %2736
        %2738 = vrot.lane.b32.xlu0 %v2496, 64
        %v2739 = vpop.permute.xlu0 %2738
        %v2740 = vsel %vm1451, %v2725, 0
        %v2742 = vsel %vm1451, %v2727, 0
        %v2744 = vsel %vm1451, %v2729, 0
        %v2746 = vsel %vm1451, %v2731, 0
        %v2748 = vsel %vm1451, %v2733, 0
        %v2750 = vsel %vm1451, %v2735, 0
        %v2752 = vsel %vm1451, %v2737, 0
        %v2754 = vsel %vm1451, %v2739, 0
        %2756 = vmatpush.xpose.msra.mxu0 0.0
        %2757 = vmatpush.xpose.msra.mxu0 0.0
        %2758 = vmatpush.xpose.msra.mxu0 0.0
        %2759 = vmatpush.xpose.msra.mxu0 0.0
        %2760 = vmatpush.xpose.msra.mxu0 0.0
        %2761 = vmatpush.xpose.msra.mxu0 0.0
        %2762 = vmatpush.xpose.msra.mxu0 0.0
        %2763 = vmatpush.xpose.msra.mxu0 0.0
        %2764 = vmatpush.xpose.msra.mxu0 0.0
        %2765 = vmatpush.xpose.msra.mxu0 0.0
        %2766 = vmatpush.xpose.msra.mxu0 0.0
        %2767 = vmatpush.xpose.msra.mxu0 0.0
        %2768 = vmatpush.xpose.msra.mxu0 %v2754
        %2769 = vmatpush.xpose.msra.mxu0 %v2752
        %2770 = vmatpush.xpose.msra.mxu0 %v2750
        %2771 = vmatpush.xpose.msra.mxu0 %v2748
        %2772 = vmatmul.f32.gmra.mxu0 %v2740
        %v2773 = vpop.f32.mrf.mxu0
        %v2774 = vadd.f32 0.0, %v2773
        %2775 = vmatmul.f32.gmra.mxu0 %v2742
        %v2776 = vpop.f32.mrf.mxu0
        %v2777 = vadd.f32 0.0, %v2776
        %2778 = vmatmul.f32.gmra.mxu0 %v2744
        %v2779 = vpop.f32.mrf.mxu0
        %v2780 = vadd.f32 0.0, %v2779
        %2781 = vmatmul.f32.gmra.mxu0 %v2746
        %v2782 = vpop.f32.mrf.mxu0
        %v2783 = vadd.f32 0.0, %v2782
        %2784 = vdwg.mxu0
        %v2785 = vmul.f32 %v2774, 0.125
        %v2786 = vmul.f32 %v2777, 0.125
        %v2787 = vmul.f32 %v2780, 0.125
        %v2788 = vmul.f32 %v2783, 0.125
        %v2789 = vsel %vm1509, %v2785, -inf
        %2790 = vmax.xlane.f32.xlu0 %v2789
        %v2791 = vpop.xlane.xlu0 %2790
        %v2792 = vsel %vm1509, %v2786, -inf
        %2793 = vmax.xlane.f32.xlu0 %v2792
        %v2794 = vpop.xlane.xlu0 %2793
        %v2795 = vsel %vm1509, %v2787, -inf
        %2796 = vmax.xlane.f32.xlu0 %v2795
        %v2797 = vpop.xlane.xlu0 %2796
        %v2798 = vsel %vm1519, %v2788, -inf
        %2799 = vmax.xlane.f32.xlu0 %v2798
        %v2800 = vpop.xlane.xlu0 %2799
        %v2801 = vsub.f32 %v2785, %v2791
        %v2802 = vsub.f32 %v2786, %v2794
        %v2803 = vsub.f32 %v2787, %v2797
        %v2804 = vsub.f32 %v2788, %v2800
        %v2805 = vmul.f32 %v2801, 1.442695
        %v2806 = vpow.pop %v2805
        %v2807 = vmul.f32 %v2802, 1.442695
        %v2808 = vpow.pop %v2807
        %v2809 = vmul.f32 %v2803, 1.442695
        %v2810 = vpow.pop %v2809
        %v2811 = vmul.f32 %v2804, 1.442695
        %v2812 = vpow.pop %v2811
        %v2813 = vsel %vm1509, %v2806, 0.0
        %2814 = vadd.xlane.f32.xlu0 %v2813
        %v2815 = vpop.xlane.xlu0 %2814
        %v2816 = vsel %vm1509, %v2808, 0.0
        %2817 = vadd.xlane.f32.xlu0 %v2816
        %v2818 = vpop.xlane.xlu0 %2817
        %v2819 = vsel %vm1509, %v2810, 0.0
        %2820 = vadd.xlane.f32.xlu0 %v2819
        %v2821 = vpop.xlane.xlu0 %2820
        %v2822 = vsel %vm1519, %v2812, 0.0
        %2823 = vadd.xlane.f32.xlu0 %v2822
        %v2824 = vpop.xlane.xlu0 %2823
        %v2825 = vrcp.pop %v2815
        %v2826 = vmul.f32 %v2815, %v2825
        %v2827 = vsub.f32 1.0, %v2826
        %v2828 = vmul.f32 %v2825, %v2827
        %v2829 = vadd.f32 %v2825, %v2828
        %vm2830 = vweird.f32 %v2815
        %vm2831 = vweird.f32 %v2825
        %vm2832 = vmor %vm2830, %vm2831
        %v2833 = vsel %vm2832, %v2825, %v2829
        %v2834 = vand.u32 2147483647, %v2815
        %vm2835 = vcmp.eq.f32.partialorder %v2834, 8.507059e+37
        %v2836 = vand.u32 %v2815, 2147483648
        %v2837 = vor.u32 1.1754944e-38, %v2836
        %v2838 = vsel %vm2835, %v2837, %v2833
        %v2839 = vmul.f32 %v2806, %v2838
        %v2840 = vrcp.pop %v2818
        %v2841 = vmul.f32 %v2818, %v2840
        %v2842 = vsub.f32 1.0, %v2841
        %v2843 = vmul.f32 %v2840, %v2842
        %v2844 = vadd.f32 %v2840, %v2843
        %vm2845 = vweird.f32 %v2818
        %vm2846 = vweird.f32 %v2840
        %vm2847 = vmor %vm2845, %vm2846
        %v2848 = vsel %vm2847, %v2840, %v2844
        %v2849 = vand.u32 2147483647, %v2818
        %vm2850 = vcmp.eq.f32.partialorder %v2849, 8.507059e+37
        %v2851 = vand.u32 %v2818, 2147483648
        %v2852 = vor.u32 1.1754944e-38, %v2851
        %v2853 = vsel %vm2850, %v2852, %v2848
        %v2854 = vmul.f32 %v2808, %v2853
        %v2855 = vrcp.pop %v2821
        %v2856 = vmul.f32 %v2821, %v2855
        %v2857 = vsub.f32 1.0, %v2856
        %v2858 = vmul.f32 %v2855, %v2857
        %v2859 = vadd.f32 %v2855, %v2858
        %vm2860 = vweird.f32 %v2821
        %vm2861 = vweird.f32 %v2855
        %vm2862 = vmor %vm2860, %vm2861
        %v2863 = vsel %vm2862, %v2855, %v2859
        %v2864 = vand.u32 2147483647, %v2821
        %vm2865 = vcmp.eq.f32.partialorder %v2864, 8.507059e+37
        %v2866 = vand.u32 %v2821, 2147483648
        %v2867 = vor.u32 1.1754944e-38, %v2866
        %v2868 = vsel %vm2865, %v2867, %v2863
        %v2869 = vmul.f32 %v2810, %v2868
        %v2870 = vrcp.pop %v2824
        %v2871 = vmul.f32 %v2824, %v2870
        %v2872 = vsub.f32 1.0, %v2871
        %v2873 = vmul.f32 %v2870, %v2872
        %v2874 = vadd.f32 %v2870, %v2873
        %vm2875 = vweird.f32 %v2824
        %vm2876 = vweird.f32 %v2870
        %vm2877 = vmor %vm2875, %vm2876
        %v2878 = vsel %vm2877, %v2870, %v2874
        %v2879 = vand.u32 2147483647, %v2824
        %vm2880 = vcmp.eq.f32.partialorder %v2879, 8.507059e+37
        %v2881 = vand.u32 %v2824, 2147483648
        %v2882 = vor.u32 1.1754944e-38, %v2881
        %v2883 = vsel %vm2880, %v2882, %v2878
        %v2884 = vmul.f32 %v2812, %v2883
        %2888 = vrot.lane.b32.xlu0 %v2516, 64
        %v2889 = vpop.permute.xlu0 %2888
        %2890 = vrot.lane.b32.xlu0 %v2519, 64
        %v2891 = vpop.permute.xlu0 %2890
        %2892 = vrot.lane.b32.xlu0 %v2522, 64
        %v2893 = vpop.permute.xlu0 %2892
        %2894 = vrot.lane.b32.xlu0 %v2525, 64
        %v2895 = vpop.permute.xlu0 %2894
        %v2900 = vsel %vm1509, %v2839, 0
        %v2903 = vsel %vm1509, %v2854, 0
        %v2906 = vsel %vm1509, %v2869, 0
        %v2909 = vsel %vm1509, %v2884, 0
        %v2911 = vsel %vm1619, %v2895, 0
        %2913 = vmatpush.msra.mxu0 0.0
        %2914 = vmatpush.msra.mxu0 0.0
        %2915 = vmatpush.msra.mxu0 0.0
        %2916 = vmatpush.msra.mxu0 0.0
        %2917 = vmatpush.msra.mxu0 0.0
        %2918 = vmatpush.msra.mxu0 0.0
        %2919 = vmatpush.msra.mxu0 0.0
        %2920 = vmatpush.msra.mxu0 0.0
        %2921 = vmatpush.msra.mxu0 0.0
        %2922 = vmatpush.msra.mxu0 0.0
        %2923 = vmatpush.msra.mxu0 0.0
        %2924 = vmatpush.msra.mxu0 0.0
        %2925 = vmatpush.msra.mxu0 %v2911
        %2926 = vmatpush.msra.mxu0 %v2893
        %2927 = vmatpush.msra.mxu0 %v2891
        %2928 = vmatpush.msra.mxu0 %v2889
        %2929 = vmatmul.f32.gmra.mxu0 %v2900
        %v2930 = vpop.f32.mrf.mxu0
        %v2931 = vadd.f32 0.0, %v2930
        %2932 = vmatmul.f32.gmra.mxu0 %v2903
        %v2933 = vpop.f32.mrf.mxu0
        %v2934 = vadd.f32 0.0, %v2933
        %2935 = vmatmul.f32.gmra.mxu0 %v2906
        %v2936 = vpop.f32.mrf.mxu0
        %v2937 = vadd.f32 0.0, %v2936
        %2938 = vmatmul.f32.gmra.mxu0 %v2909
        %v2939 = vpop.f32.mrf.mxu0
        %v2940 = vadd.f32 0.0, %v2939
        %2941 = vdwg.mxu0
        %2946 = vrot.lane.b32.xlu0 %v2931, 64
        %v2947 = vpop.permute.xlu0 %2946
        %2948 = vrot.lane.b32.xlu0 %v2934, 64
        %v2949 = vpop.permute.xlu0 %2948
        %2950 = vrot.lane.b32.xlu0 %v2937, 64
        %v2951 = vpop.permute.xlu0 %2950
        %2952 = vrot.lane.b32.xlu0 %v2940, 64
        %v2953 = vpop.permute.xlu0 %2952
        %v2958 = vsel %vm1451, %v2713, %v2947
        %v2959 = vsel %vm1451, %v2716, %v2949
        %v2960 = vsel %vm1451, %v2719, %v2951
        %v2961 = vsel %vm1451, %v2722, %v2953
        %s2962 = scalar_lea.vmem %s11, 128
        %v2963 = vld [vmem:[%s2962] sm:$0xff]
        %v2964 = vld [vmem:[%s2962 + $0x8] sm:$0xff]
        %v2965 = vld [vmem:[%s2962 + $0x10] sm:$0xff]
        %v2966 = vld [vmem:[%s2962 + $0x18] sm:$0xff]
        %v2967 = vld [vmem:[%s2962 + $0x20] sm:$0xff]
        %v2968 = vld [vmem:[%s2962 + $0x28] sm:$0xff]
        %v2969 = vld [vmem:[%s2962 + $0x30] sm:$0xff]
        %v2970 = vld [vmem:[%s2962 + $0x38] sm:$0xff]
        %v2971 = vld [vmem:[%s2962 + $0x40] sm:$0xff]
        %v2972 = vld [vmem:[%s2962 + $0x48] sm:$0xff]
        %v2973 = vld [vmem:[%s2962 + $0x50] sm:$0xff]
        %v2974 = vld [vmem:[%s2962 + $0x58] sm:$0xff]
        %v2975 = vld [vmem:[%s2962 + $0x60] sm:$0xff]
        %v2976 = vld [vmem:[%s2962 + $0x68] sm:$0xff]
        %v2977 = vld [vmem:[%s2962 + $0x70] sm:$0xff]
        %v2978 = vld [vmem:[%s2962 + $0x78] sm:$0xff]
        %2979 = vmatpush.msra.mxu0 %v2978
        %2980 = vmatpush.msra.mxu0 %v2977
        %2981 = vmatpush.msra.mxu0 %v2976
        %2982 = vmatpush.msra.mxu0 %v2975
        %2983 = vmatpush.msra.mxu0 %v2974
        %2984 = vmatpush.msra.mxu0 %v2973
        %2985 = vmatpush.msra.mxu0 %v2972
        %2986 = vmatpush.msra.mxu0 %v2971
        %2987 = vmatpush.msra.mxu0 %v2970
        %2988 = vmatpush.msra.mxu0 %v2969
        %2989 = vmatpush.msra.mxu0 %v2968
        %2990 = vmatpush.msra.mxu0 %v2967
        %2991 = vmatpush.msra.mxu0 %v2966
        %2992 = vmatpush.msra.mxu0 %v2965
        %2993 = vmatpush.msra.mxu0 %v2964
        %2994 = vmatpush.msra.mxu0 %v2963
        %2995 = vmatmul.f32.gmra.mxu0 %v2958
        %v2996 = vpop.f32.mrf.mxu0
        %v2997 = vadd.f32 0.0, %v2996
        %2998 = vmatmul.f32.gmra.mxu0 %v2959
        %v2999 = vpop.f32.mrf.mxu0
        %v3000 = vadd.f32 0.0, %v2999
        %3001 = vmatmul.f32.gmra.mxu0 %v2960
        %v3002 = vpop.f32.mrf.mxu0
        %v3003 = vadd.f32 0.0, %v3002
        %3004 = vmatmul.f32.gmra.mxu0 %v2961
        %v3005 = vpop.f32.mrf.mxu0
        %v3006 = vadd.f32 0.0, %v3005
        %3007 = vdwg.mxu0
        %v3008 = vadd.f32 %v2305, %v2997
        %v3009 = vadd.f32 %v2306, %v3000
        %v3010 = vadd.f32 %v2307, %v3003
        %v3011 = vadd.f32 %v2308, %v3006
        %s3012 = scalar_lea.vmem [#allocation15], 1
        %v3013 = vld [vmem:[%s3012] sm:$0x1]
        %s3014 = scalar_lea.vmem [#allocation16], 1
        %v3015 = vld [vmem:[%s3014] sm:$0x1]
        %v3016 = vsel %vm1117, %v3008, 0.0
        %3017 = vadd.xlane.f32.xlu0 %v3016
        %v3018 = vpop.xlane.xlu0 %3017
        %v3019 = vsel %vm1117, %v3009, 0.0
        %3020 = vadd.xlane.f32.xlu0 %v3019
        %v3021 = vpop.xlane.xlu0 %3020
        %v3022 = vsel %vm1117, %v3010, 0.0
        %3023 = vadd.xlane.f32.xlu0 %v3022
        %v3024 = vpop.xlane.xlu0 %3023
        %v3025 = vsel %vm1127, %v3011, 0.0
        %3026 = vadd.xlane.f32.xlu0 %v3025
        %v3027 = vpop.xlane.xlu0 %3026
        %v3028 = vmul.f32 %v3018, %v1137
        %v3029 = vmul.f32 %v3021, %v1137
        %v3030 = vmul.f32 %v3024, %v1137
        %v3031 = vmul.f32 %v3027, %v1137
        %v3032 = vsub.f32 %v3008, %v3028
        %v3033 = vsub.f32 %v3009, %v3029
        %v3034 = vsub.f32 %v3010, %v3030
        %v3035 = vsub.f32 %v3011, %v3031
        %v3036 = vmul.f32 %v3032, %v3032
        %v3037 = vmul.f32 %v3033, %v3033
        %v3038 = vmul.f32 %v3034, %v3034
        %v3039 = vmul.f32 %v3035, %v3035
        %v3040 = vsel %vm1117, %v3036, 0.0
        %3041 = vadd.xlane.f32.xlu0 %v3040
        %v3042 = vpop.xlane.xlu0 %3041
        %v3043 = vsel %vm1117, %v3037, 0.0
        %3044 = vadd.xlane.f32.xlu0 %v3043
        %v3045 = vpop.xlane.xlu0 %3044
        %v3046 = vsel %vm1117, %v3038, 0.0
        %3047 = vadd.xlane.f32.xlu0 %v3046
        %v3048 = vpop.xlane.xlu0 %3047
        %v3049 = vsel %vm1127, %v3039, 0.0
        %3050 = vadd.xlane.f32.xlu0 %v3049
        %v3051 = vpop.xlane.xlu0 %3050
        %v3052 = vmul.f32 %v3042, %v1137
        %v3053 = vmul.f32 %v3045, %v1137
        %v3054 = vmul.f32 %v3048, %v1137
        %v3055 = vmul.f32 %v3051, %v1137
        %v3056 = vadd.f32 %v3052, 1e-05
        %v3057 = vadd.f32 %v3053, 1e-05
        %v3058 = vadd.f32 %v3054, 1e-05
        %v3059 = vadd.f32 %v3055, 1e-05
        %v3060 = vrsqrt.pop %v3056
        %v3061 = vmul.f32 %v3060, %v3056
        %v3062 = vmul.f32 %v3061, %v3060
        %v3063 = vmul.f32 0.5, %v3062
        %v3064 = vsub.f32 1.5, %v3063
        %v3065 = vmul.f32 %v3060, %v3064
        %vm3066 = vweird.f32 %v3056
        %vm3067 = vweird.f32 %v3060
        %vm3068 = vmor %vm3066, %vm3067
        %v3069 = vsel %vm3068, %v3060, %v3065
        %v3070 = vrsqrt.pop %v3057
        %v3071 = vmul.f32 %v3070, %v3057
        %v3072 = vmul.f32 %v3071, %v3070
        %v3073 = vmul.f32 0.5, %v3072
        %v3074 = vsub.f32 1.5, %v3073
        %v3075 = vmul.f32 %v3070, %v3074
        %vm3076 = vweird.f32 %v3057
        %vm3077 = vweird.f32 %v3070
        %vm3078 = vmor %vm3076, %vm3077
        %v3079 = vsel %vm3078, %v3070, %v3075
        %v3080 = vrsqrt.pop %v3058
        %v3081 = vmul.f32 %v3080, %v3058
        %v3082 = vmul.f32 %v3081, %v3080
        %v3083 = vmul.f32 0.5, %v3082
        %v3084 = vsub.f32 1.5, %v3083
        %v3085 = vmul.f32 %v3080, %v3084
        %vm3086 = vweird.f32 %v3058
        %vm3087 = vweird.f32 %v3080
        %vm3088 = vmor %vm3086, %vm3087
        %v3089 = vsel %vm3088, %v3080, %v3085
        %v3090 = vrsqrt.pop %v3059
        %v3091 = vmul.f32 %v3090, %v3059
        %v3092 = vmul.f32 %v3091, %v3090
        %v3093 = vmul.f32 0.5, %v3092
        %v3094 = vsub.f32 1.5, %v3093
        %v3095 = vmul.f32 %v3090, %v3094
        %vm3096 = vweird.f32 %v3059
        %vm3097 = vweird.f32 %v3090
        %vm3098 = vmor %vm3096, %vm3097
        %v3099 = vsel %vm3098, %v3090, %v3095
        %v3100 = vmul.f32 %v3032, %v3069
        %v3101 = vmul.f32 %v3033, %v3079
        %v3102 = vmul.f32 %v3034, %v3089
        %v3103 = vmul.f32 %v3035, %v3099
        %v3105 = vperm.slane %v3013, 0
        %v3107 = vmul.f32 %v3100, %v3105
        %v3108 = vmul.f32 %v3101, %v3105
        %v3109 = vmul.f32 %v3102, %v3105
        %v3110 = vmul.f32 %v3103, %v3105
        %v3112 = vperm.slane %v3015, 0
        %v3114 = vadd.f32 %v3107, %v3112
        %v3115 = vadd.f32 %v3108, %v3112
        %v3116 = vadd.f32 %v3109, %v3112
        %v3117 = vadd.f32 %v3110, %v3112
        %s3118 = scalar_lea.vmem [#allocation18], 32
        %v3119 = vld [vmem:[%s3118] sm:$0xff]
        %v3120 = vld [vmem:[%s3118 + $0x8] sm:$0xff]
        %v3121 = vld [vmem:[%s3118 + $0x10] sm:$0xff]
        %v3122 = vld [vmem:[%s3118 + $0x18] sm:$0xff]
        %s3123 = scalar_lea.vmem [#allocation19], 1
        %v3124 = vld [vmem:[%s3123] sm:$0x1]
        %v3126 = vperm.slane %v3124, 0
        %v3129 = vsel %vm1117, %v3114, 0
        %v3132 = vsel %vm1117, %v3115, 0
        %v3135 = vsel %vm1117, %v3116, 0
        %v3138 = vsel %vm1117, %v3117, 0
        %3140 = vmatpush.msra.mxu0 0.0
        %3141 = vmatpush.msra.mxu0 0.0
        %3142 = vmatpush.msra.mxu0 0.0
        %3143 = vmatpush.msra.mxu0 0.0
        %3144 = vmatpush.msra.mxu0 0.0
        %3145 = vmatpush.msra.mxu0 0.0
        %3146 = vmatpush.msra.mxu0 0.0
        %3147 = vmatpush.msra.mxu0 0.0
        %3148 = vmatpush.msra.mxu0 0.0
        %3149 = vmatpush.msra.mxu0 0.0
        %3150 = vmatpush.msra.mxu0 0.0
        %3151 = vmatpush.msra.mxu0 0.0
        %3152 = vmatpush.msra.mxu0 %v3122
        %3153 = vmatpush.msra.mxu0 %v3121
        %3154 = vmatpush.msra.mxu0 %v3120
        %3155 = vmatpush.msra.mxu0 %v3119
        %3156 = vmatmul.f32.gmra.mxu0 %v3129
        %v3157 = vpop.f32.mrf.mxu0
        %v3158 = vadd.f32 %v3126, %v3157
        %3159 = vmatmul.f32.gmra.mxu0 %v3132
        %v3160 = vpop.f32.mrf.mxu0
        %v3161 = vadd.f32 %v3126, %v3160
        %3162 = vmatmul.f32.gmra.mxu0 %v3135
        %v3163 = vpop.f32.mrf.mxu0
        %v3164 = vadd.f32 %v3126, %v3163
        %3165 = vmatmul.f32.gmra.mxu0 %v3138
        %v3166 = vpop.f32.mrf.mxu0
        %v3167 = vadd.f32 %v3126, %v3166
        %3168 = vdwg.mxu0
        %v3169 = vmul.f32 %v3158, 0.5
        %v3170 = vmul.f32 %v3161, 0.5
        %v3171 = vmul.f32 %v3164, 0.5
        %v3172 = vmul.f32 %v3167, 0.5
        %v3173 = vmul.f32 %v3158, 0.70710677
        %v3174 = vmul.f32 %v3161, 0.70710677
        %v3175 = vmul.f32 %v3164, 0.70710677
        %v3176 = vmul.f32 %v3167, 0.70710677
        %vm3177 = vcmp.ge.f32.partialorder %v3173, 0.0
        %vm3178 = vcmp.ge.f32.partialorder %v3174, 0.0
        %vm3179 = vcmp.ge.f32.partialorder %v3175, 0.0
        %vm3180 = vcmp.ge.f32.partialorder %v3176, 0.0
        %v3181 = vsel %vm3177, 1.0, -1.0
        %v3182 = vsel %vm3178, 1.0, -1.0
        %v3183 = vsel %vm3179, 1.0, -1.0
        %v3184 = vsel %vm3180, 1.0, -1.0
        %v3185 = vand.u32 2147483647, %v3173
        %v3186 = vand.u32 2147483647, %v3174
        %v3187 = vand.u32 2147483647, %v3175
        %v3188 = vand.u32 2147483647, %v3176
        %v3189 = vmul.f32 %v3185, 0.3275911
        %v3190 = vmul.f32 %v3186, 0.3275911
        %v3191 = vmul.f32 %v3187, 0.3275911
        %v3192 = vmul.f32 %v3188, 0.3275911
        %v3193 = vadd.f32 %v3189, 1.0
        %v3194 = vadd.f32 %v3190, 1.0
        %v3195 = vadd.f32 %v3191, 1.0
        %v3196 = vadd.f32 %v3192, 1.0
        %v3197 = vrcp.pop %v3193
        %v3198 = vmul.f32 %v3193, %v3197
        %v3199 = vsub.f32 1.0, %v3198
        %v3200 = vmul.f32 %v3197, %v3199
        %v3201 = vadd.f32 %v3197, %v3200
        %vm3202 = vweird.f32 %v3193
        %vm3203 = vweird.f32 %v3197
        %vm3204 = vmor %vm3202, %vm3203
        %v3205 = vsel %vm3204, %v3197, %v3201
        %v3206 = vand.u32 2147483647, %v3193
        %vm3207 = vcmp.eq.f32.partialorder %v3206, 8.507059e+37
        %v3208 = vand.u32 %v3193, 2147483648
        %v3209 = vor.u32 1.1754944e-38, %v3208
        %v3210 = vsel %vm3207, %v3209, %v3205
        %v3211 = vmul.f32 1.0, %v3210
        %v3212 = vrcp.pop %v3194
        %v3213 = vmul.f32 %v3194, %v3212
        %v3214 = vsub.f32 1.0, %v3213
        %v3215 = vmul.f32 %v3212, %v3214
        %v3216 = vadd.f32 %v3212, %v3215
        %vm3217 = vweird.f32 %v3194
        %vm3218 = vweird.f32 %v3212
        %vm3219 = vmor %vm3217, %vm3218
        %v3220 = vsel %vm3219, %v3212, %v3216
        %v3221 = vand.u32 2147483647, %v3194
        %vm3222 = vcmp.eq.f32.partialorder %v3221, 8.507059e+37
        %v3223 = vand.u32 %v3194, 2147483648
        %v3224 = vor.u32 1.1754944e-38, %v3223
        %v3225 = vsel %vm3222, %v3224, %v3220
        %v3226 = vmul.f32 1.0, %v3225
        %v3227 = vrcp.pop %v3195
        %v3228 = vmul.f32 %v3195, %v3227
        %v3229 = vsub.f32 1.0, %v3228
        %v3230 = vmul.f32 %v3227, %v3229
        %v3231 = vadd.f32 %v3227, %v3230
        %vm3232 = vweird.f32 %v3195
        %vm3233 = vweird.f32 %v3227
        %vm3234 = vmor %vm3232, %vm3233
        %v3235 = vsel %vm3234, %v3227, %v3231
        %v3236 = vand.u32 2147483647, %v3195
        %vm3237 = vcmp.eq.f32.partialorder %v3236, 8.507059e+37
        %v3238 = vand.u32 %v3195, 2147483648
        %v3239 = vor.u32 1.1754944e-38, %v3238
        %v3240 = vsel %vm3237, %v3239, %v3235
        %v3241 = vmul.f32 1.0, %v3240
        %v3242 = vrcp.pop %v3196
        %v3243 = vmul.f32 %v3196, %v3242
        %v3244 = vsub.f32 1.0, %v3243
        %v3245 = vmul.f32 %v3242, %v3244
        %v3246 = vadd.f32 %v3242, %v3245
        %vm3247 = vweird.f32 %v3196
        %vm3248 = vweird.f32 %v3242
        %vm3249 = vmor %vm3247, %vm3248
        %v3250 = vsel %vm3249, %v3242, %v3246
        %v3251 = vand.u32 2147483647, %v3196
        %vm3252 = vcmp.eq.f32.partialorder %v3251, 8.507059e+37
        %v3253 = vand.u32 %v3196, 2147483648
        %v3254 = vor.u32 1.1754944e-38, %v3253
        %v3255 = vsel %vm3252, %v3254, %v3250
        %v3256 = vmul.f32 1.0, %v3255
        %v3257 = vmul.f32 %v3211, 1.0614054
        %v3258 = vmul.f32 %v3226, 1.0614054
        %v3259 = vmul.f32 %v3241, 1.0614054
        %v3260 = vmul.f32 %v3256, 1.0614054
        %v3261 = vadd.f32 %v3257, -1.4531521
        %v3262 = vadd.f32 %v3258, -1.4531521
        %v3263 = vadd.f32 %v3259, -1.4531521
        %v3264 = vadd.f32 %v3260, -1.4531521
        %v3265 = vmul.f32 %v3261, %v3211
        %v3266 = vmul.f32 %v3262, %v3226
        %v3267 = vmul.f32 %v3263, %v3241
        %v3268 = vmul.f32 %v3264, %v3256
        %v3269 = vadd.f32 %v3265, 1.4214138
        %v3270 = vadd.f32 %v3266, 1.4214138
        %v3271 = vadd.f32 %v3267, 1.4214138
        %v3272 = vadd.f32 %v3268, 1.4214138
        %v3273 = vmul.f32 %v3269, %v3211
        %v3274 = vmul.f32 %v3270, %v3226
        %v3275 = vmul.f32 %v3271, %v3241
        %v3276 = vmul.f32 %v3272, %v3256
        %v3277 = vadd.f32 %v3273, -0.28449672
        %v3278 = vadd.f32 %v3274, -0.28449672
        %v3279 = vadd.f32 %v3275, -0.28449672
        %v3280 = vadd.f32 %v3276, -0.28449672
        %v3281 = vmul.f32 %v3277, %v3211
        %v3282 = vmul.f32 %v3278, %v3226
        %v3283 = vmul.f32 %v3279, %v3241
        %v3284 = vmul.f32 %v3280, %v3256
        %v3285 = vadd.f32 %v3281, 0.2548296
        %v3286 = vadd.f32 %v3282, 0.2548296
        %v3287 = vadd.f32 %v3283, 0.2548296
        %v3288 = vadd.f32 %v3284, 0.2548296
        %v3289 = vmul.f32 %v3285, %v3211
        %v3290 = vmul.f32 %v3286, %v3226
        %v3291 = vmul.f32 %v3287, %v3241
        %v3292 = vmul.f32 %v3288, %v3256
        %v3293 = vsub.f32 0.0, %v3185
        %v3294 = vsub.f32 0.0, %v3186
        %v3295 = vsub.f32 0.0, %v3187
        %v3296 = vsub.f32 0.0, %v3188
        %v3297 = vmul.f32 %v3293, %v3185
        %v3298 = vmul.f32 %v3294, %v3186
        %v3299 = vmul.f32 %v3295, %v3187
        %v3300 = vmul.f32 %v3296, %v3188
        %v3301 = vmul.f32 %v3297, 1.442695
        %v3302 = vpow.pop %v3301
        %v3303 = vmul.f32 %v3298, 1.442695
        %v3304 = vpow.pop %v3303
        %v3305 = vmul.f32 %v3299, 1.442695
        %v3306 = vpow.pop %v3305
        %v3307 = vmul.f32 %v3300, 1.442695
        %v3308 = vpow.pop %v3307
        %v3309 = vmul.f32 %v3289, %v3302
        %v3310 = vmul.f32 %v3290, %v3304
        %v3311 = vmul.f32 %v3291, %v3306
        %v3312 = vmul.f32 %v3292, %v3308
        %v3313 = vsub.f32 1.0, %v3309
        %v3314 = vsub.f32 1.0, %v3310
        %v3315 = vsub.f32 1.0, %v3311
        %v3316 = vsub.f32 1.0, %v3312
        %v3317 = vmul.f32 %v3181, %v3313
        %v3318 = vmul.f32 %v3182, %v3314
        %v3319 = vmul.f32 %v3183, %v3315
        %v3320 = vmul.f32 %v3184, %v3316
        %v3321 = vadd.f32 %v3317, 1.0
        %v3322 = vadd.f32 %v3318, 1.0
        %v3323 = vadd.f32 %v3319, 1.0
        %v3324 = vadd.f32 %v3320, 1.0
        %v3325 = vmul.f32 %v3169, %v3321
        %v3326 = vmul.f32 %v3170, %v3322
        %v3327 = vmul.f32 %v3171, %v3323
        %v3328 = vmul.f32 %v3172, %v3324
        %s3329 = scalar_lea.vmem %s16, 64
        %v3330 = vld [vmem:[%s3329] sm:$0xff]
        %v3331 = vld [vmem:[%s3329 + $0x8] sm:$0xff]
        %v3332 = vld [vmem:[%s3329 + $0x10] sm:$0xff]
        %v3333 = vld [vmem:[%s3329 + $0x18] sm:$0xff]
        %v3334 = vld [vmem:[%s3329 + $0x20] sm:$0xff]
        %v3335 = vld [vmem:[%s3329 + $0x28] sm:$0xff]
        %v3336 = vld [vmem:[%s3329 + $0x30] sm:$0xff]
        %v3337 = vld [vmem:[%s3329 + $0x38] sm:$0xff]
        %s3338 = scalar_lea.vmem [#allocation21], 1
        %v3339 = vld [vmem:[%s3338] sm:$0x1]
        %v3341 = vperm.slane %v3339, 0
        %v3344 = vsel %vm1451, %v3325, 0
        %v3347 = vsel %vm1451, %v3326, 0
        %v3350 = vsel %vm1451, %v3327, 0
        %v3353 = vsel %vm1451, %v3328, 0
        %3355 = vmatpush.msra.mxu0 0.0
        %3356 = vmatpush.msra.mxu0 0.0
        %3357 = vmatpush.msra.mxu0 0.0
        %3358 = vmatpush.msra.mxu0 0.0
        %3359 = vmatpush.msra.mxu0 0.0
        %3360 = vmatpush.msra.mxu0 0.0
        %3361 = vmatpush.msra.mxu0 0.0
        %3362 = vmatpush.msra.mxu0 0.0
        %3363 = vmatpush.msra.mxu0 %v3337
        %3364 = vmatpush.msra.mxu0 %v3336
        %3365 = vmatpush.msra.mxu0 %v3335
        %3366 = vmatpush.msra.mxu0 %v3334
        %3367 = vmatpush.msra.mxu0 %v3333
        %3368 = vmatpush.msra.mxu0 %v3332
        %3369 = vmatpush.msra.mxu0 %v3331
        %3370 = vmatpush.msra.mxu0 %v3330
        %3371 = vmatmul.f32.gmra.mxu0 %v3344
        %v3372 = vpop.f32.mrf.mxu0
        %v3373 = vadd.f32 %v3341, %v3372
        %3374 = vmatmul.f32.gmra.mxu0 %v3347
        %v3375 = vpop.f32.mrf.mxu0
        %v3376 = vadd.f32 %v3341, %v3375
        %3377 = vmatmul.f32.gmra.mxu0 %v3350
        %v3378 = vpop.f32.mrf.mxu0
        %v3379 = vadd.f32 %v3341, %v3378
        %3380 = vmatmul.f32.gmra.mxu0 %v3353
        %v3381 = vpop.f32.mrf.mxu0
        %v3382 = vadd.f32 %v3341, %v3381
        %3383 = vdwg.mxu0
        %v3384 = vadd.f32 %v3008, %v3373
        %v3385 = vadd.f32 %v3009, %v3376
        %v3386 = vadd.f32 %v3010, %v3379
        %v3387 = vadd.f32 %v3011, %v3382
        %v3388 = vld [vmem:[#allocation22] sm:$0x1]
        %v3389 = vld [vmem:[#allocation24] sm:$0x1]
        %v3390 = vsel %vm1117, %v3384, 0.0
        %3391 = vadd.xlane.f32.xlu0 %v3390
        %v3392 = vpop.xlane.xlu0 %3391
        %v3393 = vsel %vm1117, %v3385, 0.0
        %3394 = vadd.xlane.f32.xlu0 %v3393
        %v3395 = vpop.xlane.xlu0 %3394
        %v3396 = vsel %vm1117, %v3386, 0.0
        %3397 = vadd.xlane.f32.xlu0 %v3396
        %v3398 = vpop.xlane.xlu0 %3397
        %v3399 = vsel %vm1127, %v3387, 0.0
        %3400 = vadd.xlane.f32.xlu0 %v3399
        %v3401 = vpop.xlane.xlu0 %3400
        %v3402 = vmul.f32 %v3392, %v1137
        %v3403 = vmul.f32 %v3395, %v1137
        %v3404 = vmul.f32 %v3398, %v1137
        %v3405 = vmul.f32 %v3401, %v1137
        %v3406 = vsub.f32 %v3384, %v3402
        %v3407 = vsub.f32 %v3385, %v3403
        %v3408 = vsub.f32 %v3386, %v3404
        %v3409 = vsub.f32 %v3387, %v3405
        %v3410 = vmul.f32 %v3406, %v3406
        %v3411 = vmul.f32 %v3407, %v3407
        %v3412 = vmul.f32 %v3408, %v3408
        %v3413 = vmul.f32 %v3409, %v3409
        %v3414 = vsel %vm1117, %v3410, 0.0
        %3415 = vadd.xlane.f32.xlu0 %v3414
        %v3416 = vpop.xlane.xlu0 %3415
        %v3417 = vsel %vm1117, %v3411, 0.0
        %3418 = vadd.xlane.f32.xlu0 %v3417
        %v3419 = vpop.xlane.xlu0 %3418
        %v3420 = vsel %vm1117, %v3412, 0.0
        %3421 = vadd.xlane.f32.xlu0 %v3420
        %v3422 = vpop.xlane.xlu0 %3421
        %v3423 = vsel %vm1127, %v3413, 0.0
        %3424 = vadd.xlane.f32.xlu0 %v3423
        %v3425 = vpop.xlane.xlu0 %3424
        %v3426 = vmul.f32 %v3416, %v1137
        %v3427 = vmul.f32 %v3419, %v1137
        %v3428 = vmul.f32 %v3422, %v1137
        %v3429 = vmul.f32 %v3425, %v1137
        %v3430 = vadd.f32 %v3426, 1e-05
        %v3431 = vadd.f32 %v3427, 1e-05
        %v3432 = vadd.f32 %v3428, 1e-05
        %v3433 = vadd.f32 %v3429, 1e-05
        %v3434 = vrsqrt.pop %v3430
        %v3435 = vmul.f32 %v3434, %v3430
        %v3436 = vmul.f32 %v3435, %v3434
        %v3437 = vmul.f32 0.5, %v3436
        %v3438 = vsub.f32 1.5, %v3437
        %v3439 = vmul.f32 %v3434, %v3438
        %vm3440 = vweird.f32 %v3430
        %vm3441 = vweird.f32 %v3434
        %vm3442 = vmor %vm3440, %vm3441
        %v3443 = vsel %vm3442, %v3434, %v3439
        %v3444 = vrsqrt.pop %v3431
        %v3445 = vmul.f32 %v3444, %v3431
        %v3446 = vmul.f32 %v3445, %v3444
        %v3447 = vmul.f32 0.5, %v3446
        %v3448 = vsub.f32 1.5, %v3447
        %v3449 = vmul.f32 %v3444, %v3448
        %vm3450 = vweird.f32 %v3431
        %vm3451 = vweird.f32 %v3444
        %vm3452 = vmor %vm3450, %vm3451
        %v3453 = vsel %vm3452, %v3444, %v3449
        %v3454 = vrsqrt.pop %v3432
        %v3455 = vmul.f32 %v3454, %v3432
        %v3456 = vmul.f32 %v3455, %v3454
        %v3457 = vmul.f32 0.5, %v3456
        %v3458 = vsub.f32 1.5, %v3457
        %v3459 = vmul.f32 %v3454, %v3458
        %vm3460 = vweird.f32 %v3432
        %vm3461 = vweird.f32 %v3454
        %vm3462 = vmor %vm3460, %vm3461
        %v3463 = vsel %vm3462, %v3454, %v3459
        %v3464 = vrsqrt.pop %v3433
        %v3465 = vmul.f32 %v3464, %v3433
        %v3466 = vmul.f32 %v3465, %v3464
        %v3467 = vmul.f32 0.5, %v3466
        %v3468 = vsub.f32 1.5, %v3467
        %v3469 = vmul.f32 %v3464, %v3468
        %vm3470 = vweird.f32 %v3433
        %vm3471 = vweird.f32 %v3464
        %vm3472 = vmor %vm3470, %vm3471
        %v3473 = vsel %vm3472, %v3464, %v3469
        %v3474 = vmul.f32 %v3406, %v3443
        %v3475 = vmul.f32 %v3407, %v3453
        %v3476 = vmul.f32 %v3408, %v3463
        %v3477 = vmul.f32 %v3409, %v3473
        %v3479 = vperm.slane %v3388, 0
        %v3481 = vmul.f32 %v3474, %v3479
        %v3482 = vmul.f32 %v3475, %v3479
        %v3483 = vmul.f32 %v3476, %v3479
        %v3484 = vmul.f32 %v3477, %v3479
        %v3486 = vperm.slane %v3389, 0
        %v3488 = vadd.f32 %v3481, %v3486
        %v3489 = vadd.f32 %v3482, %v3486
        %v3490 = vadd.f32 %v3483, %v3486
        %v3491 = vadd.f32 %v3484, %v3486
        %v3492 = vsel %vm1117, %v3488, 0.0
        %v3493 = vsel %vm1117, %v3489, 0.0
        %v3494 = vadd.f32 %v3492, %v3493
        %v3495 = vsel %vm1117, %v3490, 0.0
        %v3496 = vadd.f32 %v3494, %v3495
        %v3497 = vsel %vm1127, %v3491, 0.0
        %v3498 = vadd.f32 %v3496, %v3497
        %v3499 = vrot.slane %v3498, 4
        %v3500 = vadd.f32 %v3498, %v3499
        %v3501 = vrot.slane %v3500, 2
        %v3502 = vadd.f32 %v3500, %v3501
        %v3503 = vrot.slane %v3502, 1
        %v3504 = vadd.f32 %v3502, %v3503
        %v3505 = vrcp.pop 25.0
        %v3506 = vmul.f32 25.0, %v3505
        %v3507 = vsub.f32 1.0, %v3506
        %v3508 = vmul.f32 %v3505, %v3507
        %v3509 = vadd.f32 %v3505, %v3508
        %vm3510 = vweird.f32 %v3505
        %v3511 = vsel %vm3510, %v3505, %v3509
        %v3512 = vmul.f32 %v3504, %v3511
        %v3513 = vld [vmem:[#allocation25] sm:$0xff]
        %v3514 = vld [vmem:[#allocation25 + $0x8] sm:$0xff]
        %v3515 = vld [vmem:[#allocation25 + $0x10] sm:$0xff]
        %v3516 = vld [vmem:[#allocation25 + $0x18] sm:$0xff]
        %v3517 = vld [vmem:[#allocation25 + $0x20] sm:$0xff]
        %v3518 = vld [vmem:[#allocation25 + $0x28] sm:$0xff]
        %v3519 = vld [vmem:[#allocation25 + $0x30] sm:$0xff]
        %v3520 = vld [vmem:[#allocation25 + $0x38] sm:$0xff]
        %v3521 = vld [vmem:[#allocation25 + $0x40] sm:$0xff]
        %v3522 = vld [vmem:[#allocation25 + $0x48] sm:$0xff]
        %v3523 = vld [vmem:[#allocation25 + $0x50] sm:$0xff]
        %v3524 = vld [vmem:[#allocation25 + $0x58] sm:$0xff]
        %v3525 = vld [vmem:[#allocation25 + $0x60] sm:$0xff]
        %v3526 = vld [vmem:[#allocation25 + $0x68] sm:$0xff]
        %v3527 = vld [vmem:[#allocation25 + $0x70] sm:$0xff]
        %v3528 = vld [vmem:[#allocation25 + $0x78] sm:$0xff]
        %v3529 = vld [vmem:[#allocation25 + $0x80] sm:$0xff]
        %v3530 = vld [vmem:[#allocation25 + $0x88] sm:$0xff]
        %v3531 = vld [vmem:[#allocation25 + $0x90] sm:$0xff]
        %v3532 = vld [vmem:[#allocation25 + $0x98] sm:$0xff]
        %v3533 = vld [vmem:[#allocation25 + $0xa0] sm:$0xff]
        %v3534 = vld [vmem:[#allocation25 + $0xa8] sm:$0xff]
        %v3535 = vld [vmem:[#allocation25 + $0xb0] sm:$0xff]
        %v3536 = vld [vmem:[#allocation25 + $0xb8] sm:$0xff]
        %v3537 = vld [vmem:[#allocation25 + $0xc0] sm:$0xff]
        %v3538 = vld [vmem:[#allocation25 + $0xc8] sm:$0xff]
        %v3539 = vld [vmem:[#allocation25 + $0xd0] sm:$0xff]
        %v3540 = vld [vmem:[#allocation25 + $0xd8] sm:$0xff]
        %v3541 = vld [vmem:[#allocation25 + $0xe0] sm:$0xff]
        %v3542 = vld [vmem:[#allocation25 + $0xe8] sm:$0xff]
        %v3543 = vld [vmem:[#allocation25 + $0xf0] sm:$0xff]
        %v3544 = vld [vmem:[#allocation25 + $0xf8] sm:$0xff]
        %v3545 = vld [vmem:[#allocation27] sm:$0xff]
        %v3547 = vperm.slane %v3545, 0
        %v3548 = vperm.slane %v3545, 1
        %v3549 = vperm.slane %v3545, 2
        %v3550 = vperm.slane %v3545, 3
        %v3551 = vperm.slane %v3545, 4
        %v3552 = vperm.slane %v3545, 5
        %v3553 = vperm.slane %v3545, 6
        %v3554 = vperm.slane %v3545, 7
        %v3564 = vsel %vm1117, %v3512, 0
        %3566 = vmatpush.msra.mxu0 0.0
        %3567 = vmatpush.msra.mxu0 0.0
        %3568 = vmatpush.msra.mxu0 0.0
        %3569 = vmatpush.msra.mxu0 0.0
        %3570 = vmatpush.msra.mxu0 0.0
        %3571 = vmatpush.msra.mxu0 0.0
        %3572 = vmatpush.msra.mxu0 0.0
        %3573 = vmatpush.msra.mxu0 0.0
        %3574 = vmatpush.msra.mxu0 0.0
        %3575 = vmatpush.msra.mxu0 0.0
        %3576 = vmatpush.msra.mxu0 0.0
        %3577 = vmatpush.msra.mxu0 0.0
        %3578 = vmatpush.msra.mxu0 %v3537
        %3579 = vmatpush.msra.mxu0 %v3529
        %3580 = vmatpush.msra.mxu0 %v3521
        %3581 = vmatpush.msra.mxu0 %v3513
        %3582 = vmatmul.f32.gmra.mxu0 %v3564
        %v3583 = vpop.f32.mrf.mxu0
        %v3584 = vadd.f32 %v3547, %v3583
        %3585 = vdwg.mxu0
        %3586 = vmatpush.msra.mxu0 0.0
        %3587 = vmatpush.msra.mxu0 0.0
        %3588 = vmatpush.msra.mxu0 0.0
        %3589 = vmatpush.msra.mxu0 0.0
        %3590 = vmatpush.msra.mxu0 0.0
        %3591 = vmatpush.msra.mxu0 0.0
        %3592 = vmatpush.msra.mxu0 0.0
        %3593 = vmatpush.msra.mxu0 0.0
        %3594 = vmatpush.msra.mxu0 0.0
        %3595 = vmatpush.msra.mxu0 0.0
        %3596 = vmatpush.msra.mxu0 0.0
        %3597 = vmatpush.msra.mxu0 0.0
        %3598 = vmatpush.msra.mxu0 %v3538
        %3599 = vmatpush.msra.mxu0 %v3530
        %3600 = vmatpush.msra.mxu0 %v3522
        %3601 = vmatpush.msra.mxu0 %v3514
        %3602 = vmatmul.f32.gmra.mxu0 %v3564
        %v3603 = vpop.f32.mrf.mxu0
        %v3604 = vadd.f32 %v3548, %v3603
        %3605 = vdwg.mxu0
        %3606 = vmatpush.msra.mxu0 0.0
        %3607 = vmatpush.msra.mxu0 0.0
        %3608 = vmatpush.msra.mxu0 0.0
        %3609 = vmatpush.msra.mxu0 0.0
        %3610 = vmatpush.msra.mxu0 0.0
        %3611 = vmatpush.msra.mxu0 0.0
        %3612 = vmatpush.msra.mxu0 0.0
        %3613 = vmatpush.msra.mxu0 0.0
        %3614 = vmatpush.msra.mxu0 0.0
        %3615 = vmatpush.msra.mxu0 0.0
        %3616 = vmatpush.msra.mxu0 0.0
        %3617 = vmatpush.msra.mxu0 0.0
        %3618 = vmatpush.msra.mxu0 %v3539
        %3619 = vmatpush.msra.mxu0 %v3531
        %3620 = vmatpush.msra.mxu0 %v3523
        %3621 = vmatpush.msra.mxu0 %v3515
        %3622 = vmatmul.f32.gmra.mxu0 %v3564
        %v3623 = vpop.f32.mrf.mxu0
        %v3624 = vadd.f32 %v3549, %v3623
        %3625 = vdwg.mxu0
        %3626 = vmatpush.msra.mxu0 0.0
        %3627 = vmatpush.msra.mxu0 0.0
        %3628 = vmatpush.msra.mxu0 0.0
        %3629 = vmatpush.msra.mxu0 0.0
        %3630 = vmatpush.msra.mxu0 0.0
        %3631 = vmatpush.msra.mxu0 0.0
        %3632 = vmatpush.msra.mxu0 0.0
        %3633 = vmatpush.msra.mxu0 0.0
        %3634 = vmatpush.msra.mxu0 0.0
        %3635 = vmatpush.msra.mxu0 0.0
        %3636 = vmatpush.msra.mxu0 0.0
        %3637 = vmatpush.msra.mxu0 0.0
        %3638 = vmatpush.msra.mxu0 %v3540
        %3639 = vmatpush.msra.mxu0 %v3532
        %3640 = vmatpush.msra.mxu0 %v3524
        %3641 = vmatpush.msra.mxu0 %v3516
        %3642 = vmatmul.f32.gmra.mxu0 %v3564
        %v3643 = vpop.f32.mrf.mxu0
        %v3644 = vadd.f32 %v3550, %v3643
        %3645 = vdwg.mxu0
        %3646 = vmatpush.msra.mxu0 0.0
        %3647 = vmatpush.msra.mxu0 0.0
        %3648 = vmatpush.msra.mxu0 0.0
        %3649 = vmatpush.msra.mxu0 0.0
        %3650 = vmatpush.msra.mxu0 0.0
        %3651 = vmatpush.msra.mxu0 0.0
        %3652 = vmatpush.msra.mxu0 0.0
        %3653 = vmatpush.msra.mxu0 0.0
        %3654 = vmatpush.msra.mxu0 0.0
        %3655 = vmatpush.msra.mxu0 0.0
        %3656 = vmatpush.msra.mxu0 0.0
        %3657 = vmatpush.msra.mxu0 0.0
        %3658 = vmatpush.msra.mxu0 %v3541
        %3659 = vmatpush.msra.mxu0 %v3533
        %3660 = vmatpush.msra.mxu0 %v3525
        %3661 = vmatpush.msra.mxu0 %v3517
        %3662 = vmatmul.f32.gmra.mxu0 %v3564
        %v3663 = vpop.f32.mrf.mxu0
        %v3664 = vadd.f32 %v3551, %v3663
        %3665 = vdwg.mxu0
        %3666 = vmatpush.msra.mxu0 0.0
        %3667 = vmatpush.msra.mxu0 0.0
        %3668 = vmatpush.msra.mxu0 0.0
        %3669 = vmatpush.msra.mxu0 0.0
        %3670 = vmatpush.msra.mxu0 0.0
        %3671 = vmatpush.msra.mxu0 0.0
        %3672 = vmatpush.msra.mxu0 0.0
        %3673 = vmatpush.msra.mxu0 0.0
        %3674 = vmatpush.msra.mxu0 0.0
        %3675 = vmatpush.msra.mxu0 0.0
        %3676 = vmatpush.msra.mxu0 0.0
        %3677 = vmatpush.msra.mxu0 0.0
        %3678 = vmatpush.msra.mxu0 %v3542
        %3679 = vmatpush.msra.mxu0 %v3534
        %3680 = vmatpush.msra.mxu0 %v3526
        %3681 = vmatpush.msra.mxu0 %v3518
        %3682 = vmatmul.f32.gmra.mxu0 %v3564
        %v3683 = vpop.f32.mrf.mxu0
        %v3684 = vadd.f32 %v3552, %v3683
        %3685 = vdwg.mxu0
        %3686 = vmatpush.msra.mxu0 0.0
        %3687 = vmatpush.msra.mxu0 0.0
        %3688 = vmatpush.msra.mxu0 0.0
        %3689 = vmatpush.msra.mxu0 0.0
        %3690 = vmatpush.msra.mxu0 0.0
        %3691 = vmatpush.msra.mxu0 0.0
        %3692 = vmatpush.msra.mxu0 0.0
        %3693 = vmatpush.msra.mxu0 0.0
        %3694 = vmatpush.msra.mxu0 0.0
        %3695 = vmatpush.msra.mxu0 0.0
        %3696 = vmatpush.msra.mxu0 0.0
        %3697 = vmatpush.msra.mxu0 0.0
        %3698 = vmatpush.msra.mxu0 %v3543
        %3699 = vmatpush.msra.mxu0 %v3535
        %3700 = vmatpush.msra.mxu0 %v3527
        %3701 = vmatpush.msra.mxu0 %v3519
        %3702 = vmatmul.f32.gmra.mxu0 %v3564
        %v3703 = vpop.f32.mrf.mxu0
        %v3704 = vadd.f32 %v3553, %v3703
        %3705 = vdwg.mxu0
        %3706 = vmatpush.msra.mxu0 0.0
        %3707 = vmatpush.msra.mxu0 0.0
        %3708 = vmatpush.msra.mxu0 0.0
        %3709 = vmatpush.msra.mxu0 0.0
        %3710 = vmatpush.msra.mxu0 0.0
        %3711 = vmatpush.msra.mxu0 0.0
        %3712 = vmatpush.msra.mxu0 0.0
        %3713 = vmatpush.msra.mxu0 0.0
        %3714 = vmatpush.msra.mxu0 0.0
        %3715 = vmatpush.msra.mxu0 0.0
        %3716 = vmatpush.msra.mxu0 0.0
        %3717 = vmatpush.msra.mxu0 0.0
        %3718 = vmatpush.msra.mxu0 %v3544
        %3719 = vmatpush.msra.mxu0 %v3536
        %3720 = vmatpush.msra.mxu0 %v3528
        %3721 = vmatpush.msra.mxu0 %v3520
        %3722 = vmatmul.f32.gmra.mxu0 %v3564
        %v3723 = vpop.f32.mrf.mxu0
        %v3724 = vadd.f32 %v3554, %v3723
        %3725 = vdwg.mxu0
        %v3734 = vrot.slane %v3604, 7
        %v3735 = vrot.slane %v3624, 6
        %v3736 = vrot.slane %v3644, 5
        %v3737 = vrot.slane %v3664, 4
        %v3738 = vrot.slane %v3684, 3
        %v3739 = vrot.slane %v3704, 2
        %v3740 = vrot.slane %v3724, 1
        %v3741 = vsel %vm1619, %v3584, %v3734
        %vm3742 = vcmask 1042434
        %v3743 = vsel %vm3742, %v3735, %v3736
        %vm3744 = vcmask 1041408
        %v3745 = vsel %vm3744, %v3741, %v3743
        %vm3746 = vcmask 1044484
        %v3747 = vsel %vm3746, %v3737, %v3738
        %vm3748 = vcmask 1046534
        %v3749 = vsel %vm3748, %v3739, %v3740
        %vm3750 = vcmask 1045508
        %v3751 = vsel %vm3750, %v3747, %v3749
        %vm3752 = vcmask 1043456
        %v3753 = vsel %vm3752, %v3745, %v3751
        %3755 = vst [vmem:[%s946] sm:$0xff] %v3753
        %p3756 = scmp.lt.s32.totalorder %s42, 1
        %s3757 = scalar_select %p3756, %s42, 1
        %s3758 = smul.addr %s3757, 8
        %s3759 = scalar_lea.vmem %s22, %s3758
        // Predicated region
        $region177: #{_lambda_.2} parent=107 // pred_check
          %p3760 = pneg %p527
        $region178: #{_lambda_.2} parent=107 // pred_check_branch
          %3762 = sbr.rel (%p3760) target = $region180
        $region179: #{_lambda_.2} parent=107 // pred_region
          _
        $region180: #{_lambda_.2} parent=107 // pred_fallthru
          _
      $region108: #{_lambda_.2} parent=5 // pred_fallthru
        _
      %p3763 = scmp.le.s32.totalorder 2, %s37
      // Predicated region
      $region181: #{_lambda_.2} parent=5 // pred_check
        %p3764 = pneg %p3763
      $region182: #{_lambda_.2} parent=5 // pred_check_branch
        %3766 = sbr.rel (%p3764) target = $region184
      $region183: #{_lambda_.2} parent=5 // pred_region
        %s3767 = ssub.s32 %s37, 2
        // Predicated region
        $region185: #{_lambda_.2} parent=183 // pred_check
          %p3768 = pneg %p533
        $region186: #{_lambda_.2} parent=183 // pred_check_branch
          %3770 = sbr.rel (%p3768) target = $region188
        $region187: #{_lambda_.2} parent=183 // pred_region
          %p3771 = scmp.lt.s32.totalorder %s43, 1
          %s3772 = scalar_select %p3771, %s43, 1
          %s3773 = smul.addr %s3772, 8
          %s3774 = scalar_lea.vmem %s22, %s3773
        $region188: #{_lambda_.2} parent=183 // pred_fallthru
          _
      $region184: #{_lambda_.2} parent=5 // pred_fallthru
        _
    $region6: #{_lambda_.2} parent=1 // loop_footer
      %s41 = sadd.s32 1, %s37
    $region7: #{_lambda_.2} parent=1 // loop_footer_branch
      %36 = sbr.rel target = $region3
    $region8: #{_lambda_.2} parent=1 // loop_exit
      _
    %3775 = vsyncpa [#allocation3], 1
    %s3776 = scalar_lea.sflag [#allocation3], 1
    %3777 = vsyncpa %s3776, 1
    %3778 = vsyncpa [#allocation5], 1
    %3779 = vsyncpa [#allocation8], 1
    %3780 = vsyncpa [#allocation11], 1
    %3781 = vsyncpa [#allocation14], 1
    %3782 = vsyncpa [#allocation17], 1
    %3783 = vsyncpa [#allocation20], 1
    %3784 = vsyncpa [#allocation23], 1
    %3785 = vsyncpa [#allocation26], 1

</llo_original>
